<compile_context>
chip_gen: v5e
topology: v5e:2x2
jax: 0.10.0
libtpu: 0.0.40
codegen_flags: <defaults>
</compile_context>

<pallas_src>
import jax
import jax.numpy as jnp
from jax.experimental import pallas as pl
from jax.experimental.pallas import tpu as pltpu

_NEG = float(jnp.finfo(jnp.float32).min)  # "-inf" pad value (center tap is always real)


def _pool5(src):
    """5x5 max pool, stride 1, pad 2 on (H, W, C) f32, separable, halo in VMEM."""
    H, W, C = src.shape
    # Pass 1: max over the 5-tap window along W (sublane axis).
    padw = jnp.full((H, 2, C), _NEG, jnp.float32)
    xw = jnp.concatenate([padw, src, padw], axis=1)          # (H, W+4, C)
    rm = xw[:, 0:W, :]
    for dw in range(1, 5):
        rm = jnp.maximum(rm, xw[:, dw:dw + W, :])            # (H, W, C)
    # Pass 2: max over the 5-tap window along H (major axis).
    padh = jnp.full((2, W, C), _NEG, jnp.float32)
    xh = jnp.concatenate([padh, rm, padh], axis=0)           # (H+4, W, C)
    y = xh[0:H]
    for dh in range(1, 5):
        y = jnp.maximum(y, xh[dh:dh + H])                    # (H, W, C)
    return y


def _sppf_fused_kernel(x_ref, w1_ref, b1_ref, w2_ref, b2_ref, o_ref):
    # x_ref : (1, H, W, C1)   w1_ref: (C1, c_)    b1_ref: (1, c_)
    # w2_ref: (4, c_, c2)     b2_ref: (1, c2)     o_ref : (1, H, W, c2)
    _, H, W, _ = x_ref.shape
    HW = H * W
    c_ = w1_ref.shape[1]
    c2 = o_ref.shape[3]

    # ---- cv1: 1x1 conv (BN folded into weights) + bias + SiLU ----
    xin = x_ref[0].astype(jnp.float32).reshape(HW, -1)                 # (HW, C1)
    z1 = jnp.dot(xin, w1_ref[...], preferred_element_type=jnp.float32)
    z1 = z1 + b1_ref[...]
    x0 = z1 * jax.nn.sigmoid(z1)                                       # SiLU
    x0_img = x0.reshape(H, W, c_)

    # ---- three chained 5x5/s1/p2 max pools (separable, in-VMEM halo) ----
    y1 = _pool5(x0_img)
    y2 = _pool5(y1)
    y3 = _pool5(y2)

    # ---- cv2 fused with the channel concat: 4 accumulated matmuls ----
    acc = jnp.dot(x0, w2_ref[0], preferred_element_type=jnp.float32)
    acc += jnp.dot(y1.reshape(HW, c_), w2_ref[1], preferred_element_type=jnp.float32)
    acc += jnp.dot(y2.reshape(HW, c_), w2_ref[2], preferred_element_type=jnp.float32)
    acc += jnp.dot(y3.reshape(HW, c_), w2_ref[3], preferred_element_type=jnp.float32)
    acc = acc + b2_ref[...]
    out = acc * jax.nn.sigmoid(acc)                                    # SiLU
    o_ref[0] = out.reshape(H, W, c2).astype(o_ref.dtype)


def sppf_forward(x_nchw, params):
    """SPPF forward. x_nchw: (N, C1, H, W) like PyTorch; returns (N, C2, H, W)."""
    w1, b1 = params["w1"], params["b1"]
    w2, b2 = params["w2"], params["b2"]
    N, C1, H, W = x_nchw.shape
    c_ = w1.shape[1]
    c2 = w2.shape[2]

    x = jnp.transpose(x_nchw, (0, 2, 3, 1))  # NCHW -> NHWC (lane-dense channels)

    out = pl.pallas_call(
        _sppf_fused_kernel,
        out_shape=jax.ShapeDtypeStruct((N, H, W, c2), x_nchw.dtype),
        grid_spec=pltpu.PrefetchScalarGridSpec(
            num_scalar_prefetch=0,
            grid=(N,),
            in_specs=[
                pl.BlockSpec((1, H, W, C1), lambda n: (n, 0, 0, 0)),
                pl.BlockSpec((C1, c_), lambda n: (0, 0)),       # constant index ->
                pl.BlockSpec((1, c_), lambda n: (0, 0)),        # weights stay resident
                pl.BlockSpec((4, c_, c2), lambda n: (0, 0, 0)),
                pl.BlockSpec((1, c2), lambda n: (0, 0)),
            ],
            out_specs=pl.BlockSpec((1, H, W, c2), lambda n: (n, 0, 0, 0)),
        ),
        compiler_params=pltpu.CompilerParams(
            dimension_semantics=("parallel",),  # batch images split across TCs (v7x)
        ),
    )(x, w1, b1.reshape(1, c_), w2, b2.reshape(1, c2))

    return jnp.transpose(out, (0, 3, 1, 2))  # NHWC -> NCHW


def init_sppf_params(key, c1, c2):
    """Synthetic weights; inference BatchNorm (gamma=1, beta=0, mean=0, var=1, eps=1e-5)
    folded into the conv weights.  1x1 conv weights stored as (Cin, Cout); cv2 stored
    as (4, c_, c2) chunks matching the [x, y1, y2, y3] concat order."""
    c_ = c1 // 2
    eps = 1e-5
    k1, k2 = jax.random.split(key)
    w1 = jax.random.normal(k1, (c1, c_), dtype=jnp.float32) * 0.1
    w2 = jax.random.normal(k2, (4, c_, c2), dtype=jnp.float32) * 0.1
    bn_scale = jnp.float32(1.0) / jnp.sqrt(jnp.float32(1.0 + eps))
    return {
        "w1": w1 * bn_scale,                    # BN scale folded into weight columns
        "b1": jnp.zeros((c_,), jnp.float32),    # beta - mean*scale = 0 at this init
        "w2": w2 * bn_scale,
        "b2": jnp.zeros((c2,), jnp.float32),
    }


def _sppf_reference(x_nchw, params):
    """Pure-JAX reference (same math as the PyTorch module with folded BN)."""
    silu = lambda v: v * jax.nn.sigmoid(v)
    x = jnp.transpose(x_nchw, (0, 2, 3, 1))
    x0 = silu(jnp.einsum("nhwc,cd->nhwd", x, params["w1"]) + params["b1"])

    def pool(v):
        vp = jnp.pad(v, ((0, 0), (2, 2), (2, 2), (0, 0)), constant_values=-jnp.inf)
        out = None
        Hh, Ww = v.shape[1], v.shape[2]
        for dh in range(5):
            for dw in range(5):
                s = vp[:, dh:dh + Hh, dw:dw + Ww, :]
                out = s if out is None else jnp.maximum(out, s)
        return out

    y1 = pool(x0)
    y2 = pool(y1)
    y3 = pool(y2)
    cat = jnp.concatenate([x0, y1, y2, y3], axis=-1)
    w2 = params["w2"].reshape(-1, params["w2"].shape[-1])
    out = silu(jnp.einsum("nhwc,cd->nhwd", cat, w2) + params["b2"])
    return jnp.transpose(out, (0, 3, 1, 2))


if __name__ == "__main__":
    key = jax.random.PRNGKey(0)
    kx, kp = jax.random.split(key)

    N, C1, H, W = 2, 4, 16, 16
    C2 = 8
    x = jax.random.normal(kx, (N, C1, H, W), dtype=jnp.float32)  # NCHW like PyTorch
    params = init_sppf_params(kp, C1, C2)

    out = jax.jit(sppf_forward)(x, params)
    jax.block_until_ready(out)
    assert out.shape == (N, C2, H, W), out.shape

    ref = _sppf_reference(x, params)
    assert bool(jnp.allclose(out, ref, atol=1e-3, rtol=1e-3)), "mismatch vs reference"

    print("KERNEL_OK")
</pallas_src>

<mosaic_0001>
module attributes {stable_mosaic.version = 11 : i64} {
  func.func @_sppf_fused_kernel(%arg0: i32, %arg1: memref<1x16x16x4xf32, #tpu.memory_space<vmem>>, %arg2: memref<4x2xf32, #tpu.memory_space<vmem>>, %arg3: memref<1x2xf32, #tpu.memory_space<vmem>>, %arg4: memref<4x2x8xf32, #tpu.memory_space<vmem>>, %arg5: memref<1x8xf32, #tpu.memory_space<vmem>>, %arg6: memref<1x16x16x8xf32, #tpu.memory_space<vmem>>) attributes {dimension_semantics = [#tpu.dimension_semantics<parallel>], iteration_bounds = array<i64: 2>, scalar_prefetch = 0 : i64, scratch_operands = 0 : i64, tpu.core_type = #tpu.core_type<tc>, window_params = [{transform_indices = @transform_0, window_bounds = array<i64: 1, 16, 16, 4>}, {pipeline_mode = #tpu.pipeline_mode<synchronous>, transform_indices = @transform_1, window_bounds = array<i64: 4, 2>}, {pipeline_mode = #tpu.pipeline_mode<synchronous>, transform_indices = @transform_2, window_bounds = array<i64: 1, 2>}, {pipeline_mode = #tpu.pipeline_mode<synchronous>, transform_indices = @transform_3, window_bounds = array<i64: 4, 2, 8>}, {pipeline_mode = #tpu.pipeline_mode<synchronous>, transform_indices = @transform_4, window_bounds = array<i64: 1, 8>}, {transform_indices = @transform_5, window_bounds = array<i64: 1, 16, 16, 8>}]} {
    %c0 = arith.constant 0 : index
    %c0_0 = arith.constant 0 : index
    %c0_1 = arith.constant 0 : index
    %c0_2 = arith.constant 0 : index
    %0 = vector.load %arg1[%c0, %c0_0, %c0_1, %c0_2] : memref<1x16x16x4xf32, #tpu.memory_space<vmem>>, vector<1x16x16x4xf32>
    %1 = vector.shape_cast %0 : vector<1x16x16x4xf32> to vector<16x16x4xf32>
    %2 = vector.shape_cast %1 : vector<16x16x4xf32> to vector<256x4xf32>
    %c0_3 = arith.constant 0 : index
    %c0_4 = arith.constant 0 : index
    %3 = vector.load %arg2[%c0_3, %c0_4] : memref<4x2xf32, #tpu.memory_space<vmem>>, vector<4x2xf32>
    %cst = arith.constant dense<0.000000e+00> : vector<256x2xf32>
    %4 = tpu.matmul %2, %3, %cst {dimension_numbers = #tpu.dot_dimension_numbers<[1], [0], [0], [1], [0, 0, 1, 1], [], []>} : vector<256x4xf32>, vector<4x2xf32>, vector<256x2xf32> -> vector<256x2xf32>
    %c0_5 = arith.constant 0 : index
    %c0_6 = arith.constant 0 : index
    %5 = vector.load %arg3[%c0_5, %c0_6] : memref<1x2xf32, #tpu.memory_space<vmem>>, vector<1x2xf32>
    %6 = vector.broadcast %5 : vector<1x2xf32> to vector<256x2xf32>
    %7 = arith.addf %4, %6 : vector<256x2xf32>
    %8 = arith.negf %7 : vector<256x2xf32>
    %9 = math.exp %8 : vector<256x2xf32>
    %cst_7 = arith.constant 1.000000e+00 : f32
    %10 = vector.broadcast %cst_7 : f32 to vector<256x2xf32>
    %11 = arith.addf %10, %9 : vector<256x2xf32>
    %12 = arith.divf %10, %11 : vector<256x2xf32>
    %13 = arith.mulf %7, %12 : vector<256x2xf32>
    %14 = vector.shape_cast %13 : vector<256x2xf32> to vector<16x16x2xf32>
    %cst_8 = arith.constant -3.40282347E+38 : f32
    %15 = vector.broadcast %cst_8 : f32 to vector<16x2x2xf32>
    %16 = tpu.concatenate %15, %14, %15 in 1 : vector<16x2x2xf32>, vector<16x16x2xf32>, vector<16x2x2xf32> -> vector<16x20x2xf32>
    %17 = vector.extract_strided_slice %16 {offsets = [0, 0, 0], sizes = [16, 16, 2], strides = [1, 1, 1]} : vector<16x20x2xf32> to vector<16x16x2xf32>
    %18 = vector.extract_strided_slice %16 {offsets = [0, 1, 0], sizes = [16, 16, 2], strides = [1, 1, 1]} : vector<16x20x2xf32> to vector<16x16x2xf32>
    %19 = arith.maximumf %17, %18 : vector<16x16x2xf32>
    %20 = vector.extract_strided_slice %16 {offsets = [0, 2, 0], sizes = [16, 16, 2], strides = [1, 1, 1]} : vector<16x20x2xf32> to vector<16x16x2xf32>
    %21 = arith.maximumf %19, %20 : vector<16x16x2xf32>
    %22 = vector.extract_strided_slice %16 {offsets = [0, 3, 0], sizes = [16, 16, 2], strides = [1, 1, 1]} : vector<16x20x2xf32> to vector<16x16x2xf32>
    %23 = arith.maximumf %21, %22 : vector<16x16x2xf32>
    %24 = vector.extract_strided_slice %16 {offsets = [0, 4, 0], sizes = [16, 16, 2], strides = [1, 1, 1]} : vector<16x20x2xf32> to vector<16x16x2xf32>
    %25 = arith.maximumf %23, %24 : vector<16x16x2xf32>
    %cst_9 = arith.constant -3.40282347E+38 : f32
    %26 = vector.broadcast %cst_9 : f32 to vector<2x16x2xf32>
    %27 = tpu.concatenate %26, %25, %26 in 0 : vector<2x16x2xf32>, vector<16x16x2xf32>, vector<2x16x2xf32> -> vector<20x16x2xf32>
    %28 = vector.extract_strided_slice %27 {offsets = [0, 0, 0], sizes = [16, 16, 2], strides = [1, 1, 1]} : vector<20x16x2xf32> to vector<16x16x2xf32>
    %29 = vector.extract_strided_slice %27 {offsets = [1, 0, 0], sizes = [16, 16, 2], strides = [1, 1, 1]} : vector<20x16x2xf32> to vector<16x16x2xf32>
    %30 = arith.maximumf %28, %29 : vector<16x16x2xf32>
    %31 = vector.extract_strided_slice %27 {offsets = [2, 0, 0], sizes = [16, 16, 2], strides = [1, 1, 1]} : vector<20x16x2xf32> to vector<16x16x2xf32>
    %32 = arith.maximumf %30, %31 : vector<16x16x2xf32>
    %33 = vector.extract_strided_slice %27 {offsets = [3, 0, 0], sizes = [16, 16, 2], strides = [1, 1, 1]} : vector<20x16x2xf32> to vector<16x16x2xf32>
    %34 = arith.maximumf %32, %33 : vector<16x16x2xf32>
    %35 = vector.extract_strided_slice %27 {offsets = [4, 0, 0], sizes = [16, 16, 2], strides = [1, 1, 1]} : vector<20x16x2xf32> to vector<16x16x2xf32>
    %36 = arith.maximumf %34, %35 : vector<16x16x2xf32>
    %cst_10 = arith.constant -3.40282347E+38 : f32
    %37 = vector.broadcast %cst_10 : f32 to vector<16x2x2xf32>
    %38 = tpu.concatenate %37, %36, %37 in 1 : vector<16x2x2xf32>, vector<16x16x2xf32>, vector<16x2x2xf32> -> vector<16x20x2xf32>
    %39 = vector.extract_strided_slice %38 {offsets = [0, 0, 0], sizes = [16, 16, 2], strides = [1, 1, 1]} : vector<16x20x2xf32> to vector<16x16x2xf32>
    %40 = vector.extract_strided_slice %38 {offsets = [0, 1, 0], sizes = [16, 16, 2], strides = [1, 1, 1]} : vector<16x20x2xf32> to vector<16x16x2xf32>
    %41 = arith.maximumf %39, %40 : vector<16x16x2xf32>
    %42 = vector.extract_strided_slice %38 {offsets = [0, 2, 0], sizes = [16, 16, 2], strides = [1, 1, 1]} : vector<16x20x2xf32> to vector<16x16x2xf32>
    %43 = arith.maximumf %41, %42 : vector<16x16x2xf32>
    %44 = vector.extract_strided_slice %38 {offsets = [0, 3, 0], sizes = [16, 16, 2], strides = [1, 1, 1]} : vector<16x20x2xf32> to vector<16x16x2xf32>
    %45 = arith.maximumf %43, %44 : vector<16x16x2xf32>
    %46 = vector.extract_strided_slice %38 {offsets = [0, 4, 0], sizes = [16, 16, 2], strides = [1, 1, 1]} : vector<16x20x2xf32> to vector<16x16x2xf32>
    %47 = arith.maximumf %45, %46 : vector<16x16x2xf32>
    %cst_11 = arith.constant -3.40282347E+38 : f32
    %48 = vector.broadcast %cst_11 : f32 to vector<2x16x2xf32>
    %49 = tpu.concatenate %48, %47, %48 in 0 : vector<2x16x2xf32>, vector<16x16x2xf32>, vector<2x16x2xf32> -> vector<20x16x2xf32>
    %50 = vector.extract_strided_slice %49 {offsets = [0, 0, 0], sizes = [16, 16, 2], strides = [1, 1, 1]} : vector<20x16x2xf32> to vector<16x16x2xf32>
    %51 = vector.extract_strided_slice %49 {offsets = [1, 0, 0], sizes = [16, 16, 2], strides = [1, 1, 1]} : vector<20x16x2xf32> to vector<16x16x2xf32>
    %52 = arith.maximumf %50, %51 : vector<16x16x2xf32>
    %53 = vector.extract_strided_slice %49 {offsets = [2, 0, 0], sizes = [16, 16, 2], strides = [1, 1, 1]} : vector<20x16x2xf32> to vector<16x16x2xf32>
    %54 = arith.maximumf %52, %53 : vector<16x16x2xf32>
    %55 = vector.extract_strided_slice %49 {offsets = [3, 0, 0], sizes = [16, 16, 2], strides = [1, 1, 1]} : vector<20x16x2xf32> to vector<16x16x2xf32>
    %56 = arith.maximumf %54, %55 : vector<16x16x2xf32>
    %57 = vector.extract_strided_slice %49 {offsets = [4, 0, 0], sizes = [16, 16, 2], strides = [1, 1, 1]} : vector<20x16x2xf32> to vector<16x16x2xf32>
    %58 = arith.maximumf %56, %57 : vector<16x16x2xf32>
    %cst_12 = arith.constant -3.40282347E+38 : f32
    %59 = vector.broadcast %cst_12 : f32 to vector<16x2x2xf32>
    %60 = tpu.concatenate %59, %58, %59 in 1 : vector<16x2x2xf32>, vector<16x16x2xf32>, vector<16x2x2xf32> -> vector<16x20x2xf32>
    %61 = vector.extract_strided_slice %60 {offsets = [0, 0, 0], sizes = [16, 16, 2], strides = [1, 1, 1]} : vector<16x20x2xf32> to vector<16x16x2xf32>
    %62 = vector.extract_strided_slice %60 {offsets = [0, 1, 0], sizes = [16, 16, 2], strides = [1, 1, 1]} : vector<16x20x2xf32> to vector<16x16x2xf32>
    %63 = arith.maximumf %61, %62 : vector<16x16x2xf32>
    %64 = vector.extract_strided_slice %60 {offsets = [0, 2, 0], sizes = [16, 16, 2], strides = [1, 1, 1]} : vector<16x20x2xf32> to vector<16x16x2xf32>
    %65 = arith.maximumf %63, %64 : vector<16x16x2xf32>
    %66 = vector.extract_strided_slice %60 {offsets = [0, 3, 0], sizes = [16, 16, 2], strides = [1, 1, 1]} : vector<16x20x2xf32> to vector<16x16x2xf32>
    %67 = arith.maximumf %65, %66 : vector<16x16x2xf32>
    %68 = vector.extract_strided_slice %60 {offsets = [0, 4, 0], sizes = [16, 16, 2], strides = [1, 1, 1]} : vector<16x20x2xf32> to vector<16x16x2xf32>
    %69 = arith.maximumf %67, %68 : vector<16x16x2xf32>
    %cst_13 = arith.constant -3.40282347E+38 : f32
    %70 = vector.broadcast %cst_13 : f32 to vector<2x16x2xf32>
    %71 = tpu.concatenate %70, %69, %70 in 0 : vector<2x16x2xf32>, vector<16x16x2xf32>, vector<2x16x2xf32> -> vector<20x16x2xf32>
    %72 = vector.extract_strided_slice %71 {offsets = [0, 0, 0], sizes = [16, 16, 2], strides = [1, 1, 1]} : vector<20x16x2xf32> to vector<16x16x2xf32>
    %73 = vector.extract_strided_slice %71 {offsets = [1, 0, 0], sizes = [16, 16, 2], strides = [1, 1, 1]} : vector<20x16x2xf32> to vector<16x16x2xf32>
    %74 = arith.maximumf %72, %73 : vector<16x16x2xf32>
    %75 = vector.extract_strided_slice %71 {offsets = [2, 0, 0], sizes = [16, 16, 2], strides = [1, 1, 1]} : vector<20x16x2xf32> to vector<16x16x2xf32>
    %76 = arith.maximumf %74, %75 : vector<16x16x2xf32>
    %77 = vector.extract_strided_slice %71 {offsets = [3, 0, 0], sizes = [16, 16, 2], strides = [1, 1, 1]} : vector<20x16x2xf32> to vector<16x16x2xf32>
    %78 = arith.maximumf %76, %77 : vector<16x16x2xf32>
    %79 = vector.extract_strided_slice %71 {offsets = [4, 0, 0], sizes = [16, 16, 2], strides = [1, 1, 1]} : vector<20x16x2xf32> to vector<16x16x2xf32>
    %80 = arith.maximumf %78, %79 : vector<16x16x2xf32>
    %c0_14 = arith.constant 0 : index
    %c0_15 = arith.constant 0 : index
    %c0_16 = arith.constant 0 : index
    %81 = vector.load %arg4[%c0_14, %c0_15, %c0_16] : memref<4x2x8xf32, #tpu.memory_space<vmem>>, vector<1x2x8xf32>
    %82 = vector.shape_cast %81 : vector<1x2x8xf32> to vector<2x8xf32>
    %cst_17 = arith.constant dense<0.000000e+00> : vector<256x8xf32>
    %83 = tpu.matmul %13, %82, %cst_17 {dimension_numbers = #tpu.dot_dimension_numbers<[1], [0], [0], [1], [0, 0, 1, 1], [], []>} : vector<256x2xf32>, vector<2x8xf32>, vector<256x8xf32> -> vector<256x8xf32>
    %84 = vector.shape_cast %36 : vector<16x16x2xf32> to vector<256x2xf32>
    %c1 = arith.constant 1 : index
    %c0_18 = arith.constant 0 : index
    %c0_19 = arith.constant 0 : index
    %85 = vector.load %arg4[%c1, %c0_18, %c0_19] : memref<4x2x8xf32, #tpu.memory_space<vmem>>, vector<1x2x8xf32>
    %86 = vector.shape_cast %85 : vector<1x2x8xf32> to vector<2x8xf32>
    %cst_20 = arith.constant dense<0.000000e+00> : vector<256x8xf32>
    %87 = tpu.matmul %84, %86, %cst_20 {dimension_numbers = #tpu.dot_dimension_numbers<[1], [0], [0], [1], [0, 0, 1, 1], [], []>} : vector<256x2xf32>, vector<2x8xf32>, vector<256x8xf32> -> vector<256x8xf32>
    %88 = arith.addf %83, %87 : vector<256x8xf32>
    %89 = vector.shape_cast %58 : vector<16x16x2xf32> to vector<256x2xf32>
    %c2 = arith.constant 2 : index
    %c0_21 = arith.constant 0 : index
    %c0_22 = arith.constant 0 : index
    %90 = vector.load %arg4[%c2, %c0_21, %c0_22] : memref<4x2x8xf32, #tpu.memory_space<vmem>>, vector<1x2x8xf32>
    %91 = vector.shape_cast %90 : vector<1x2x8xf32> to vector<2x8xf32>
    %cst_23 = arith.constant dense<0.000000e+00> : vector<256x8xf32>
    %92 = tpu.matmul %89, %91, %cst_23 {dimension_numbers = #tpu.dot_dimension_numbers<[1], [0], [0], [1], [0, 0, 1, 1], [], []>} : vector<256x2xf32>, vector<2x8xf32>, vector<256x8xf32> -> vector<256x8xf32>
    %93 = arith.addf %88, %92 : vector<256x8xf32>
    %94 = vector.shape_cast %80 : vector<16x16x2xf32> to vector<256x2xf32>
    %c3 = arith.constant 3 : index
    %c0_24 = arith.constant 0 : index
    %c0_25 = arith.constant 0 : index
    %95 = vector.load %arg4[%c3, %c0_24, %c0_25] : memref<4x2x8xf32, #tpu.memory_space<vmem>>, vector<1x2x8xf32>
    %96 = vector.shape_cast %95 : vector<1x2x8xf32> to vector<2x8xf32>
    %cst_26 = arith.constant dense<0.000000e+00> : vector<256x8xf32>
    %97 = tpu.matmul %94, %96, %cst_26 {dimension_numbers = #tpu.dot_dimension_numbers<[1], [0], [0], [1], [0, 0, 1, 1], [], []>} : vector<256x2xf32>, vector<2x8xf32>, vector<256x8xf32> -> vector<256x8xf32>
    %98 = arith.addf %93, %97 : vector<256x8xf32>
    %c0_27 = arith.constant 0 : index
    %c0_28 = arith.constant 0 : index
    %99 = vector.load %arg5[%c0_27, %c0_28] : memref<1x8xf32, #tpu.memory_space<vmem>>, vector<1x8xf32>
    %100 = vector.broadcast %99 : vector<1x8xf32> to vector<256x8xf32>
    %101 = arith.addf %98, %100 : vector<256x8xf32>
    %102 = arith.negf %101 : vector<256x8xf32>
    %103 = math.exp %102 : vector<256x8xf32>
    %cst_29 = arith.constant 1.000000e+00 : f32
    %104 = vector.broadcast %cst_29 : f32 to vector<256x8xf32>
    %105 = arith.addf %104, %103 : vector<256x8xf32>
    %106 = arith.divf %104, %105 : vector<256x8xf32>
    %107 = arith.mulf %101, %106 : vector<256x8xf32>
    %108 = vector.shape_cast %107 : vector<256x8xf32> to vector<16x16x8xf32>
    %c0_30 = arith.constant 0 : index
    %c0_31 = arith.constant 0 : index
    %c0_32 = arith.constant 0 : index
    %c0_33 = arith.constant 0 : index
    %109 = vector.load %arg6[%c0_30, %c0_31, %c0_32, %c0_33] : memref<1x16x16x8xf32, #tpu.memory_space<vmem>>, vector<1x16x16x8xf32>
    %110 = vector.shape_cast %109 : vector<1x16x16x8xf32> to vector<16x16x8xf32>
    %111 = vector.shape_cast %108 : vector<16x16x8xf32> to vector<1x16x16x8xf32>
    tpu.vector_store %arg6[%c0_30, %c0_31, %c0_32, %c0_33], %111 {strides = array<i32>} : memref<1x16x16x8xf32, #tpu.memory_space<vmem>>, vector<1x16x16x8xf32>,
    return
  }
  func.func @transform_0(%arg0: i32) -> (i32, i32, i32, i32) {
    %c0_i32 = arith.constant 0 : i32
    %c0_i32_0 = arith.constant 0 : i32
    %c0_i32_1 = arith.constant 0 : i32
    %c0_i32_2 = arith.constant 0 : i32
    return %arg0, %c0_i32, %c0_i32_0, %c0_i32_1 : i32, i32, i32, i32
  }
  func.func @transform_1(%arg0: i32) -> (i32, i32) {
    %c0_i32 = arith.constant 0 : i32
    %c0_i32_0 = arith.constant 0 : i32
    %c0_i32_1 = arith.constant 0 : i32
    return %c0_i32, %c0_i32_0 : i32, i32
  }
  func.func @transform_2(%arg0: i32) -> (i32, i32) {
    %c0_i32 = arith.constant 0 : i32
    %c0_i32_0 = arith.constant 0 : i32
    %c0_i32_1 = arith.constant 0 : i32
    return %c0_i32, %c0_i32_0 : i32, i32
  }
  func.func @transform_3(%arg0: i32) -> (i32, i32, i32) {
    %c0_i32 = arith.constant 0 : i32
    %c0_i32_0 = arith.constant 0 : i32
    %c0_i32_1 = arith.constant 0 : i32
    %c0_i32_2 = arith.constant 0 : i32
    return %c0_i32, %c0_i32_0, %c0_i32_1 : i32, i32, i32
  }
  func.func @transform_4(%arg0: i32) -> (i32, i32) {
    %c0_i32 = arith.constant 0 : i32
    %c0_i32_0 = arith.constant 0 : i32
    %c0_i32_1 = arith.constant 0 : i32
    return %c0_i32, %c0_i32_0 : i32, i32
  }
  func.func @transform_5(%arg0: i32) -> (i32, i32, i32, i32) {
    %c0_i32 = arith.constant 0 : i32
    %c0_i32_0 = arith.constant 0 : i32
    %c0_i32_1 = arith.constant 0 : i32
    %c0_i32_2 = arith.constant 0 : i32
    return %arg0, %c0_i32, %c0_i32_0, %c0_i32_1 : i32, i32, i32, i32
  }
}

</mosaic_0001>

<llo_original>
// kernel: sppf_forward.1
$region0: #{sppf_forward.1}
  #allocation0 [shape = 'u32[]', space=smem, size = 0x4, offset = 0x4, fixed_abs, tag = 'smem constant byte address 0x4 - core index']
  #allocation1 [shape = 'u32[72,128]{1,0:T(1,128)}', space=vmem, size = 0x9000, scoped, tag = 'internal scratch']
  %s0 = inlined_call_operand.vmem [shape: f32[2,16,16,4], index: 0, kind: input, shape index: {}]
  %s1 = inlined_call_operand.vmem [shape: f32[4,2], index: 1, kind: input, shape index: {}]
  %s2 = inlined_call_operand.vmem [shape: f32[1,2], index: 2, kind: input, shape index: {}]
  %s3 = inlined_call_operand.vmem [shape: f32[4,2,8], index: 3, kind: input, shape index: {}]
  %s4 = inlined_call_operand.vmem [shape: f32[1,8], index: 4, kind: input, shape index: {}]
  %s5 = inlined_call_operand.vmem [shape: f32[2,16,16,8], index: 5, kind: output, shape index: {}]
  %s6 = sld [smem:[#allocation0]]
  $region53: #{sppf_forward.1} parent=0
    _
  %s8 = ssub.s32 1, %s6
  %s9 = scalar_select 0, %s8, %s6
  loop: start=0, step=1, limit=4
  $region2: #{sppf_forward.1} parent=0 // loop_pre_header
    _
  $region3: #{sppf_forward.1} parent=0 // loop_header
    %s11 = sphi 0, %s15
    %p12 = scmp.ge.s32.totalorder %s11, 4
    %s21 = sphi 0, %s23
    %s24 = sphi 0, %s21
    %s25 = sphi 0, %s24
    %s41 = sphi 0, %s25
    %s45 = sphi 0, %s45
    %s47 = sphi 0, %s45
    %s48 = sphi 0, %s47
    %s62 = sphi 0, %s48
    %s66 = sphi 0, %s66
    %s68 = sphi 0, %s66
    %s69 = sphi 0, %s68
    %s83 = sphi 0, %s69
    %s87 = sphi 0, %s87
    %s89 = sphi 0, %s87
    %s90 = sphi 0, %s89
    %s104 = sphi 0, %s90
    %s108 = sphi 0, %s108
    %s110 = sphi 0, %s108
    %s111 = sphi 0, %s110
    %s125 = sphi 0, %s111
    %s131 = sphi 0, %s133
    %s134 = sphi 0, %s131
    %s135 = sphi 0, %s134
    %s151 = sphi 0, %s135
  $region4: #{sppf_forward.1} parent=0 // loop_header_branch
    %14 = sbr.rel (%p12) target = $region8
  $region5: #{sppf_forward.1} parent=0 // loop_body
    %s16 = ssub.s32 %s11, 1
    %s17 = ssub.s32 %s11, 2
    %s18 = sadd.s32 %s11, 1
    %s19 = ssub.s32 %s11, %s18
    %p20 = scmp.eq.s32.totalorder %s19, 0
    %s22 = sadd.s32 %s21, 1
    %s23 = scalar_select %p20, %s21, %s22
    %p26 = pneg %p20
    %p27 = scmp.eq.s32.totalorder %s11, 1
    %p28 = por %p26, %p27
    %p29 = scmp.ne.s32.totalorder %s21, %s24
    %p30 = scmp.eq.s32.totalorder %s11, 0
    %p31 = por %p29, %p30
    %p32 = scmp.ne.s32.totalorder %s21, %s24
    %p33 = scmp.eq.s32.totalorder %s16, 1
    %p34 = por %p32, %p33
    %p35 = scmp.ne.s32.totalorder %s24, %s25
    %p36 = scmp.eq.s32.totalorder %s16, 0
    %p37 = por %p35, %p36
    %p38 = scmp.ne.s32.totalorder %s24, %s25
    %p39 = scmp.eq.s32.totalorder %s17, 1
    %p40 = por %p38, %p39
    %p42 = scmp.ne.s32.totalorder %s25, %s41
    %p43 = scmp.eq.s32.totalorder %s17, 0
    %p44 = por %p42, %p43
    %s46 = sadd.s32 %s45, 1
    %p49 = scmp.eq.s32.totalorder %s11, 1
    %p50 = scmp.ne.s32.totalorder %s45, %s47
    %p51 = scmp.eq.s32.totalorder %s11, 0
    %p52 = por %p50, %p51
    %p53 = scmp.ne.s32.totalorder %s45, %s47
    %p54 = scmp.eq.s32.totalorder %s16, 1
    %p55 = por %p53, %p54
    %p56 = scmp.ne.s32.totalorder %s47, %s48
    %p57 = scmp.eq.s32.totalorder %s16, 0
    %p58 = por %p56, %p57
    %p59 = scmp.ne.s32.totalorder %s47, %s48
    %p60 = scmp.eq.s32.totalorder %s17, 1
    %p61 = por %p59, %p60
    %p63 = scmp.ne.s32.totalorder %s48, %s62
    %p64 = scmp.eq.s32.totalorder %s17, 0
    %p65 = por %p63, %p64
    %s67 = sadd.s32 %s66, 1
    %p70 = scmp.eq.s32.totalorder %s11, 1
    %p71 = scmp.ne.s32.totalorder %s66, %s68
    %p72 = scmp.eq.s32.totalorder %s11, 0
    %p73 = por %p71, %p72
    %p74 = scmp.ne.s32.totalorder %s66, %s68
    %p75 = scmp.eq.s32.totalorder %s16, 1
    %p76 = por %p74, %p75
    %p77 = scmp.ne.s32.totalorder %s68, %s69
    %p78 = scmp.eq.s32.totalorder %s16, 0
    %p79 = por %p77, %p78
    %p80 = scmp.ne.s32.totalorder %s68, %s69
    %p81 = scmp.eq.s32.totalorder %s17, 1
    %p82 = por %p80, %p81
    %p84 = scmp.ne.s32.totalorder %s69, %s83
    %p85 = scmp.eq.s32.totalorder %s17, 0
    %p86 = por %p84, %p85
    %s88 = sadd.s32 %s87, 1
    %p91 = scmp.eq.s32.totalorder %s11, 1
    %p92 = scmp.ne.s32.totalorder %s87, %s89
    %p93 = scmp.eq.s32.totalorder %s11, 0
    %p94 = por %p92, %p93
    %p95 = scmp.ne.s32.totalorder %s87, %s89
    %p96 = scmp.eq.s32.totalorder %s16, 1
    %p97 = por %p95, %p96
    %p98 = scmp.ne.s32.totalorder %s89, %s90
    %p99 = scmp.eq.s32.totalorder %s16, 0
    %p100 = por %p98, %p99
    %p101 = scmp.ne.s32.totalorder %s89, %s90
    %p102 = scmp.eq.s32.totalorder %s17, 1
    %p103 = por %p101, %p102
    %p105 = scmp.ne.s32.totalorder %s90, %s104
    %p106 = scmp.eq.s32.totalorder %s17, 0
    %p107 = por %p105, %p106
    %s109 = sadd.s32 %s108, 1
    %p112 = scmp.eq.s32.totalorder %s11, 1
    %p113 = scmp.ne.s32.totalorder %s108, %s110
    %p114 = scmp.eq.s32.totalorder %s11, 0
    %p115 = por %p113, %p114
    %p116 = scmp.ne.s32.totalorder %s108, %s110
    %p117 = scmp.eq.s32.totalorder %s16, 1
    %p118 = por %p116, %p117
    %p119 = scmp.ne.s32.totalorder %s110, %s111
    %p120 = scmp.eq.s32.totalorder %s16, 0
    %p121 = por %p119, %p120
    %p122 = scmp.ne.s32.totalorder %s110, %s111
    %p123 = scmp.eq.s32.totalorder %s17, 1
    %p124 = por %p122, %p123
    %p126 = scmp.ne.s32.totalorder %s111, %s125
    %p127 = scmp.eq.s32.totalorder %s17, 0
    %p128 = por %p126, %p127
    %s129 = ssub.s32 %s11, %s18
    %p130 = scmp.eq.s32.totalorder %s129, 0
    %s132 = sadd.s32 %s131, 1
    %s133 = scalar_select %p130, %s131, %s132
    %p136 = pneg %p130
    %p137 = scmp.eq.s32.totalorder %s11, 1
    %p138 = por %p136, %p137
    %p139 = scmp.ne.s32.totalorder %s131, %s134
    %p140 = scmp.eq.s32.totalorder %s11, 0
    %p141 = por %p139, %p140
    %p142 = scmp.ne.s32.totalorder %s131, %s134
    %p143 = scmp.eq.s32.totalorder %s16, 1
    %p144 = por %p142, %p143
    %p145 = scmp.ne.s32.totalorder %s134, %s135
    %p146 = scmp.eq.s32.totalorder %s16, 0
    %p147 = por %p145, %p146
    %p148 = scmp.ne.s32.totalorder %s134, %s135
    %p149 = scmp.eq.s32.totalorder %s17, 1
    %p150 = por %p148, %p149
    %p152 = scmp.ne.s32.totalorder %s135, %s151
    %p153 = scmp.eq.s32.totalorder %s17, 0
    %p154 = por %p152, %p153
    %p155 = scmp.le.s32.totalorder 1, %s11
    %p156 = scmp.lt.s32.totalorder %s11, 3
    %p157 = pnand %p155, %p156
    %p158 = pneg %p157
    // Predicated region
    $region9: #{sppf_forward.1} parent=5 // pred_check
      _
    $region10: #{sppf_forward.1} parent=5 // pred_check_branch
      %160 = sbr.rel (%p157) target = $region12
    $region11: #{sppf_forward.1} parent=5 // pred_region
      %s161 = ssub.s32 %s11, 1
      // Predicated region
      $region13: #{sppf_forward.1} parent=11 // pred_check
        %p162 = pneg %p58
      $region14: #{sppf_forward.1} parent=11 // pred_check_branch
        %164 = sbr.rel (%p162) target = $region16
      $region15: #{sppf_forward.1} parent=11 // pred_region
        _
      $region16: #{sppf_forward.1} parent=11 // pred_fallthru
        _
      // Predicated region
      $region17: #{sppf_forward.1} parent=11 // pred_check
        %p165 = pneg %p79
      $region18: #{sppf_forward.1} parent=11 // pred_check_branch
        %167 = sbr.rel (%p165) target = $region20
      $region19: #{sppf_forward.1} parent=11 // pred_region
        _
      $region20: #{sppf_forward.1} parent=11 // pred_fallthru
        _
      // Predicated region
      $region21: #{sppf_forward.1} parent=11 // pred_check
        %p168 = pneg %p100
      $region22: #{sppf_forward.1} parent=11 // pred_check_branch
        %170 = sbr.rel (%p168) target = $region24
      $region23: #{sppf_forward.1} parent=11 // pred_region
        _
      $region24: #{sppf_forward.1} parent=11 // pred_fallthru
        _
      // Predicated region
      $region25: #{sppf_forward.1} parent=11 // pred_check
        %p171 = pneg %p121
      $region26: #{sppf_forward.1} parent=11 // pred_check_branch
        %173 = sbr.rel (%p171) target = $region28
      $region27: #{sppf_forward.1} parent=11 // pred_region
        _
      $region28: #{sppf_forward.1} parent=11 // pred_fallthru
        _
    $region12: #{sppf_forward.1} parent=5 // pred_fallthru
      _
    %p174 = scmp.lt.s32.totalorder %s11, 2
    // Predicated region
    $region29: #{sppf_forward.1} parent=5 // pred_check
      %p175 = pneg %p174
    $region30: #{sppf_forward.1} parent=5 // pred_check_branch
      %177 = sbr.rel (%p175) target = $region32
    $region31: #{sppf_forward.1} parent=5 // pred_region
      // Predicated region
      $region33: #{sppf_forward.1} parent=31 // pred_check
        %p178 = pneg %p31
      $region34: #{sppf_forward.1} parent=31 // pred_check_branch
        %180 = sbr.rel (%p178) target = $region36
      $region35: #{sppf_forward.1} parent=31 // pred_region
        %p181 = scmp.lt.s32.totalorder %s11, 1
        %s182 = scalar_select %p181, %s11, 1
        %s183 = smul.addr %s182, 32
        %s184 = smul.addr %s183, 8
        %s185 = scalar_lea.vmem %s0, %s184
      $region36: #{sppf_forward.1} parent=31 // pred_fallthru
        _
    $region32: #{sppf_forward.1} parent=5 // pred_fallthru
      _
    %p186 = scmp.le.s32.totalorder 1, %s11
    %p187 = scmp.lt.s32.totalorder %s11, 3
    %p188 = pnand %p186, %p187
    %p189 = pneg %p188
    // Predicated region
    $region37: #{sppf_forward.1} parent=5 // pred_check
      _
    $region38: #{sppf_forward.1} parent=5 // pred_check_branch
      %191 = sbr.rel (%p188) target = $region40
    $region39: #{sppf_forward.1} parent=5 // pred_region
      %s192 = ssub.s32 %s11, 1
      %p193 = scmp.lt.s32.totalorder %s16, 1
      %s194 = scalar_select %p193, %s16, 1
      %s195 = smul.addr %s194, 32
      %s196 = smul.addr %s195, 8
      %s197 = scalar_lea.vmem %s0, %s196
      %p198 = pneg %p37
      %p199 = pneg %p34
      %p200 = pneg %p58
      %p201 = pneg %p55
      %p202 = pneg %p79
      %p203 = pneg %p76
      %p204 = pneg %p100
      %p205 = pneg %p97
      %p206 = pneg %p121
      %p207 = pneg %p118
      %p208 = pneg %p147
      %p209 = pneg %p144
      %p210 = scmp.lt.s32.totalorder %s16, 1
      %s211 = scalar_select %p210, %s16, 1
      %s212 = smul.addr %s211, 32
      %s213 = smul.addr %s212, 8
      %s214 = scalar_lea.vmem %s5, %s213
      %p215 = scmp.lt.s32.totalorder %s16, 1
      %s216 = scalar_select %p215, %s16, 1
      %s217 = smul.addr %s216, 32
      %s218 = smul.addr %s217, 8
      %s219 = scalar_lea.vmem %s0, %s218
      %p220 = scmp.lt.s32.totalorder %s16, 1
      %s221 = scalar_select %p220, %s16, 1
      %s222 = smul.addr %s221, 32
      %s223 = smul.addr %s222, 8
      %s224 = scalar_lea.vmem %s5, %s223
      %v225 = vld [vmem:[%s219] sm:$0xff]
      %v226 = vld [vmem:[%s219 + $0x8] sm:$0xff]
      %v227 = vld [vmem:[%s219 + $0x10] sm:$0xff]
      %v228 = vld [vmem:[%s219 + $0x18] sm:$0xff]
      %v229 = vld [vmem:[%s219 + $0x20] sm:$0xff]
      %v230 = vld [vmem:[%s219 + $0x28] sm:$0xff]
      %v231 = vld [vmem:[%s219 + $0x30] sm:$0xff]
      %v232 = vld [vmem:[%s219 + $0x38] sm:$0xff]
      %v233 = vld [vmem:[%s219 + $0x40] sm:$0xff]
      %v234 = vld [vmem:[%s219 + $0x48] sm:$0xff]
      %v235 = vld [vmem:[%s219 + $0x50] sm:$0xff]
      %v236 = vld [vmem:[%s219 + $0x58] sm:$0xff]
      %v237 = vld [vmem:[%s219 + $0x60] sm:$0xff]
      %v238 = vld [vmem:[%s219 + $0x68] sm:$0xff]
      %v239 = vld [vmem:[%s219 + $0x70] sm:$0xff]
      %v240 = vld [vmem:[%s219 + $0x78] sm:$0xff]
      %v241 = vld [vmem:[%s219 + $0x80] sm:$0xff]
      %v242 = vld [vmem:[%s219 + $0x88] sm:$0xff]
      %v243 = vld [vmem:[%s219 + $0x90] sm:$0xff]
      %v244 = vld [vmem:[%s219 + $0x98] sm:$0xff]
      %v245 = vld [vmem:[%s219 + $0xa0] sm:$0xff]
      %v246 = vld [vmem:[%s219 + $0xa8] sm:$0xff]
      %v247 = vld [vmem:[%s219 + $0xb0] sm:$0xff]
      %v248 = vld [vmem:[%s219 + $0xb8] sm:$0xff]
      %v249 = vld [vmem:[%s219 + $0xc0] sm:$0xff]
      %v250 = vld [vmem:[%s219 + $0xc8] sm:$0xff]
      %v251 = vld [vmem:[%s219 + $0xd0] sm:$0xff]
      %v252 = vld [vmem:[%s219 + $0xd8] sm:$0xff]
      %v253 = vld [vmem:[%s219 + $0xe0] sm:$0xff]
      %v254 = vld [vmem:[%s219 + $0xe8] sm:$0xff]
      %v255 = vld [vmem:[%s219 + $0xf0] sm:$0xff]
      %v256 = vld [vmem:[%s219 + $0xf8] sm:$0xff]
      %v257 = vld [vmem:[%s1] sm:$0xf]
      %v258 = vld [vmem:[%s2] sm:$0x1]
      %v260 = vperm.slane %v258, 0
      %vm262 = vcmask 31744
      %v264 = vsel %vm262, %v225, 0
      %v267 = vsel %vm262, %v226, 0
      %v270 = vsel %vm262, %v227, 0
      %v273 = vsel %vm262, %v228, 0
      %v276 = vsel %vm262, %v229, 0
      %v279 = vsel %vm262, %v230, 0
      %v282 = vsel %vm262, %v231, 0
      %v285 = vsel %vm262, %v232, 0
      %v288 = vsel %vm262, %v233, 0
      %v291 = vsel %vm262, %v234, 0
      %v294 = vsel %vm262, %v235, 0
      %v297 = vsel %vm262, %v236, 0
      %v300 = vsel %vm262, %v237, 0
      %v303 = vsel %vm262, %v238, 0
      %v306 = vsel %vm262, %v239, 0
      %v309 = vsel %vm262, %v240, 0
      %v312 = vsel %vm262, %v241, 0
      %v315 = vsel %vm262, %v242, 0
      %v318 = vsel %vm262, %v243, 0
      %v321 = vsel %vm262, %v244, 0
      %v324 = vsel %vm262, %v245, 0
      %v327 = vsel %vm262, %v246, 0
      %v330 = vsel %vm262, %v247, 0
      %v333 = vsel %vm262, %v248, 0
      %v336 = vsel %vm262, %v249, 0
      %v339 = vsel %vm262, %v250, 0
      %v342 = vsel %vm262, %v251, 0
      %v345 = vsel %vm262, %v252, 0
      %v348 = vsel %vm262, %v253, 0
      %v351 = vsel %vm262, %v254, 0
      %v354 = vsel %vm262, %v255, 0
      %v357 = vsel %vm262, %v256, 0
      %vm359 = vcmask 1043456
      %v361 = vsel %vm359, %v257, 0
      %363 = vmatpush.msra.mxu0 0.0
      %364 = vmatpush.msra.mxu0 0.0
      %365 = vmatpush.msra.mxu0 0.0
      %366 = vmatpush.msra.mxu0 0.0
      %367 = vmatpush.msra.mxu0 0.0
      %368 = vmatpush.msra.mxu0 0.0
      %369 = vmatpush.msra.mxu0 0.0
      %370 = vmatpush.msra.mxu0 0.0
      %371 = vmatpush.msra.mxu0 0.0
      %372 = vmatpush.msra.mxu0 0.0
      %373 = vmatpush.msra.mxu0 0.0
      %374 = vmatpush.msra.mxu0 0.0
      %375 = vmatpush.msra.mxu0 0.0
      %376 = vmatpush.msra.mxu0 0.0
      %377 = vmatpush.msra.mxu0 0.0
      %378 = vmatpush.msra.mxu0 %v361
      %379 = vmatmul.f32.gmra.mxu0 %v264
      %v380 = vpop.f32.mrf.mxu0
      %v381 = vadd.f32 %v260, %v380
      %382 = vmatmul.f32.gmra.mxu0 %v267
      %v383 = vpop.f32.mrf.mxu0
      %v384 = vadd.f32 %v260, %v383
      %385 = vmatmul.f32.gmra.mxu0 %v270
      %v386 = vpop.f32.mrf.mxu0
      %v387 = vadd.f32 %v260, %v386
      %388 = vmatmul.f32.gmra.mxu0 %v273
      %v389 = vpop.f32.mrf.mxu0
      %v390 = vadd.f32 %v260, %v389
      %391 = vmatmul.f32.gmra.mxu0 %v276
      %v392 = vpop.f32.mrf.mxu0
      %v393 = vadd.f32 %v260, %v392
      %394 = vmatmul.f32.gmra.mxu0 %v279
      %v395 = vpop.f32.mrf.mxu0
      %v396 = vadd.f32 %v260, %v395
      %397 = vmatmul.f32.gmra.mxu0 %v282
      %v398 = vpop.f32.mrf.mxu0
      %v399 = vadd.f32 %v260, %v398
      %400 = vmatmul.f32.gmra.mxu0 %v285
      %v401 = vpop.f32.mrf.mxu0
      %v402 = vadd.f32 %v260, %v401
      %403 = vmatmul.f32.gmra.mxu0 %v288
      %v404 = vpop.f32.mrf.mxu0
      %v405 = vadd.f32 %v260, %v404
      %406 = vmatmul.f32.gmra.mxu0 %v291
      %v407 = vpop.f32.mrf.mxu0
      %v408 = vadd.f32 %v260, %v407
      %409 = vmatmul.f32.gmra.mxu0 %v294
      %v410 = vpop.f32.mrf.mxu0
      %v411 = vadd.f32 %v260, %v410
      %412 = vmatmul.f32.gmra.mxu0 %v297
      %v413 = vpop.f32.mrf.mxu0
      %v414 = vadd.f32 %v260, %v413
      %415 = vmatmul.f32.gmra.mxu0 %v300
      %v416 = vpop.f32.mrf.mxu0
      %v417 = vadd.f32 %v260, %v416
      %418 = vmatmul.f32.gmra.mxu0 %v303
      %v419 = vpop.f32.mrf.mxu0
      %v420 = vadd.f32 %v260, %v419
      %421 = vmatmul.f32.gmra.mxu0 %v306
      %v422 = vpop.f32.mrf.mxu0
      %v423 = vadd.f32 %v260, %v422
      %424 = vmatmul.f32.gmra.mxu0 %v309
      %v425 = vpop.f32.mrf.mxu0
      %v426 = vadd.f32 %v260, %v425
      %427 = vmatmul.f32.gmra.mxu0 %v312
      %v428 = vpop.f32.mrf.mxu0
      %v429 = vadd.f32 %v260, %v428
      %430 = vmatmul.f32.gmra.mxu0 %v315
      %v431 = vpop.f32.mrf.mxu0
      %v432 = vadd.f32 %v260, %v431
      %433 = vmatmul.f32.gmra.mxu0 %v318
      %v434 = vpop.f32.mrf.mxu0
      %v435 = vadd.f32 %v260, %v434
      %436 = vmatmul.f32.gmra.mxu0 %v321
      %v437 = vpop.f32.mrf.mxu0
      %v438 = vadd.f32 %v260, %v437
      %439 = vmatmul.f32.gmra.mxu0 %v324
      %v440 = vpop.f32.mrf.mxu0
      %v441 = vadd.f32 %v260, %v440
      %442 = vmatmul.f32.gmra.mxu0 %v327
      %v443 = vpop.f32.mrf.mxu0
      %v444 = vadd.f32 %v260, %v443
      %445 = vmatmul.f32.gmra.mxu0 %v330
      %v446 = vpop.f32.mrf.mxu0
      %v447 = vadd.f32 %v260, %v446
      %448 = vmatmul.f32.gmra.mxu0 %v333
      %v449 = vpop.f32.mrf.mxu0
      %v450 = vadd.f32 %v260, %v449
      %451 = vmatmul.f32.gmra.mxu0 %v336
      %v452 = vpop.f32.mrf.mxu0
      %v453 = vadd.f32 %v260, %v452
      %454 = vmatmul.f32.gmra.mxu0 %v339
      %v455 = vpop.f32.mrf.mxu0
      %v456 = vadd.f32 %v260, %v455
      %457 = vmatmul.f32.gmra.mxu0 %v342
      %v458 = vpop.f32.mrf.mxu0
      %v459 = vadd.f32 %v260, %v458
      %460 = vmatmul.f32.gmra.mxu0 %v345
      %v461 = vpop.f32.mrf.mxu0
      %v462 = vadd.f32 %v260, %v461
      %463 = vmatmul.f32.gmra.mxu0 %v348
      %v464 = vpop.f32.mrf.mxu0
      %v465 = vadd.f32 %v260, %v464
      %466 = vmatmul.f32.gmra.mxu0 %v351
      %v467 = vpop.f32.mrf.mxu0
      %v468 = vadd.f32 %v260, %v467
      %469 = vmatmul.f32.gmra.mxu0 %v354
      %v470 = vpop.f32.mrf.mxu0
      %v471 = vadd.f32 %v260, %v470
      %472 = vmatmul.f32.gmra.mxu0 %v357
      %v473 = vpop.f32.mrf.mxu0
      %v474 = vadd.f32 %v260, %v473
      %475 = vdwg.mxu0
      %v476 = vxor.u32 %v381, 2147483648
      %v477 = vxor.u32 %v384, 2147483648
      %v478 = vxor.u32 %v387, 2147483648
      %v479 = vxor.u32 %v390, 2147483648
      %v480 = vxor.u32 %v393, 2147483648
      %v481 = vxor.u32 %v396, 2147483648
      %v482 = vxor.u32 %v399, 2147483648
      %v483 = vxor.u32 %v402, 2147483648
      %v484 = vxor.u32 %v405, 2147483648
      %v485 = vxor.u32 %v408, 2147483648
      %v486 = vxor.u32 %v411, 2147483648
      %v487 = vxor.u32 %v414, 2147483648
      %v488 = vxor.u32 %v417, 2147483648
      %v489 = vxor.u32 %v420, 2147483648
      %v490 = vxor.u32 %v423, 2147483648
      %v491 = vxor.u32 %v426, 2147483648
      %v492 = vxor.u32 %v429, 2147483648
      %v493 = vxor.u32 %v432, 2147483648
      %v494 = vxor.u32 %v435, 2147483648
      %v495 = vxor.u32 %v438, 2147483648
      %v496 = vxor.u32 %v441, 2147483648
      %v497 = vxor.u32 %v444, 2147483648
      %v498 = vxor.u32 %v447, 2147483648
      %v499 = vxor.u32 %v450, 2147483648
      %v500 = vxor.u32 %v453, 2147483648
      %v501 = vxor.u32 %v456, 2147483648
      %v502 = vxor.u32 %v459, 2147483648
      %v503 = vxor.u32 %v462, 2147483648
      %v504 = vxor.u32 %v465, 2147483648
      %v505 = vxor.u32 %v468, 2147483648
      %v506 = vxor.u32 %v471, 2147483648
      %v507 = vxor.u32 %v474, 2147483648
      %v508 = vmul.f32 %v476, 1.442695
      %v509 = vpow.pop %v508
      %v510 = vmul.f32 %v477, 1.442695
      %v511 = vpow.pop %v510
      %v512 = vmul.f32 %v478, 1.442695
      %v513 = vpow.pop %v512
      %v514 = vmul.f32 %v479, 1.442695
      %v515 = vpow.pop %v514
      %v516 = vmul.f32 %v480, 1.442695
      %v517 = vpow.pop %v516
      %v518 = vmul.f32 %v481, 1.442695
      %v519 = vpow.pop %v518
      %v520 = vmul.f32 %v482, 1.442695
      %v521 = vpow.pop %v520
      %v522 = vmul.f32 %v483, 1.442695
      %v523 = vpow.pop %v522
      %v524 = vmul.f32 %v484, 1.442695
      %v525 = vpow.pop %v524
      %v526 = vmul.f32 %v485, 1.442695
      %v527 = vpow.pop %v526
      %v528 = vmul.f32 %v486, 1.442695
      %v529 = vpow.pop %v528
      %v530 = vmul.f32 %v487, 1.442695
      %v531 = vpow.pop %v530
      %v532 = vmul.f32 %v488, 1.442695
      %v533 = vpow.pop %v532
      %v534 = vmul.f32 %v489, 1.442695
      %v535 = vpow.pop %v534
      %v536 = vmul.f32 %v490, 1.442695
      %v537 = vpow.pop %v536
      %v538 = vmul.f32 %v491, 1.442695
      %v539 = vpow.pop %v538
      %v540 = vmul.f32 %v492, 1.442695
      %v541 = vpow.pop %v540
      %v542 = vmul.f32 %v493, 1.442695
      %v543 = vpow.pop %v542
      %v544 = vmul.f32 %v494, 1.442695
      %v545 = vpow.pop %v544
      %v546 = vmul.f32 %v495, 1.442695
      %v547 = vpow.pop %v546
      %v548 = vmul.f32 %v496, 1.442695
      %v549 = vpow.pop %v548
      %v550 = vmul.f32 %v497, 1.442695
      %v551 = vpow.pop %v550
      %v552 = vmul.f32 %v498, 1.442695
      %v553 = vpow.pop %v552
      %v554 = vmul.f32 %v499, 1.442695
      %v555 = vpow.pop %v554
      %v556 = vmul.f32 %v500, 1.442695
      %v557 = vpow.pop %v556
      %v558 = vmul.f32 %v501, 1.442695
      %v559 = vpow.pop %v558
      %v560 = vmul.f32 %v502, 1.442695
      %v561 = vpow.pop %v560
      %v562 = vmul.f32 %v503, 1.442695
      %v563 = vpow.pop %v562
      %v564 = vmul.f32 %v504, 1.442695
      %v565 = vpow.pop %v564
      %v566 = vmul.f32 %v505, 1.442695
      %v567 = vpow.pop %v566
      %v568 = vmul.f32 %v506, 1.442695
      %v569 = vpow.pop %v568
      %v570 = vmul.f32 %v507, 1.442695
      %v571 = vpow.pop %v570
      %v572 = vadd.f32 %v509, 1.0
      %v573 = vadd.f32 %v511, 1.0
      %v574 = vadd.f32 %v513, 1.0
      %v575 = vadd.f32 %v515, 1.0
      %v576 = vadd.f32 %v517, 1.0
      %v577 = vadd.f32 %v519, 1.0
      %v578 = vadd.f32 %v521, 1.0
      %v579 = vadd.f32 %v523, 1.0
      %v580 = vadd.f32 %v525, 1.0
      %v581 = vadd.f32 %v527, 1.0
      %v582 = vadd.f32 %v529, 1.0
      %v583 = vadd.f32 %v531, 1.0
      %v584 = vadd.f32 %v533, 1.0
      %v585 = vadd.f32 %v535, 1.0
      %v586 = vadd.f32 %v537, 1.0
      %v587 = vadd.f32 %v539, 1.0
      %v588 = vadd.f32 %v541, 1.0
      %v589 = vadd.f32 %v543, 1.0
      %v590 = vadd.f32 %v545, 1.0
      %v591 = vadd.f32 %v547, 1.0
      %v592 = vadd.f32 %v549, 1.0
      %v593 = vadd.f32 %v551, 1.0
      %v594 = vadd.f32 %v553, 1.0
      %v595 = vadd.f32 %v555, 1.0
      %v596 = vadd.f32 %v557, 1.0
      %v597 = vadd.f32 %v559, 1.0
      %v598 = vadd.f32 %v561, 1.0
      %v599 = vadd.f32 %v563, 1.0
      %v600 = vadd.f32 %v565, 1.0
      %v601 = vadd.f32 %v567, 1.0
      %v602 = vadd.f32 %v569, 1.0
      %v603 = vadd.f32 %v571, 1.0
      %v604 = vrcp.pop %v572
      %v605 = vmul.f32 %v572, %v604
      %v606 = vsub.f32 1.0, %v605
      %v607 = vmul.f32 %v604, %v606
      %v608 = vadd.f32 %v604, %v607
      %vm609 = vweird.f32 %v572
      %vm610 = vweird.f32 %v604
      %vm611 = vmor %vm609, %vm610
      %v612 = vsel %vm611, %v604, %v608
      %v613 = vand.u32 2147483647, %v572
      %vm614 = vcmp.eq.f32.partialorder %v613, 8.507059e+37
      %v615 = vand.u32 %v572, 2147483648
      %v616 = vor.u32 1.1754944e-38, %v615
      %v617 = vsel %vm614, %v616, %v612
      %v618 = vmul.f32 1.0, %v617
      %v619 = vrcp.pop %v573
      %v620 = vmul.f32 %v573, %v619
      %v621 = vsub.f32 1.0, %v620
      %v622 = vmul.f32 %v619, %v621
      %v623 = vadd.f32 %v619, %v622
      %vm624 = vweird.f32 %v573
      %vm625 = vweird.f32 %v619
      %vm626 = vmor %vm624, %vm625
      %v627 = vsel %vm626, %v619, %v623
      %v628 = vand.u32 2147483647, %v573
      %vm629 = vcmp.eq.f32.partialorder %v628, 8.507059e+37
      %v630 = vand.u32 %v573, 2147483648
      %v631 = vor.u32 1.1754944e-38, %v630
      %v632 = vsel %vm629, %v631, %v627
      %v633 = vmul.f32 1.0, %v632
      %v634 = vrcp.pop %v574
      %v635 = vmul.f32 %v574, %v634
      %v636 = vsub.f32 1.0, %v635
      %v637 = vmul.f32 %v634, %v636
      %v638 = vadd.f32 %v634, %v637
      %vm639 = vweird.f32 %v574
      %vm640 = vweird.f32 %v634
      %vm641 = vmor %vm639, %vm640
      %v642 = vsel %vm641, %v634, %v638
      %v643 = vand.u32 2147483647, %v574
      %vm644 = vcmp.eq.f32.partialorder %v643, 8.507059e+37
      %v645 = vand.u32 %v574, 2147483648
      %v646 = vor.u32 1.1754944e-38, %v645
      %v647 = vsel %vm644, %v646, %v642
      %v648 = vmul.f32 1.0, %v647
      %v649 = vrcp.pop %v575
      %v650 = vmul.f32 %v575, %v649
      %v651 = vsub.f32 1.0, %v650
      %v652 = vmul.f32 %v649, %v651
      %v653 = vadd.f32 %v649, %v652
      %vm654 = vweird.f32 %v575
      %vm655 = vweird.f32 %v649
      %vm656 = vmor %vm654, %vm655
      %v657 = vsel %vm656, %v649, %v653
      %v658 = vand.u32 2147483647, %v575
      %vm659 = vcmp.eq.f32.partialorder %v658, 8.507059e+37
      %v660 = vand.u32 %v575, 2147483648
      %v661 = vor.u32 1.1754944e-38, %v660
      %v662 = vsel %vm659, %v661, %v657
      %v663 = vmul.f32 1.0, %v662
      %v664 = vrcp.pop %v576
      %v665 = vmul.f32 %v576, %v664
      %v666 = vsub.f32 1.0, %v665
      %v667 = vmul.f32 %v664, %v666
      %v668 = vadd.f32 %v664, %v667
      %vm669 = vweird.f32 %v576
      %vm670 = vweird.f32 %v664
      %vm671 = vmor %vm669, %vm670
      %v672 = vsel %vm671, %v664, %v668
      %v673 = vand.u32 2147483647, %v576
      %vm674 = vcmp.eq.f32.partialorder %v673, 8.507059e+37
      %v675 = vand.u32 %v576, 2147483648
      %v676 = vor.u32 1.1754944e-38, %v675
      %v677 = vsel %vm674, %v676, %v672
      %v678 = vmul.f32 1.0, %v677
      %v679 = vrcp.pop %v577
      %v680 = vmul.f32 %v577, %v679
      %v681 = vsub.f32 1.0, %v680
      %v682 = vmul.f32 %v679, %v681
      %v683 = vadd.f32 %v679, %v682
      %vm684 = vweird.f32 %v577
      %vm685 = vweird.f32 %v679
      %vm686 = vmor %vm684, %vm685
      %v687 = vsel %vm686, %v679, %v683
      %v688 = vand.u32 2147483647, %v577
      %vm689 = vcmp.eq.f32.partialorder %v688, 8.507059e+37
      %v690 = vand.u32 %v577, 2147483648
      %v691 = vor.u32 1.1754944e-38, %v690
      %v692 = vsel %vm689, %v691, %v687
      %v693 = vmul.f32 1.0, %v692
      %v694 = vrcp.pop %v578
      %v695 = vmul.f32 %v578, %v694
      %v696 = vsub.f32 1.0, %v695
      %v697 = vmul.f32 %v694, %v696
      %v698 = vadd.f32 %v694, %v697
      %vm699 = vweird.f32 %v578
      %vm700 = vweird.f32 %v694
      %vm701 = vmor %vm699, %vm700
      %v702 = vsel %vm701, %v694, %v698
      %v703 = vand.u32 2147483647, %v578
      %vm704 = vcmp.eq.f32.partialorder %v703, 8.507059e+37
      %v705 = vand.u32 %v578, 2147483648
      %v706 = vor.u32 1.1754944e-38, %v705
      %v707 = vsel %vm704, %v706, %v702
      %v708 = vmul.f32 1.0, %v707
      %v709 = vrcp.pop %v579
      %v710 = vmul.f32 %v579, %v709
      %v711 = vsub.f32 1.0, %v710
      %v712 = vmul.f32 %v709, %v711
      %v713 = vadd.f32 %v709, %v712
      %vm714 = vweird.f32 %v579
      %vm715 = vweird.f32 %v709
      %vm716 = vmor %vm714, %vm715
      %v717 = vsel %vm716, %v709, %v713
      %v718 = vand.u32 2147483647, %v579
      %vm719 = vcmp.eq.f32.partialorder %v718, 8.507059e+37
      %v720 = vand.u32 %v579, 2147483648
      %v721 = vor.u32 1.1754944e-38, %v720
      %v722 = vsel %vm719, %v721, %v717
      %v723 = vmul.f32 1.0, %v722
      %v724 = vrcp.pop %v580
      %v725 = vmul.f32 %v580, %v724
      %v726 = vsub.f32 1.0, %v725
      %v727 = vmul.f32 %v724, %v726
      %v728 = vadd.f32 %v724, %v727
      %vm729 = vweird.f32 %v580
      %vm730 = vweird.f32 %v724
      %vm731 = vmor %vm729, %vm730
      %v732 = vsel %vm731, %v724, %v728
      %v733 = vand.u32 2147483647, %v580
      %vm734 = vcmp.eq.f32.partialorder %v733, 8.507059e+37
      %v735 = vand.u32 %v580, 2147483648
      %v736 = vor.u32 1.1754944e-38, %v735
      %v737 = vsel %vm734, %v736, %v732
      %v738 = vmul.f32 1.0, %v737
      %v739 = vrcp.pop %v581
      %v740 = vmul.f32 %v581, %v739
      %v741 = vsub.f32 1.0, %v740
      %v742 = vmul.f32 %v739, %v741
      %v743 = vadd.f32 %v739, %v742
      %vm744 = vweird.f32 %v581
      %vm745 = vweird.f32 %v739
      %vm746 = vmor %vm744, %vm745
      %v747 = vsel %vm746, %v739, %v743
      %v748 = vand.u32 2147483647, %v581
      %vm749 = vcmp.eq.f32.partialorder %v748, 8.507059e+37
      %v750 = vand.u32 %v581, 2147483648
      %v751 = vor.u32 1.1754944e-38, %v750
      %v752 = vsel %vm749, %v751, %v747
      %v753 = vmul.f32 1.0, %v752
      %v754 = vrcp.pop %v582
      %v755 = vmul.f32 %v582, %v754
      %v756 = vsub.f32 1.0, %v755
      %v757 = vmul.f32 %v754, %v756
      %v758 = vadd.f32 %v754, %v757
      %vm759 = vweird.f32 %v582
      %vm760 = vweird.f32 %v754
      %vm761 = vmor %vm759, %vm760
      %v762 = vsel %vm761, %v754, %v758
      %v763 = vand.u32 2147483647, %v582
      %vm764 = vcmp.eq.f32.partialorder %v763, 8.507059e+37
      %v765 = vand.u32 %v582, 2147483648
      %v766 = vor.u32 1.1754944e-38, %v765
      %v767 = vsel %vm764, %v766, %v762
      %v768 = vmul.f32 1.0, %v767
      %v769 = vrcp.pop %v583
      %v770 = vmul.f32 %v583, %v769
      %v771 = vsub.f32 1.0, %v770
      %v772 = vmul.f32 %v769, %v771
      %v773 = vadd.f32 %v769, %v772
      %vm774 = vweird.f32 %v583
      %vm775 = vweird.f32 %v769
      %vm776 = vmor %vm774, %vm775
      %v777 = vsel %vm776, %v769, %v773
      %v778 = vand.u32 2147483647, %v583
      %vm779 = vcmp.eq.f32.partialorder %v778, 8.507059e+37
      %v780 = vand.u32 %v583, 2147483648
      %v781 = vor.u32 1.1754944e-38, %v780
      %v782 = vsel %vm779, %v781, %v777
      %v783 = vmul.f32 1.0, %v782
      %v784 = vrcp.pop %v584
      %v785 = vmul.f32 %v584, %v784
      %v786 = vsub.f32 1.0, %v785
      %v787 = vmul.f32 %v784, %v786
      %v788 = vadd.f32 %v784, %v787
      %vm789 = vweird.f32 %v584
      %vm790 = vweird.f32 %v784
      %vm791 = vmor %vm789, %vm790
      %v792 = vsel %vm791, %v784, %v788
      %v793 = vand.u32 2147483647, %v584
      %vm794 = vcmp.eq.f32.partialorder %v793, 8.507059e+37
      %v795 = vand.u32 %v584, 2147483648
      %v796 = vor.u32 1.1754944e-38, %v795
      %v797 = vsel %vm794, %v796, %v792
      %v798 = vmul.f32 1.0, %v797
      %v799 = vrcp.pop %v585
      %v800 = vmul.f32 %v585, %v799
      %v801 = vsub.f32 1.0, %v800
      %v802 = vmul.f32 %v799, %v801
      %v803 = vadd.f32 %v799, %v802
      %vm804 = vweird.f32 %v585
      %vm805 = vweird.f32 %v799
      %vm806 = vmor %vm804, %vm805
      %v807 = vsel %vm806, %v799, %v803
      %v808 = vand.u32 2147483647, %v585
      %vm809 = vcmp.eq.f32.partialorder %v808, 8.507059e+37
      %v810 = vand.u32 %v585, 2147483648
      %v811 = vor.u32 1.1754944e-38, %v810
      %v812 = vsel %vm809, %v811, %v807
      %v813 = vmul.f32 1.0, %v812
      %v814 = vrcp.pop %v586
      %v815 = vmul.f32 %v586, %v814
      %v816 = vsub.f32 1.0, %v815
      %v817 = vmul.f32 %v814, %v816
      %v818 = vadd.f32 %v814, %v817
      %vm819 = vweird.f32 %v586
      %vm820 = vweird.f32 %v814
      %vm821 = vmor %vm819, %vm820
      %v822 = vsel %vm821, %v814, %v818
      %v823 = vand.u32 2147483647, %v586
      %vm824 = vcmp.eq.f32.partialorder %v823, 8.507059e+37
      %v825 = vand.u32 %v586, 2147483648
      %v826 = vor.u32 1.1754944e-38, %v825
      %v827 = vsel %vm824, %v826, %v822
      %v828 = vmul.f32 1.0, %v827
      %v829 = vrcp.pop %v587
      %v830 = vmul.f32 %v587, %v829
      %v831 = vsub.f32 1.0, %v830
      %v832 = vmul.f32 %v829, %v831
      %v833 = vadd.f32 %v829, %v832
      %vm834 = vweird.f32 %v587
      %vm835 = vweird.f32 %v829
      %vm836 = vmor %vm834, %vm835
      %v837 = vsel %vm836, %v829, %v833
      %v838 = vand.u32 2147483647, %v587
      %vm839 = vcmp.eq.f32.partialorder %v838, 8.507059e+37
      %v840 = vand.u32 %v587, 2147483648
      %v841 = vor.u32 1.1754944e-38, %v840
      %v842 = vsel %vm839, %v841, %v837
      %v843 = vmul.f32 1.0, %v842
      %v844 = vrcp.pop %v588
      %v845 = vmul.f32 %v588, %v844
      %v846 = vsub.f32 1.0, %v845
      %v847 = vmul.f32 %v844, %v846
      %v848 = vadd.f32 %v844, %v847
      %vm849 = vweird.f32 %v588
      %vm850 = vweird.f32 %v844
      %vm851 = vmor %vm849, %vm850
      %v852 = vsel %vm851, %v844, %v848
      %v853 = vand.u32 2147483647, %v588
      %vm854 = vcmp.eq.f32.partialorder %v853, 8.507059e+37
      %v855 = vand.u32 %v588, 2147483648
      %v856 = vor.u32 1.1754944e-38, %v855
      %v857 = vsel %vm854, %v856, %v852
      %v858 = vmul.f32 1.0, %v857
      %v859 = vrcp.pop %v589
      %v860 = vmul.f32 %v589, %v859
      %v861 = vsub.f32 1.0, %v860
      %v862 = vmul.f32 %v859, %v861
      %v863 = vadd.f32 %v859, %v862
      %vm864 = vweird.f32 %v589
      %vm865 = vweird.f32 %v859
      %vm866 = vmor %vm864, %vm865
      %v867 = vsel %vm866, %v859, %v863
      %v868 = vand.u32 2147483647, %v589
      %vm869 = vcmp.eq.f32.partialorder %v868, 8.507059e+37
      %v870 = vand.u32 %v589, 2147483648
      %v871 = vor.u32 1.1754944e-38, %v870
      %v872 = vsel %vm869, %v871, %v867
      %v873 = vmul.f32 1.0, %v872
      %v874 = vrcp.pop %v590
      %v875 = vmul.f32 %v590, %v874
      %v876 = vsub.f32 1.0, %v875
      %v877 = vmul.f32 %v874, %v876
      %v878 = vadd.f32 %v874, %v877
      %vm879 = vweird.f32 %v590
      %vm880 = vweird.f32 %v874
      %vm881 = vmor %vm879, %vm880
      %v882 = vsel %vm881, %v874, %v878
      %v883 = vand.u32 2147483647, %v590
      %vm884 = vcmp.eq.f32.partialorder %v883, 8.507059e+37
      %v885 = vand.u32 %v590, 2147483648
      %v886 = vor.u32 1.1754944e-38, %v885
      %v887 = vsel %vm884, %v886, %v882
      %v888 = vmul.f32 1.0, %v887
      %v889 = vrcp.pop %v591
      %v890 = vmul.f32 %v591, %v889
      %v891 = vsub.f32 1.0, %v890
      %v892 = vmul.f32 %v889, %v891
      %v893 = vadd.f32 %v889, %v892
      %vm894 = vweird.f32 %v591
      %vm895 = vweird.f32 %v889
      %vm896 = vmor %vm894, %vm895
      %v897 = vsel %vm896, %v889, %v893
      %v898 = vand.u32 2147483647, %v591
      %vm899 = vcmp.eq.f32.partialorder %v898, 8.507059e+37
      %v900 = vand.u32 %v591, 2147483648
      %v901 = vor.u32 1.1754944e-38, %v900
      %v902 = vsel %vm899, %v901, %v897
      %v903 = vmul.f32 1.0, %v902
      %v904 = vrcp.pop %v592
      %v905 = vmul.f32 %v592, %v904
      %v906 = vsub.f32 1.0, %v905
      %v907 = vmul.f32 %v904, %v906
      %v908 = vadd.f32 %v904, %v907
      %vm909 = vweird.f32 %v592
      %vm910 = vweird.f32 %v904
      %vm911 = vmor %vm909, %vm910
      %v912 = vsel %vm911, %v904, %v908
      %v913 = vand.u32 2147483647, %v592
      %vm914 = vcmp.eq.f32.partialorder %v913, 8.507059e+37
      %v915 = vand.u32 %v592, 2147483648
      %v916 = vor.u32 1.1754944e-38, %v915
      %v917 = vsel %vm914, %v916, %v912
      %v918 = vmul.f32 1.0, %v917
      %v919 = vrcp.pop %v593
      %v920 = vmul.f32 %v593, %v919
      %v921 = vsub.f32 1.0, %v920
      %v922 = vmul.f32 %v919, %v921
      %v923 = vadd.f32 %v919, %v922
      %vm924 = vweird.f32 %v593
      %vm925 = vweird.f32 %v919
      %vm926 = vmor %vm924, %vm925
      %v927 = vsel %vm926, %v919, %v923
      %v928 = vand.u32 2147483647, %v593
      %vm929 = vcmp.eq.f32.partialorder %v928, 8.507059e+37
      %v930 = vand.u32 %v593, 2147483648
      %v931 = vor.u32 1.1754944e-38, %v930
      %v932 = vsel %vm929, %v931, %v927
      %v933 = vmul.f32 1.0, %v932
      %v934 = vrcp.pop %v594
      %v935 = vmul.f32 %v594, %v934
      %v936 = vsub.f32 1.0, %v935
      %v937 = vmul.f32 %v934, %v936
      %v938 = vadd.f32 %v934, %v937
      %vm939 = vweird.f32 %v594
      %vm940 = vweird.f32 %v934
      %vm941 = vmor %vm939, %vm940
      %v942 = vsel %vm941, %v934, %v938
      %v943 = vand.u32 2147483647, %v594
      %vm944 = vcmp.eq.f32.partialorder %v943, 8.507059e+37
      %v945 = vand.u32 %v594, 2147483648
      %v946 = vor.u32 1.1754944e-38, %v945
      %v947 = vsel %vm944, %v946, %v942
      %v948 = vmul.f32 1.0, %v947
      %v949 = vrcp.pop %v595
      %v950 = vmul.f32 %v595, %v949
      %v951 = vsub.f32 1.0, %v950
      %v952 = vmul.f32 %v949, %v951
      %v953 = vadd.f32 %v949, %v952
      %vm954 = vweird.f32 %v595
      %vm955 = vweird.f32 %v949
      %vm956 = vmor %vm954, %vm955
      %v957 = vsel %vm956, %v949, %v953
      %v958 = vand.u32 2147483647, %v595
      %vm959 = vcmp.eq.f32.partialorder %v958, 8.507059e+37
      %v960 = vand.u32 %v595, 2147483648
      %v961 = vor.u32 1.1754944e-38, %v960
      %v962 = vsel %vm959, %v961, %v957
      %v963 = vmul.f32 1.0, %v962
      %v964 = vrcp.pop %v596
      %v965 = vmul.f32 %v596, %v964
      %v966 = vsub.f32 1.0, %v965
      %v967 = vmul.f32 %v964, %v966
      %v968 = vadd.f32 %v964, %v967
      %vm969 = vweird.f32 %v596
      %vm970 = vweird.f32 %v964
      %vm971 = vmor %vm969, %vm970
      %v972 = vsel %vm971, %v964, %v968
      %v973 = vand.u32 2147483647, %v596
      %vm974 = vcmp.eq.f32.partialorder %v973, 8.507059e+37
      %v975 = vand.u32 %v596, 2147483648
      %v976 = vor.u32 1.1754944e-38, %v975
      %v977 = vsel %vm974, %v976, %v972
      %v978 = vmul.f32 1.0, %v977
      %v979 = vrcp.pop %v597
      %v980 = vmul.f32 %v597, %v979
      %v981 = vsub.f32 1.0, %v980
      %v982 = vmul.f32 %v979, %v981
      %v983 = vadd.f32 %v979, %v982
      %vm984 = vweird.f32 %v597
      %vm985 = vweird.f32 %v979
      %vm986 = vmor %vm984, %vm985
      %v987 = vsel %vm986, %v979, %v983
      %v988 = vand.u32 2147483647, %v597
      %vm989 = vcmp.eq.f32.partialorder %v988, 8.507059e+37
      %v990 = vand.u32 %v597, 2147483648
      %v991 = vor.u32 1.1754944e-38, %v990
      %v992 = vsel %vm989, %v991, %v987
      %v993 = vmul.f32 1.0, %v992
      %v994 = vrcp.pop %v598
      %v995 = vmul.f32 %v598, %v994
      %v996 = vsub.f32 1.0, %v995
      %v997 = vmul.f32 %v994, %v996
      %v998 = vadd.f32 %v994, %v997
      %vm999 = vweird.f32 %v598
      %vm1000 = vweird.f32 %v994
      %vm1001 = vmor %vm999, %vm1000
      %v1002 = vsel %vm1001, %v994, %v998
      %v1003 = vand.u32 2147483647, %v598
      %vm1004 = vcmp.eq.f32.partialorder %v1003, 8.507059e+37
      %v1005 = vand.u32 %v598, 2147483648
      %v1006 = vor.u32 1.1754944e-38, %v1005
      %v1007 = vsel %vm1004, %v1006, %v1002
      %v1008 = vmul.f32 1.0, %v1007
      %v1009 = vrcp.pop %v599
      %v1010 = vmul.f32 %v599, %v1009
      %v1011 = vsub.f32 1.0, %v1010
      %v1012 = vmul.f32 %v1009, %v1011
      %v1013 = vadd.f32 %v1009, %v1012
      %vm1014 = vweird.f32 %v599
      %vm1015 = vweird.f32 %v1009
      %vm1016 = vmor %vm1014, %vm1015
      %v1017 = vsel %vm1016, %v1009, %v1013
      %v1018 = vand.u32 2147483647, %v599
      %vm1019 = vcmp.eq.f32.partialorder %v1018, 8.507059e+37
      %v1020 = vand.u32 %v599, 2147483648
      %v1021 = vor.u32 1.1754944e-38, %v1020
      %v1022 = vsel %vm1019, %v1021, %v1017
      %v1023 = vmul.f32 1.0, %v1022
      %v1024 = vrcp.pop %v600
      %v1025 = vmul.f32 %v600, %v1024
      %v1026 = vsub.f32 1.0, %v1025
      %v1027 = vmul.f32 %v1024, %v1026
      %v1028 = vadd.f32 %v1024, %v1027
      %vm1029 = vweird.f32 %v600
      %vm1030 = vweird.f32 %v1024
      %vm1031 = vmor %vm1029, %vm1030
      %v1032 = vsel %vm1031, %v1024, %v1028
      %v1033 = vand.u32 2147483647, %v600
      %vm1034 = vcmp.eq.f32.partialorder %v1033, 8.507059e+37
      %v1035 = vand.u32 %v600, 2147483648
      %v1036 = vor.u32 1.1754944e-38, %v1035
      %v1037 = vsel %vm1034, %v1036, %v1032
      %v1038 = vmul.f32 1.0, %v1037
      %v1039 = vrcp.pop %v601
      %v1040 = vmul.f32 %v601, %v1039
      %v1041 = vsub.f32 1.0, %v1040
      %v1042 = vmul.f32 %v1039, %v1041
      %v1043 = vadd.f32 %v1039, %v1042
      %vm1044 = vweird.f32 %v601
      %vm1045 = vweird.f32 %v1039
      %vm1046 = vmor %vm1044, %vm1045
      %v1047 = vsel %vm1046, %v1039, %v1043
      %v1048 = vand.u32 2147483647, %v601
      %vm1049 = vcmp.eq.f32.partialorder %v1048, 8.507059e+37
      %v1050 = vand.u32 %v601, 2147483648
      %v1051 = vor.u32 1.1754944e-38, %v1050
      %v1052 = vsel %vm1049, %v1051, %v1047
      %v1053 = vmul.f32 1.0, %v1052
      %v1054 = vrcp.pop %v602
      %v1055 = vmul.f32 %v602, %v1054
      %v1056 = vsub.f32 1.0, %v1055
      %v1057 = vmul.f32 %v1054, %v1056
      %v1058 = vadd.f32 %v1054, %v1057
      %vm1059 = vweird.f32 %v602
      %vm1060 = vweird.f32 %v1054
      %vm1061 = vmor %vm1059, %vm1060
      %v1062 = vsel %vm1061, %v1054, %v1058
      %v1063 = vand.u32 2147483647, %v602
      %vm1064 = vcmp.eq.f32.partialorder %v1063, 8.507059e+37
      %v1065 = vand.u32 %v602, 2147483648
      %v1066 = vor.u32 1.1754944e-38, %v1065
      %v1067 = vsel %vm1064, %v1066, %v1062
      %v1068 = vmul.f32 1.0, %v1067
      %v1069 = vrcp.pop %v603
      %v1070 = vmul.f32 %v603, %v1069
      %v1071 = vsub.f32 1.0, %v1070
      %v1072 = vmul.f32 %v1069, %v1071
      %v1073 = vadd.f32 %v1069, %v1072
      %vm1074 = vweird.f32 %v603
      %vm1075 = vweird.f32 %v1069
      %vm1076 = vmor %vm1074, %vm1075
      %v1077 = vsel %vm1076, %v1069, %v1073
      %v1078 = vand.u32 2147483647, %v603
      %vm1079 = vcmp.eq.f32.partialorder %v1078, 8.507059e+37
      %v1080 = vand.u32 %v603, 2147483648
      %v1081 = vor.u32 1.1754944e-38, %v1080
      %v1082 = vsel %vm1079, %v1081, %v1077
      %v1083 = vmul.f32 1.0, %v1082
      %v1084 = vmul.f32 %v381, %v618
      %v1085 = vmul.f32 %v384, %v633
      %v1086 = vmul.f32 %v387, %v648
      %v1087 = vmul.f32 %v390, %v663
      %v1088 = vmul.f32 %v393, %v678
      %v1089 = vmul.f32 %v396, %v693
      %v1090 = vmul.f32 %v399, %v708
      %v1091 = vmul.f32 %v402, %v723
      %v1092 = vmul.f32 %v405, %v738
      %v1093 = vmul.f32 %v408, %v753
      %v1094 = vmul.f32 %v411, %v768
      %v1095 = vmul.f32 %v414, %v783
      %v1096 = vmul.f32 %v417, %v798
      %v1097 = vmul.f32 %v420, %v813
      %v1098 = vmul.f32 %v423, %v828
      %v1099 = vmul.f32 %v426, %v843
      %v1100 = vmul.f32 %v429, %v858
      %v1101 = vmul.f32 %v432, %v873
      %v1102 = vmul.f32 %v435, %v888
      %v1103 = vmul.f32 %v438, %v903
      %v1104 = vmul.f32 %v441, %v918
      %v1105 = vmul.f32 %v444, %v933
      %v1106 = vmul.f32 %v447, %v948
      %v1107 = vmul.f32 %v450, %v963
      %v1108 = vmul.f32 %v453, %v978
      %v1109 = vmul.f32 %v456, %v993
      %v1110 = vmul.f32 %v459, %v1008
      %v1111 = vmul.f32 %v462, %v1023
      %v1112 = vmul.f32 %v465, %v1038
      %v1113 = vmul.f32 %v468, %v1053
      %v1114 = vmul.f32 %v471, %v1068
      %v1115 = vmul.f32 %v474, %v1083
      %vm1148 = vcmask 1041408
      %v1149 = vrot.slane %v1084, 6
      %v1150 = vrot.slane %v1085, 6
      %v1151 = vsel %vm1148, %v1149, %v1150
      %v1152 = vrot.slane %v1086, 6
      %v1153 = vrot.slane %v1087, 6
      %v1154 = vsel %vm1148, %v1152, %v1153
      %v1155 = vrot.slane %v1088, 6
      %v1156 = vrot.slane %v1089, 6
      %v1157 = vsel %vm1148, %v1155, %v1156
      %v1158 = vrot.slane %v1090, 6
      %v1159 = vrot.slane %v1091, 6
      %v1160 = vsel %vm1148, %v1158, %v1159
      %v1161 = vrot.slane %v1092, 6
      %v1162 = vrot.slane %v1093, 6
      %v1163 = vsel %vm1148, %v1161, %v1162
      %v1164 = vrot.slane %v1094, 6
      %v1165 = vrot.slane %v1095, 6
      %v1166 = vsel %vm1148, %v1164, %v1165
      %v1167 = vrot.slane %v1096, 6
      %v1168 = vrot.slane %v1097, 6
      %v1169 = vsel %vm1148, %v1167, %v1168
      %v1170 = vrot.slane %v1098, 6
      %v1171 = vrot.slane %v1099, 6
      %v1172 = vsel %vm1148, %v1170, %v1171
      %v1173 = vrot.slane %v1100, 6
      %v1174 = vrot.slane %v1101, 6
      %v1175 = vsel %vm1148, %v1173, %v1174
      %v1176 = vrot.slane %v1102, 6
      %v1177 = vrot.slane %v1103, 6
      %v1178 = vsel %vm1148, %v1176, %v1177
      %v1179 = vrot.slane %v1104, 6
      %v1180 = vrot.slane %v1105, 6
      %v1181 = vsel %vm1148, %v1179, %v1180
      %v1182 = vrot.slane %v1106, 6
      %v1183 = vrot.slane %v1107, 6
      %v1184 = vsel %vm1148, %v1182, %v1183
      %v1185 = vrot.slane %v1108, 6
      %v1186 = vrot.slane %v1109, 6
      %v1187 = vsel %vm1148, %v1185, %v1186
      %v1188 = vrot.slane %v1110, 6
      %v1189 = vrot.slane %v1111, 6
      %v1190 = vsel %vm1148, %v1188, %v1189
      %v1191 = vrot.slane %v1112, 6
      %v1192 = vrot.slane %v1113, 6
      %v1193 = vsel %vm1148, %v1191, %v1192
      %v1194 = vrot.slane %v1114, 6
      %v1195 = vrot.slane %v1115, 6
      %v1196 = vsel %vm1148, %v1194, %v1195
      %v1245 = vsel %vm1148, -3.4028235e+38, %v1149
      %v1246 = vsel %vm1148, -3.4028235e+38, %v1152
      %v1247 = vsel %vm1148, -3.4028235e+38, %v1155
      %v1248 = vsel %vm1148, -3.4028235e+38, %v1158
      %v1249 = vsel %vm1148, -3.4028235e+38, %v1161
      %v1250 = vsel %vm1148, -3.4028235e+38, %v1164
      %v1251 = vsel %vm1148, -3.4028235e+38, %v1167
      %v1252 = vsel %vm1148, -3.4028235e+38, %v1170
      %v1253 = vsel %vm1148, -3.4028235e+38, %v1173
      %v1254 = vsel %vm1148, -3.4028235e+38, %v1176
      %v1255 = vsel %vm1148, -3.4028235e+38, %v1179
      %v1256 = vsel %vm1148, -3.4028235e+38, %v1182
      %v1257 = vsel %vm1148, -3.4028235e+38, %v1185
      %v1258 = vsel %vm1148, -3.4028235e+38, %v1188
      %v1259 = vsel %vm1148, -3.4028235e+38, %v1191
      %v1260 = vsel %vm1148, -3.4028235e+38, %v1194
      %v1261 = vsel %vm1148, %v1150, -3.4028235e+38
      %v1262 = vsel %vm1148, %v1153, -3.4028235e+38
      %v1263 = vsel %vm1148, %v1156, -3.4028235e+38
      %v1264 = vsel %vm1148, %v1159, -3.4028235e+38
      %v1265 = vsel %vm1148, %v1162, -3.4028235e+38
      %v1266 = vsel %vm1148, %v1165, -3.4028235e+38
      %v1267 = vsel %vm1148, %v1168, -3.4028235e+38
      %v1268 = vsel %vm1148, %v1171, -3.4028235e+38
      %v1269 = vsel %vm1148, %v1174, -3.4028235e+38
      %v1270 = vsel %vm1148, %v1177, -3.4028235e+38
      %v1271 = vsel %vm1148, %v1180, -3.4028235e+38
      %v1272 = vsel %vm1148, %v1183, -3.4028235e+38
      %v1273 = vsel %vm1148, %v1186, -3.4028235e+38
      %v1274 = vsel %vm1148, %v1189, -3.4028235e+38
      %v1275 = vsel %vm1148, %v1192, -3.4028235e+38
      %v1276 = vsel %vm1148, %v1195, -3.4028235e+38
      %vm1309 = vcmask 1046528
      %v1310 = vrot.slane %v1245, 1
      %v1311 = vrot.slane %v1151, 1
      %v1312 = vsel %vm1309, %v1310, %v1311
      %v1313 = vrot.slane %v1261, 1
      %v1314 = vsel %vm1309, %v1311, %v1313
      %v1315 = vrot.slane %v1246, 1
      %v1316 = vrot.slane %v1154, 1
      %v1317 = vsel %vm1309, %v1315, %v1316
      %v1318 = vrot.slane %v1262, 1
      %v1319 = vsel %vm1309, %v1316, %v1318
      %v1320 = vrot.slane %v1247, 1
      %v1321 = vrot.slane %v1157, 1
      %v1322 = vsel %vm1309, %v1320, %v1321
      %v1323 = vrot.slane %v1263, 1
      %v1324 = vsel %vm1309, %v1321, %v1323
      %v1325 = vrot.slane %v1248, 1
      %v1326 = vrot.slane %v1160, 1
      %v1327 = vsel %vm1309, %v1325, %v1326
      %v1328 = vrot.slane %v1264, 1
      %v1329 = vsel %vm1309, %v1326, %v1328
      %v1330 = vrot.slane %v1249, 1
      %v1331 = vrot.slane %v1163, 1
      %v1332 = vsel %vm1309, %v1330, %v1331
      %v1333 = vrot.slane %v1265, 1
      %v1334 = vsel %vm1309, %v1331, %v1333
      %v1335 = vrot.slane %v1250, 1
      %v1336 = vrot.slane %v1166, 1
      %v1337 = vsel %vm1309, %v1335, %v1336
      %v1338 = vrot.slane %v1266, 1
      %v1339 = vsel %vm1309, %v1336, %v1338
      %v1340 = vrot.slane %v1251, 1
      %v1341 = vrot.slane %v1169, 1
      %v1342 = vsel %vm1309, %v1340, %v1341
      %v1343 = vrot.slane %v1267, 1
      %v1344 = vsel %vm1309, %v1341, %v1343
      %v1345 = vrot.slane %v1252, 1
      %v1346 = vrot.slane %v1172, 1
      %v1347 = vsel %vm1309, %v1345, %v1346
      %v1348 = vrot.slane %v1268, 1
      %v1349 = vsel %vm1309, %v1346, %v1348
      %v1350 = vrot.slane %v1253, 1
      %v1351 = vrot.slane %v1175, 1
      %v1352 = vsel %vm1309, %v1350, %v1351
      %v1353 = vrot.slane %v1269, 1
      %v1354 = vsel %vm1309, %v1351, %v1353
      %v1355 = vrot.slane %v1254, 1
      %v1356 = vrot.slane %v1178, 1
      %v1357 = vsel %vm1309, %v1355, %v1356
      %v1358 = vrot.slane %v1270, 1
      %v1359 = vsel %vm1309, %v1356, %v1358
      %v1360 = vrot.slane %v1255, 1
      %v1361 = vrot.slane %v1181, 1
      %v1362 = vsel %vm1309, %v1360, %v1361
      %v1363 = vrot.slane %v1271, 1
      %v1364 = vsel %vm1309, %v1361, %v1363
      %v1365 = vrot.slane %v1256, 1
      %v1366 = vrot.slane %v1184, 1
      %v1367 = vsel %vm1309, %v1365, %v1366
      %v1368 = vrot.slane %v1272, 1
      %v1369 = vsel %vm1309, %v1366, %v1368
      %v1370 = vrot.slane %v1257, 1
      %v1371 = vrot.slane %v1187, 1
      %v1372 = vsel %vm1309, %v1370, %v1371
      %v1373 = vrot.slane %v1273, 1
      %v1374 = vsel %vm1309, %v1371, %v1373
      %v1375 = vrot.slane %v1258, 1
      %v1376 = vrot.slane %v1190, 1
      %v1377 = vsel %vm1309, %v1375, %v1376
      %v1378 = vrot.slane %v1274, 1
      %v1379 = vsel %vm1309, %v1376, %v1378
      %v1380 = vrot.slane %v1259, 1
      %v1381 = vrot.slane %v1193, 1
      %v1382 = vsel %vm1309, %v1380, %v1381
      %v1383 = vrot.slane %v1275, 1
      %v1384 = vsel %vm1309, %v1381, %v1383
      %v1385 = vrot.slane %v1260, 1
      %v1386 = vrot.slane %v1196, 1
      %v1387 = vsel %vm1309, %v1385, %v1386
      %v1388 = vrot.slane %v1276, 1
      %v1389 = vsel %vm1309, %v1386, %v1388
      %v1422 = vmax.f32 %v1245, %v1312
      %v1423 = vmax.f32 %v1151, %v1314
      %v1424 = vmax.f32 %v1246, %v1317
      %v1425 = vmax.f32 %v1154, %v1319
      %v1426 = vmax.f32 %v1247, %v1322
      %v1427 = vmax.f32 %v1157, %v1324
      %v1428 = vmax.f32 %v1248, %v1327
      %v1429 = vmax.f32 %v1160, %v1329
      %v1430 = vmax.f32 %v1249, %v1332
      %v1431 = vmax.f32 %v1163, %v1334
      %v1432 = vmax.f32 %v1250, %v1337
      %v1433 = vmax.f32 %v1166, %v1339
      %v1434 = vmax.f32 %v1251, %v1342
      %v1435 = vmax.f32 %v1169, %v1344
      %v1436 = vmax.f32 %v1252, %v1347
      %v1437 = vmax.f32 %v1172, %v1349
      %v1438 = vmax.f32 %v1253, %v1352
      %v1439 = vmax.f32 %v1175, %v1354
      %v1440 = vmax.f32 %v1254, %v1357
      %v1441 = vmax.f32 %v1178, %v1359
      %v1442 = vmax.f32 %v1255, %v1362
      %v1443 = vmax.f32 %v1181, %v1364
      %v1444 = vmax.f32 %v1256, %v1367
      %v1445 = vmax.f32 %v1184, %v1369
      %v1446 = vmax.f32 %v1257, %v1372
      %v1447 = vmax.f32 %v1187, %v1374
      %v1448 = vmax.f32 %v1258, %v1377
      %v1449 = vmax.f32 %v1190, %v1379
      %v1450 = vmax.f32 %v1259, %v1382
      %v1451 = vmax.f32 %v1193, %v1384
      %v1452 = vmax.f32 %v1260, %v1387
      %v1453 = vmax.f32 %v1196, %v1389
      %vm1454 = vcmask 1045504
      %v1455 = vrot.slane %v1245, 2
      %v1456 = vrot.slane %v1151, 2
      %v1457 = vsel %vm1454, %v1455, %v1456
      %v1458 = vrot.slane %v1261, 2
      %v1459 = vsel %vm1454, %v1456, %v1458
      %v1460 = vrot.slane %v1246, 2
      %v1461 = vrot.slane %v1154, 2
      %v1462 = vsel %vm1454, %v1460, %v1461
      %v1463 = vrot.slane %v1262, 2
      %v1464 = vsel %vm1454, %v1461, %v1463
      %v1465 = vrot.slane %v1247, 2
      %v1466 = vrot.slane %v1157, 2
      %v1467 = vsel %vm1454, %v1465, %v1466
      %v1468 = vrot.slane %v1263, 2
      %v1469 = vsel %vm1454, %v1466, %v1468
      %v1470 = vrot.slane %v1248, 2
      %v1471 = vrot.slane %v1160, 2
      %v1472 = vsel %vm1454, %v1470, %v1471
      %v1473 = vrot.slane %v1264, 2
      %v1474 = vsel %vm1454, %v1471, %v1473
      %v1475 = vrot.slane %v1249, 2
      %v1476 = vrot.slane %v1163, 2
      %v1477 = vsel %vm1454, %v1475, %v1476
      %v1478 = vrot.slane %v1265, 2
      %v1479 = vsel %vm1454, %v1476, %v1478
      %v1480 = vrot.slane %v1250, 2
      %v1481 = vrot.slane %v1166, 2
      %v1482 = vsel %vm1454, %v1480, %v1481
      %v1483 = vrot.slane %v1266, 2
      %v1484 = vsel %vm1454, %v1481, %v1483
      %v1485 = vrot.slane %v1251, 2
      %v1486 = vrot.slane %v1169, 2
      %v1487 = vsel %vm1454, %v1485, %v1486
      %v1488 = vrot.slane %v1267, 2
      %v1489 = vsel %vm1454, %v1486, %v1488
      %v1490 = vrot.slane %v1252, 2
      %v1491 = vrot.slane %v1172, 2
      %v1492 = vsel %vm1454, %v1490, %v1491
      %v1493 = vrot.slane %v1268, 2
      %v1494 = vsel %vm1454, %v1491, %v1493
      %v1495 = vrot.slane %v1253, 2
      %v1496 = vrot.slane %v1175, 2
      %v1497 = vsel %vm1454, %v1495, %v1496
      %v1498 = vrot.slane %v1269, 2
      %v1499 = vsel %vm1454, %v1496, %v1498
      %v1500 = vrot.slane %v1254, 2
      %v1501 = vrot.slane %v1178, 2
      %v1502 = vsel %vm1454, %v1500, %v1501
      %v1503 = vrot.slane %v1270, 2
      %v1504 = vsel %vm1454, %v1501, %v1503
      %v1505 = vrot.slane %v1255, 2
      %v1506 = vrot.slane %v1181, 2
      %v1507 = vsel %vm1454, %v1505, %v1506
      %v1508 = vrot.slane %v1271, 2
      %v1509 = vsel %vm1454, %v1506, %v1508
      %v1510 = vrot.slane %v1256, 2
      %v1511 = vrot.slane %v1184, 2
      %v1512 = vsel %vm1454, %v1510, %v1511
      %v1513 = vrot.slane %v1272, 2
      %v1514 = vsel %vm1454, %v1511, %v1513
      %v1515 = vrot.slane %v1257, 2
      %v1516 = vrot.slane %v1187, 2
      %v1517 = vsel %vm1454, %v1515, %v1516
      %v1518 = vrot.slane %v1273, 2
      %v1519 = vsel %vm1454, %v1516, %v1518
      %v1520 = vrot.slane %v1258, 2
      %v1521 = vrot.slane %v1190, 2
      %v1522 = vsel %vm1454, %v1520, %v1521
      %v1523 = vrot.slane %v1274, 2
      %v1524 = vsel %vm1454, %v1521, %v1523
      %v1525 = vrot.slane %v1259, 2
      %v1526 = vrot.slane %v1193, 2
      %v1527 = vsel %vm1454, %v1525, %v1526
      %v1528 = vrot.slane %v1275, 2
      %v1529 = vsel %vm1454, %v1526, %v1528
      %v1530 = vrot.slane %v1260, 2
      %v1531 = vrot.slane %v1196, 2
      %v1532 = vsel %vm1454, %v1530, %v1531
      %v1533 = vrot.slane %v1276, 2
      %v1534 = vsel %vm1454, %v1531, %v1533
      %v1567 = vmax.f32 %v1422, %v1457
      %v1568 = vmax.f32 %v1423, %v1459
      %v1569 = vmax.f32 %v1424, %v1462
      %v1570 = vmax.f32 %v1425, %v1464
      %v1571 = vmax.f32 %v1426, %v1467
      %v1572 = vmax.f32 %v1427, %v1469
      %v1573 = vmax.f32 %v1428, %v1472
      %v1574 = vmax.f32 %v1429, %v1474
      %v1575 = vmax.f32 %v1430, %v1477
      %v1576 = vmax.f32 %v1431, %v1479
      %v1577 = vmax.f32 %v1432, %v1482
      %v1578 = vmax.f32 %v1433, %v1484
      %v1579 = vmax.f32 %v1434, %v1487
      %v1580 = vmax.f32 %v1435, %v1489
      %v1581 = vmax.f32 %v1436, %v1492
      %v1582 = vmax.f32 %v1437, %v1494
      %v1583 = vmax.f32 %v1438, %v1497
      %v1584 = vmax.f32 %v1439, %v1499
      %v1585 = vmax.f32 %v1440, %v1502
      %v1586 = vmax.f32 %v1441, %v1504
      %v1587 = vmax.f32 %v1442, %v1507
      %v1588 = vmax.f32 %v1443, %v1509
      %v1589 = vmax.f32 %v1444, %v1512
      %v1590 = vmax.f32 %v1445, %v1514
      %v1591 = vmax.f32 %v1446, %v1517
      %v1592 = vmax.f32 %v1447, %v1519
      %v1593 = vmax.f32 %v1448, %v1522
      %v1594 = vmax.f32 %v1449, %v1524
      %v1595 = vmax.f32 %v1450, %v1527
      %v1596 = vmax.f32 %v1451, %v1529
      %v1597 = vmax.f32 %v1452, %v1532
      %v1598 = vmax.f32 %v1453, %v1534
      %vm1599 = vcmask 1044480
      %v1600 = vrot.slane %v1245, 3
      %v1601 = vrot.slane %v1151, 3
      %v1602 = vsel %vm1599, %v1600, %v1601
      %v1603 = vrot.slane %v1261, 3
      %v1604 = vsel %vm1599, %v1601, %v1603
      %v1605 = vrot.slane %v1246, 3
      %v1606 = vrot.slane %v1154, 3
      %v1607 = vsel %vm1599, %v1605, %v1606
      %v1608 = vrot.slane %v1262, 3
      %v1609 = vsel %vm1599, %v1606, %v1608
      %v1610 = vrot.slane %v1247, 3
      %v1611 = vrot.slane %v1157, 3
      %v1612 = vsel %vm1599, %v1610, %v1611
      %v1613 = vrot.slane %v1263, 3
      %v1614 = vsel %vm1599, %v1611, %v1613
      %v1615 = vrot.slane %v1248, 3
      %v1616 = vrot.slane %v1160, 3
      %v1617 = vsel %vm1599, %v1615, %v1616
      %v1618 = vrot.slane %v1264, 3
      %v1619 = vsel %vm1599, %v1616, %v1618
      %v1620 = vrot.slane %v1249, 3
      %v1621 = vrot.slane %v1163, 3
      %v1622 = vsel %vm1599, %v1620, %v1621
      %v1623 = vrot.slane %v1265, 3
      %v1624 = vsel %vm1599, %v1621, %v1623
      %v1625 = vrot.slane %v1250, 3
      %v1626 = vrot.slane %v1166, 3
      %v1627 = vsel %vm1599, %v1625, %v1626
      %v1628 = vrot.slane %v1266, 3
      %v1629 = vsel %vm1599, %v1626, %v1628
      %v1630 = vrot.slane %v1251, 3
      %v1631 = vrot.slane %v1169, 3
      %v1632 = vsel %vm1599, %v1630, %v1631
      %v1633 = vrot.slane %v1267, 3
      %v1634 = vsel %vm1599, %v1631, %v1633
      %v1635 = vrot.slane %v1252, 3
      %v1636 = vrot.slane %v1172, 3
      %v1637 = vsel %vm1599, %v1635, %v1636
      %v1638 = vrot.slane %v1268, 3
      %v1639 = vsel %vm1599, %v1636, %v1638
      %v1640 = vrot.slane %v1253, 3
      %v1641 = vrot.slane %v1175, 3
      %v1642 = vsel %vm1599, %v1640, %v1641
      %v1643 = vrot.slane %v1269, 3
      %v1644 = vsel %vm1599, %v1641, %v1643
      %v1645 = vrot.slane %v1254, 3
      %v1646 = vrot.slane %v1178, 3
      %v1647 = vsel %vm1599, %v1645, %v1646
      %v1648 = vrot.slane %v1270, 3
      %v1649 = vsel %vm1599, %v1646, %v1648
      %v1650 = vrot.slane %v1255, 3
      %v1651 = vrot.slane %v1181, 3
      %v1652 = vsel %vm1599, %v1650, %v1651
      %v1653 = vrot.slane %v1271, 3
      %v1654 = vsel %vm1599, %v1651, %v1653
      %v1655 = vrot.slane %v1256, 3
      %v1656 = vrot.slane %v1184, 3
      %v1657 = vsel %vm1599, %v1655, %v1656
      %v1658 = vrot.slane %v1272, 3
      %v1659 = vsel %vm1599, %v1656, %v1658
      %v1660 = vrot.slane %v1257, 3
      %v1661 = vrot.slane %v1187, 3
      %v1662 = vsel %vm1599, %v1660, %v1661
      %v1663 = vrot.slane %v1273, 3
      %v1664 = vsel %vm1599, %v1661, %v1663
      %v1665 = vrot.slane %v1258, 3
      %v1666 = vrot.slane %v1190, 3
      %v1667 = vsel %vm1599, %v1665, %v1666
      %v1668 = vrot.slane %v1274, 3
      %v1669 = vsel %vm1599, %v1666, %v1668
      %v1670 = vrot.slane %v1259, 3
      %v1671 = vrot.slane %v1193, 3
      %v1672 = vsel %vm1599, %v1670, %v1671
      %v1673 = vrot.slane %v1275, 3
      %v1674 = vsel %vm1599, %v1671, %v1673
      %v1675 = vrot.slane %v1260, 3
      %v1676 = vrot.slane %v1196, 3
      %v1677 = vsel %vm1599, %v1675, %v1676
      %v1678 = vrot.slane %v1276, 3
      %v1679 = vsel %vm1599, %v1676, %v1678
      %v1712 = vmax.f32 %v1567, %v1602
      %v1713 = vmax.f32 %v1568, %v1604
      %v1714 = vmax.f32 %v1569, %v1607
      %v1715 = vmax.f32 %v1570, %v1609
      %v1716 = vmax.f32 %v1571, %v1612
      %v1717 = vmax.f32 %v1572, %v1614
      %v1718 = vmax.f32 %v1573, %v1617
      %v1719 = vmax.f32 %v1574, %v1619
      %v1720 = vmax.f32 %v1575, %v1622
      %v1721 = vmax.f32 %v1576, %v1624
      %v1722 = vmax.f32 %v1577, %v1627
      %v1723 = vmax.f32 %v1578, %v1629
      %v1724 = vmax.f32 %v1579, %v1632
      %v1725 = vmax.f32 %v1580, %v1634
      %v1726 = vmax.f32 %v1581, %v1637
      %v1727 = vmax.f32 %v1582, %v1639
      %v1728 = vmax.f32 %v1583, %v1642
      %v1729 = vmax.f32 %v1584, %v1644
      %v1730 = vmax.f32 %v1585, %v1647
      %v1731 = vmax.f32 %v1586, %v1649
      %v1732 = vmax.f32 %v1587, %v1652
      %v1733 = vmax.f32 %v1588, %v1654
      %v1734 = vmax.f32 %v1589, %v1657
      %v1735 = vmax.f32 %v1590, %v1659
      %v1736 = vmax.f32 %v1591, %v1662
      %v1737 = vmax.f32 %v1592, %v1664
      %v1738 = vmax.f32 %v1593, %v1667
      %v1739 = vmax.f32 %v1594, %v1669
      %v1740 = vmax.f32 %v1595, %v1672
      %v1741 = vmax.f32 %v1596, %v1674
      %v1742 = vmax.f32 %v1597, %v1677
      %v1743 = vmax.f32 %v1598, %v1679
      %v1744 = vrot.slane %v1245, 4
      %v1745 = vrot.slane %v1151, 4
      %v1746 = vsel %vm359, %v1744, %v1745
      %v1747 = vrot.slane %v1261, 4
      %v1748 = vsel %vm359, %v1745, %v1747
      %v1749 = vrot.slane %v1246, 4
      %v1750 = vrot.slane %v1154, 4
      %v1751 = vsel %vm359, %v1749, %v1750
      %v1752 = vrot.slane %v1262, 4
      %v1753 = vsel %vm359, %v1750, %v1752
      %v1754 = vrot.slane %v1247, 4
      %v1755 = vrot.slane %v1157, 4
      %v1756 = vsel %vm359, %v1754, %v1755
      %v1757 = vrot.slane %v1263, 4
      %v1758 = vsel %vm359, %v1755, %v1757
      %v1759 = vrot.slane %v1248, 4
      %v1760 = vrot.slane %v1160, 4
      %v1761 = vsel %vm359, %v1759, %v1760
      %v1762 = vrot.slane %v1264, 4
      %v1763 = vsel %vm359, %v1760, %v1762
      %v1764 = vrot.slane %v1249, 4
      %v1765 = vrot.slane %v1163, 4
      %v1766 = vsel %vm359, %v1764, %v1765
      %v1767 = vrot.slane %v1265, 4
      %v1768 = vsel %vm359, %v1765, %v1767
      %v1769 = vrot.slane %v1250, 4
      %v1770 = vrot.slane %v1166, 4
      %v1771 = vsel %vm359, %v1769, %v1770
      %v1772 = vrot.slane %v1266, 4
      %v1773 = vsel %vm359, %v1770, %v1772
      %v1774 = vrot.slane %v1251, 4
      %v1775 = vrot.slane %v1169, 4
      %v1776 = vsel %vm359, %v1774, %v1775
      %v1777 = vrot.slane %v1267, 4
      %v1778 = vsel %vm359, %v1775, %v1777
      %v1779 = vrot.slane %v1252, 4
      %v1780 = vrot.slane %v1172, 4
      %v1781 = vsel %vm359, %v1779, %v1780
      %v1782 = vrot.slane %v1268, 4
      %v1783 = vsel %vm359, %v1780, %v1782
      %v1784 = vrot.slane %v1253, 4
      %v1785 = vrot.slane %v1175, 4
      %v1786 = vsel %vm359, %v1784, %v1785
      %v1787 = vrot.slane %v1269, 4
      %v1788 = vsel %vm359, %v1785, %v1787
      %v1789 = vrot.slane %v1254, 4
      %v1790 = vrot.slane %v1178, 4
      %v1791 = vsel %vm359, %v1789, %v1790
      %v1792 = vrot.slane %v1270, 4
      %v1793 = vsel %vm359, %v1790, %v1792
      %v1794 = vrot.slane %v1255, 4
      %v1795 = vrot.slane %v1181, 4
      %v1796 = vsel %vm359, %v1794, %v1795
      %v1797 = vrot.slane %v1271, 4
      %v1798 = vsel %vm359, %v1795, %v1797
      %v1799 = vrot.slane %v1256, 4
      %v1800 = vrot.slane %v1184, 4
      %v1801 = vsel %vm359, %v1799, %v1800
      %v1802 = vrot.slane %v1272, 4
      %v1803 = vsel %vm359, %v1800, %v1802
      %v1804 = vrot.slane %v1257, 4
      %v1805 = vrot.slane %v1187, 4
      %v1806 = vsel %vm359, %v1804, %v1805
      %v1807 = vrot.slane %v1273, 4
      %v1808 = vsel %vm359, %v1805, %v1807
      %v1809 = vrot.slane %v1258, 4
      %v1810 = vrot.slane %v1190, 4
      %v1811 = vsel %vm359, %v1809, %v1810
      %v1812 = vrot.slane %v1274, 4
      %v1813 = vsel %vm359, %v1810, %v1812
      %v1814 = vrot.slane %v1259, 4
      %v1815 = vrot.slane %v1193, 4
      %v1816 = vsel %vm359, %v1814, %v1815
      %v1817 = vrot.slane %v1275, 4
      %v1818 = vsel %vm359, %v1815, %v1817
      %v1819 = vrot.slane %v1260, 4
      %v1820 = vrot.slane %v1196, 4
      %v1821 = vsel %vm359, %v1819, %v1820
      %v1822 = vrot.slane %v1276, 4
      %v1823 = vsel %vm359, %v1820, %v1822
      %v1856 = vmax.f32 %v1712, %v1746
      %v1857 = vmax.f32 %v1713, %v1748
      %v1858 = vmax.f32 %v1714, %v1751
      %v1859 = vmax.f32 %v1715, %v1753
      %v1860 = vmax.f32 %v1716, %v1756
      %v1861 = vmax.f32 %v1717, %v1758
      %v1862 = vmax.f32 %v1718, %v1761
      %v1863 = vmax.f32 %v1719, %v1763
      %v1864 = vmax.f32 %v1720, %v1766
      %v1865 = vmax.f32 %v1721, %v1768
      %v1866 = vmax.f32 %v1722, %v1771
      %v1867 = vmax.f32 %v1723, %v1773
      %v1868 = vmax.f32 %v1724, %v1776
      %v1869 = vmax.f32 %v1725, %v1778
      %v1870 = vmax.f32 %v1726, %v1781
      %v1871 = vmax.f32 %v1727, %v1783
      %v1872 = vmax.f32 %v1728, %v1786
      %v1873 = vmax.f32 %v1729, %v1788
      %v1874 = vmax.f32 %v1730, %v1791
      %v1875 = vmax.f32 %v1731, %v1793
      %v1876 = vmax.f32 %v1732, %v1796
      %v1877 = vmax.f32 %v1733, %v1798
      %v1878 = vmax.f32 %v1734, %v1801
      %v1879 = vmax.f32 %v1735, %v1803
      %v1880 = vmax.f32 %v1736, %v1806
      %v1881 = vmax.f32 %v1737, %v1808
      %v1882 = vmax.f32 %v1738, %v1811
      %v1883 = vmax.f32 %v1739, %v1813
      %v1884 = vmax.f32 %v1740, %v1816
      %v1885 = vmax.f32 %v1741, %v1818
      %v1886 = vmax.f32 %v1742, %v1821
      %v1887 = vmax.f32 %v1743, %v1823
      %v1888 = vmax.f32 %v1856, -3.4028235e+38
      %v1889 = vmax.f32 %v1857, -3.4028235e+38
      %v1890 = vmax.f32 %v1856, %v1858
      %v1891 = vmax.f32 %v1857, %v1859
      %v1892 = vmax.f32 %v1858, %v1860
      %v1893 = vmax.f32 %v1859, %v1861
      %v1894 = vmax.f32 %v1860, %v1862
      %v1895 = vmax.f32 %v1861, %v1863
      %v1896 = vmax.f32 %v1862, %v1864
      %v1897 = vmax.f32 %v1863, %v1865
      %v1898 = vmax.f32 %v1864, %v1866
      %v1899 = vmax.f32 %v1865, %v1867
      %v1900 = vmax.f32 %v1866, %v1868
      %v1901 = vmax.f32 %v1867, %v1869
      %v1902 = vmax.f32 %v1868, %v1870
      %v1903 = vmax.f32 %v1869, %v1871
      %v1904 = vmax.f32 %v1870, %v1872
      %v1905 = vmax.f32 %v1871, %v1873
      %v1906 = vmax.f32 %v1872, %v1874
      %v1907 = vmax.f32 %v1873, %v1875
      %v1908 = vmax.f32 %v1874, %v1876
      %v1909 = vmax.f32 %v1875, %v1877
      %v1910 = vmax.f32 %v1876, %v1878
      %v1911 = vmax.f32 %v1877, %v1879
      %v1912 = vmax.f32 %v1878, %v1880
      %v1913 = vmax.f32 %v1879, %v1881
      %v1914 = vmax.f32 %v1880, %v1882
      %v1915 = vmax.f32 %v1881, %v1883
      %v1916 = vmax.f32 %v1882, %v1884
      %v1917 = vmax.f32 %v1883, %v1885
      %v1918 = vmax.f32 %v1888, %v1858
      %v1919 = vmax.f32 %v1889, %v1859
      %v1920 = vmax.f32 %v1890, %v1860
      %v1921 = vmax.f32 %v1891, %v1861
      %v1922 = vmax.f32 %v1892, %v1862
      %v1923 = vmax.f32 %v1893, %v1863
      %v1924 = vmax.f32 %v1894, %v1864
      %v1925 = vmax.f32 %v1895, %v1865
      %v1926 = vmax.f32 %v1896, %v1866
      %v1927 = vmax.f32 %v1897, %v1867
      %v1928 = vmax.f32 %v1898, %v1868
      %v1929 = vmax.f32 %v1899, %v1869
      %v1930 = vmax.f32 %v1900, %v1870
      %v1931 = vmax.f32 %v1901, %v1871
      %v1932 = vmax.f32 %v1902, %v1872
      %v1933 = vmax.f32 %v1903, %v1873
      %v1934 = vmax.f32 %v1904, %v1874
      %v1935 = vmax.f32 %v1905, %v1875
      %v1936 = vmax.f32 %v1906, %v1876
      %v1937 = vmax.f32 %v1907, %v1877
      %v1938 = vmax.f32 %v1908, %v1878
      %v1939 = vmax.f32 %v1909, %v1879
      %v1940 = vmax.f32 %v1910, %v1880
      %v1941 = vmax.f32 %v1911, %v1881
      %v1942 = vmax.f32 %v1912, %v1882
      %v1943 = vmax.f32 %v1913, %v1883
      %v1944 = vmax.f32 %v1914, %v1884
      %v1945 = vmax.f32 %v1915, %v1885
      %v1946 = vmax.f32 %v1916, %v1886
      %v1947 = vmax.f32 %v1917, %v1887
      %v1948 = vmax.f32 %v1918, %v1860
      %v1949 = vmax.f32 %v1919, %v1861
      %v1950 = vmax.f32 %v1920, %v1862
      %v1951 = vmax.f32 %v1921, %v1863
      %v1952 = vmax.f32 %v1922, %v1864
      %v1953 = vmax.f32 %v1923, %v1865
      %v1954 = vmax.f32 %v1924, %v1866
      %v1955 = vmax.f32 %v1925, %v1867
      %v1956 = vmax.f32 %v1926, %v1868
      %v1957 = vmax.f32 %v1927, %v1869
      %v1958 = vmax.f32 %v1928, %v1870
      %v1959 = vmax.f32 %v1929, %v1871
      %v1960 = vmax.f32 %v1930, %v1872
      %v1961 = vmax.f32 %v1931, %v1873
      %v1962 = vmax.f32 %v1932, %v1874
      %v1963 = vmax.f32 %v1933, %v1875
      %v1964 = vmax.f32 %v1934, %v1876
      %v1965 = vmax.f32 %v1935, %v1877
      %v1966 = vmax.f32 %v1936, %v1878
      %v1967 = vmax.f32 %v1937, %v1879
      %v1968 = vmax.f32 %v1938, %v1880
      %v1969 = vmax.f32 %v1939, %v1881
      %v1970 = vmax.f32 %v1940, %v1882
      %v1971 = vmax.f32 %v1941, %v1883
      %v1972 = vmax.f32 %v1942, %v1884
      %v1973 = vmax.f32 %v1943, %v1885
      %v1974 = vmax.f32 %v1944, %v1886
      %v1975 = vmax.f32 %v1945, %v1887
      %v1976 = vmax.f32 %v1946, -3.4028235e+38
      %v1977 = vmax.f32 %v1947, -3.4028235e+38
      %v1978 = vmax.f32 %v1948, %v1862
      %v1979 = vmax.f32 %v1949, %v1863
      %v1980 = vmax.f32 %v1950, %v1864
      %v1981 = vmax.f32 %v1951, %v1865
      %v1982 = vmax.f32 %v1952, %v1866
      %v1983 = vmax.f32 %v1953, %v1867
      %v1984 = vmax.f32 %v1954, %v1868
      %v1985 = vmax.f32 %v1955, %v1869
      %v1986 = vmax.f32 %v1956, %v1870
      %v1987 = vmax.f32 %v1957, %v1871
      %v1988 = vmax.f32 %v1958, %v1872
      %v1989 = vmax.f32 %v1959, %v1873
      %v1990 = vmax.f32 %v1960, %v1874
      %v1991 = vmax.f32 %v1961, %v1875
      %v1992 = vmax.f32 %v1962, %v1876
      %v1993 = vmax.f32 %v1963, %v1877
      %v1994 = vmax.f32 %v1964, %v1878
      %v1995 = vmax.f32 %v1965, %v1879
      %v1996 = vmax.f32 %v1966, %v1880
      %v1997 = vmax.f32 %v1967, %v1881
      %v1998 = vmax.f32 %v1968, %v1882
      %v1999 = vmax.f32 %v1969, %v1883
      %v2000 = vmax.f32 %v1970, %v1884
      %v2001 = vmax.f32 %v1971, %v1885
      %v2002 = vmax.f32 %v1972, %v1886
      %v2003 = vmax.f32 %v1973, %v1887
      %v2004 = vmax.f32 %v1974, -3.4028235e+38
      %v2005 = vmax.f32 %v1975, -3.4028235e+38
      %v2006 = vmax.f32 %v1976, -3.4028235e+38
      %v2007 = vmax.f32 %v1977, -3.4028235e+38
      %v2040 = vrot.slane %v1948, 6
      %v2041 = vrot.slane %v1949, 6
      %v2042 = vsel %vm1148, %v2040, %v2041
      %v2043 = vrot.slane %v1978, 6
      %v2044 = vrot.slane %v1979, 6
      %v2045 = vsel %vm1148, %v2043, %v2044
      %v2046 = vrot.slane %v1980, 6
      %v2047 = vrot.slane %v1981, 6
      %v2048 = vsel %vm1148, %v2046, %v2047
      %v2049 = vrot.slane %v1982, 6
      %v2050 = vrot.slane %v1983, 6
      %v2051 = vsel %vm1148, %v2049, %v2050
      %v2052 = vrot.slane %v1984, 6
      %v2053 = vrot.slane %v1985, 6
      %v2054 = vsel %vm1148, %v2052, %v2053
      %v2055 = vrot.slane %v1986, 6
      %v2056 = vrot.slane %v1987, 6
      %v2057 = vsel %vm1148, %v2055, %v2056
      %v2058 = vrot.slane %v1988, 6
      %v2059 = vrot.slane %v1989, 6
      %v2060 = vsel %vm1148, %v2058, %v2059
      %v2061 = vrot.slane %v1990, 6
      %v2062 = vrot.slane %v1991, 6
      %v2063 = vsel %vm1148, %v2061, %v2062
      %v2064 = vrot.slane %v1992, 6
      %v2065 = vrot.slane %v1993, 6
      %v2066 = vsel %vm1148, %v2064, %v2065
      %v2067 = vrot.slane %v1994, 6
      %v2068 = vrot.slane %v1995, 6
      %v2069 = vsel %vm1148, %v2067, %v2068
      %v2070 = vrot.slane %v1996, 6
      %v2071 = vrot.slane %v1997, 6
      %v2072 = vsel %vm1148, %v2070, %v2071
      %v2073 = vrot.slane %v1998, 6
      %v2074 = vrot.slane %v1999, 6
      %v2075 = vsel %vm1148, %v2073, %v2074
      %v2076 = vrot.slane %v2000, 6
      %v2077 = vrot.slane %v2001, 6
      %v2078 = vsel %vm1148, %v2076, %v2077
      %v2079 = vrot.slane %v2002, 6
      %v2080 = vrot.slane %v2003, 6
      %v2081 = vsel %vm1148, %v2079, %v2080
      %v2082 = vrot.slane %v2004, 6
      %v2083 = vrot.slane %v2005, 6
      %v2084 = vsel %vm1148, %v2082, %v2083
      %v2085 = vrot.slane %v2006, 6
      %v2086 = vrot.slane %v2007, 6
      %v2087 = vsel %vm1148, %v2085, %v2086
      %v2136 = vsel %vm1148, -3.4028235e+38, %v2040
      %v2137 = vsel %vm1148, -3.4028235e+38, %v2043
      %v2138 = vsel %vm1148, -3.4028235e+38, %v2046
      %v2139 = vsel %vm1148, -3.4028235e+38, %v2049
      %v2140 = vsel %vm1148, -3.4028235e+38, %v2052
      %v2141 = vsel %vm1148, -3.4028235e+38, %v2055
      %v2142 = vsel %vm1148, -3.4028235e+38, %v2058
      %v2143 = vsel %vm1148, -3.4028235e+38, %v2061
      %v2144 = vsel %vm1148, -3.4028235e+38, %v2064
      %v2145 = vsel %vm1148, -3.4028235e+38, %v2067
      %v2146 = vsel %vm1148, -3.4028235e+38, %v2070
      %v2147 = vsel %vm1148, -3.4028235e+38, %v2073
      %v2148 = vsel %vm1148, -3.4028235e+38, %v2076
      %v2149 = vsel %vm1148, -3.4028235e+38, %v2079
      %v2150 = vsel %vm1148, -3.4028235e+38, %v2082
      %v2151 = vsel %vm1148, -3.4028235e+38, %v2085
      %v2152 = vsel %vm1148, %v2041, -3.4028235e+38
      %v2153 = vsel %vm1148, %v2044, -3.4028235e+38
      %v2154 = vsel %vm1148, %v2047, -3.4028235e+38
      %v2155 = vsel %vm1148, %v2050, -3.4028235e+38
      %v2156 = vsel %vm1148, %v2053, -3.4028235e+38
      %v2157 = vsel %vm1148, %v2056, -3.4028235e+38
      %v2158 = vsel %vm1148, %v2059, -3.4028235e+38
      %v2159 = vsel %vm1148, %v2062, -3.4028235e+38
      %v2160 = vsel %vm1148, %v2065, -3.4028235e+38
      %v2161 = vsel %vm1148, %v2068, -3.4028235e+38
      %v2162 = vsel %vm1148, %v2071, -3.4028235e+38
      %v2163 = vsel %vm1148, %v2074, -3.4028235e+38
      %v2164 = vsel %vm1148, %v2077, -3.4028235e+38
      %v2165 = vsel %vm1148, %v2080, -3.4028235e+38
      %v2166 = vsel %vm1148, %v2083, -3.4028235e+38
      %v2167 = vsel %vm1148, %v2086, -3.4028235e+38
      %v2200 = vrot.slane %v2136, 1
      %v2201 = vrot.slane %v2042, 1
      %v2202 = vsel %vm1309, %v2200, %v2201
      %v2203 = vrot.slane %v2152, 1
      %v2204 = vsel %vm1309, %v2201, %v2203
      %v2205 = vrot.slane %v2137, 1
      %v2206 = vrot.slane %v2045, 1
      %v2207 = vsel %vm1309, %v2205, %v2206
      %v2208 = vrot.slane %v2153, 1
      %v2209 = vsel %vm1309, %v2206, %v2208
      %v2210 = vrot.slane %v2138, 1
      %v2211 = vrot.slane %v2048, 1
      %v2212 = vsel %vm1309, %v2210, %v2211
      %v2213 = vrot.slane %v2154, 1
      %v2214 = vsel %vm1309, %v2211, %v2213
      %v2215 = vrot.slane %v2139, 1
      %v2216 = vrot.slane %v2051, 1
      %v2217 = vsel %vm1309, %v2215, %v2216
      %v2218 = vrot.slane %v2155, 1
      %v2219 = vsel %vm1309, %v2216, %v2218
      %v2220 = vrot.slane %v2140, 1
      %v2221 = vrot.slane %v2054, 1
      %v2222 = vsel %vm1309, %v2220, %v2221
      %v2223 = vrot.slane %v2156, 1
      %v2224 = vsel %vm1309, %v2221, %v2223
      %v2225 = vrot.slane %v2141, 1
      %v2226 = vrot.slane %v2057, 1
      %v2227 = vsel %vm1309, %v2225, %v2226
      %v2228 = vrot.slane %v2157, 1
      %v2229 = vsel %vm1309, %v2226, %v2228
      %v2230 = vrot.slane %v2142, 1
      %v2231 = vrot.slane %v2060, 1
      %v2232 = vsel %vm1309, %v2230, %v2231
      %v2233 = vrot.slane %v2158, 1
      %v2234 = vsel %vm1309, %v2231, %v2233
      %v2235 = vrot.slane %v2143, 1
      %v2236 = vrot.slane %v2063, 1
      %v2237 = vsel %vm1309, %v2235, %v2236
      %v2238 = vrot.slane %v2159, 1
      %v2239 = vsel %vm1309, %v2236, %v2238
      %v2240 = vrot.slane %v2144, 1
      %v2241 = vrot.slane %v2066, 1
      %v2242 = vsel %vm1309, %v2240, %v2241
      %v2243 = vrot.slane %v2160, 1
      %v2244 = vsel %vm1309, %v2241, %v2243
      %v2245 = vrot.slane %v2145, 1
      %v2246 = vrot.slane %v2069, 1
      %v2247 = vsel %vm1309, %v2245, %v2246
      %v2248 = vrot.slane %v2161, 1
      %v2249 = vsel %vm1309, %v2246, %v2248
      %v2250 = vrot.slane %v2146, 1
      %v2251 = vrot.slane %v2072, 1
      %v2252 = vsel %vm1309, %v2250, %v2251
      %v2253 = vrot.slane %v2162, 1
      %v2254 = vsel %vm1309, %v2251, %v2253
      %v2255 = vrot.slane %v2147, 1
      %v2256 = vrot.slane %v2075, 1
      %v2257 = vsel %vm1309, %v2255, %v2256
      %v2258 = vrot.slane %v2163, 1
      %v2259 = vsel %vm1309, %v2256, %v2258
      %v2260 = vrot.slane %v2148, 1
      %v2261 = vrot.slane %v2078, 1
      %v2262 = vsel %vm1309, %v2260, %v2261
      %v2263 = vrot.slane %v2164, 1
      %v2264 = vsel %vm1309, %v2261, %v2263
      %v2265 = vrot.slane %v2149, 1
      %v2266 = vrot.slane %v2081, 1
      %v2267 = vsel %vm1309, %v2265, %v2266
      %v2268 = vrot.slane %v2165, 1
      %v2269 = vsel %vm1309, %v2266, %v2268
      %v2270 = vrot.slane %v2150, 1
      %v2271 = vrot.slane %v2084, 1
      %v2272 = vsel %vm1309, %v2270, %v2271
      %v2273 = vrot.slane %v2166, 1
      %v2274 = vsel %vm1309, %v2271, %v2273
      %v2275 = vrot.slane %v2151, 1
      %v2276 = vrot.slane %v2087, 1
      %v2277 = vsel %vm1309, %v2275, %v2276
      %v2278 = vrot.slane %v2167, 1
      %v2279 = vsel %vm1309, %v2276, %v2278
      %v2312 = vmax.f32 %v2136, %v2202
      %v2313 = vmax.f32 %v2042, %v2204
      %v2314 = vmax.f32 %v2137, %v2207
      %v2315 = vmax.f32 %v2045, %v2209
      %v2316 = vmax.f32 %v2138, %v2212
      %v2317 = vmax.f32 %v2048, %v2214
      %v2318 = vmax.f32 %v2139, %v2217
      %v2319 = vmax.f32 %v2051, %v2219
      %v2320 = vmax.f32 %v2140, %v2222
      %v2321 = vmax.f32 %v2054, %v2224
      %v2322 = vmax.f32 %v2141, %v2227
      %v2323 = vmax.f32 %v2057, %v2229
      %v2324 = vmax.f32 %v2142, %v2232
      %v2325 = vmax.f32 %v2060, %v2234
      %v2326 = vmax.f32 %v2143, %v2237
      %v2327 = vmax.f32 %v2063, %v2239
      %v2328 = vmax.f32 %v2144, %v2242
      %v2329 = vmax.f32 %v2066, %v2244
      %v2330 = vmax.f32 %v2145, %v2247
      %v2331 = vmax.f32 %v2069, %v2249
      %v2332 = vmax.f32 %v2146, %v2252
      %v2333 = vmax.f32 %v2072, %v2254
      %v2334 = vmax.f32 %v2147, %v2257
      %v2335 = vmax.f32 %v2075, %v2259
      %v2336 = vmax.f32 %v2148, %v2262
      %v2337 = vmax.f32 %v2078, %v2264
      %v2338 = vmax.f32 %v2149, %v2267
      %v2339 = vmax.f32 %v2081, %v2269
      %v2340 = vmax.f32 %v2150, %v2272
      %v2341 = vmax.f32 %v2084, %v2274
      %v2342 = vmax.f32 %v2151, %v2277
      %v2343 = vmax.f32 %v2087, %v2279
      %v2344 = vrot.slane %v2136, 2
      %v2345 = vrot.slane %v2042, 2
      %v2346 = vsel %vm1454, %v2344, %v2345
      %v2347 = vrot.slane %v2152, 2
      %v2348 = vsel %vm1454, %v2345, %v2347
      %v2349 = vrot.slane %v2137, 2
      %v2350 = vrot.slane %v2045, 2
      %v2351 = vsel %vm1454, %v2349, %v2350
      %v2352 = vrot.slane %v2153, 2
      %v2353 = vsel %vm1454, %v2350, %v2352
      %v2354 = vrot.slane %v2138, 2
      %v2355 = vrot.slane %v2048, 2
      %v2356 = vsel %vm1454, %v2354, %v2355
      %v2357 = vrot.slane %v2154, 2
      %v2358 = vsel %vm1454, %v2355, %v2357
      %v2359 = vrot.slane %v2139, 2
      %v2360 = vrot.slane %v2051, 2
      %v2361 = vsel %vm1454, %v2359, %v2360
      %v2362 = vrot.slane %v2155, 2
      %v2363 = vsel %vm1454, %v2360, %v2362
      %v2364 = vrot.slane %v2140, 2
      %v2365 = vrot.slane %v2054, 2
      %v2366 = vsel %vm1454, %v2364, %v2365
      %v2367 = vrot.slane %v2156, 2
      %v2368 = vsel %vm1454, %v2365, %v2367
      %v2369 = vrot.slane %v2141, 2
      %v2370 = vrot.slane %v2057, 2
      %v2371 = vsel %vm1454, %v2369, %v2370
      %v2372 = vrot.slane %v2157, 2
      %v2373 = vsel %vm1454, %v2370, %v2372
      %v2374 = vrot.slane %v2142, 2
      %v2375 = vrot.slane %v2060, 2
      %v2376 = vsel %vm1454, %v2374, %v2375
      %v2377 = vrot.slane %v2158, 2
      %v2378 = vsel %vm1454, %v2375, %v2377
      %v2379 = vrot.slane %v2143, 2
      %v2380 = vrot.slane %v2063, 2
      %v2381 = vsel %vm1454, %v2379, %v2380
      %v2382 = vrot.slane %v2159, 2
      %v2383 = vsel %vm1454, %v2380, %v2382
      %v2384 = vrot.slane %v2144, 2
      %v2385 = vrot.slane %v2066, 2
      %v2386 = vsel %vm1454, %v2384, %v2385
      %v2387 = vrot.slane %v2160, 2
      %v2388 = vsel %vm1454, %v2385, %v2387
      %v2389 = vrot.slane %v2145, 2
      %v2390 = vrot.slane %v2069, 2
      %v2391 = vsel %vm1454, %v2389, %v2390
      %v2392 = vrot.slane %v2161, 2
      %v2393 = vsel %vm1454, %v2390, %v2392
      %v2394 = vrot.slane %v2146, 2
      %v2395 = vrot.slane %v2072, 2
      %v2396 = vsel %vm1454, %v2394, %v2395
      %v2397 = vrot.slane %v2162, 2
      %v2398 = vsel %vm1454, %v2395, %v2397
      %v2399 = vrot.slane %v2147, 2
      %v2400 = vrot.slane %v2075, 2
      %v2401 = vsel %vm1454, %v2399, %v2400
      %v2402 = vrot.slane %v2163, 2
      %v2403 = vsel %vm1454, %v2400, %v2402
      %v2404 = vrot.slane %v2148, 2
      %v2405 = vrot.slane %v2078, 2
      %v2406 = vsel %vm1454, %v2404, %v2405
      %v2407 = vrot.slane %v2164, 2
      %v2408 = vsel %vm1454, %v2405, %v2407
      %v2409 = vrot.slane %v2149, 2
      %v2410 = vrot.slane %v2081, 2
      %v2411 = vsel %vm1454, %v2409, %v2410
      %v2412 = vrot.slane %v2165, 2
      %v2413 = vsel %vm1454, %v2410, %v2412
      %v2414 = vrot.slane %v2150, 2
      %v2415 = vrot.slane %v2084, 2
      %v2416 = vsel %vm1454, %v2414, %v2415
      %v2417 = vrot.slane %v2166, 2
      %v2418 = vsel %vm1454, %v2415, %v2417
      %v2419 = vrot.slane %v2151, 2
      %v2420 = vrot.slane %v2087, 2
      %v2421 = vsel %vm1454, %v2419, %v2420
      %v2422 = vrot.slane %v2167, 2
      %v2423 = vsel %vm1454, %v2420, %v2422
      %v2456 = vmax.f32 %v2312, %v2346
      %v2457 = vmax.f32 %v2313, %v2348
      %v2458 = vmax.f32 %v2314, %v2351
      %v2459 = vmax.f32 %v2315, %v2353
      %v2460 = vmax.f32 %v2316, %v2356
      %v2461 = vmax.f32 %v2317, %v2358
      %v2462 = vmax.f32 %v2318, %v2361
      %v2463 = vmax.f32 %v2319, %v2363
      %v2464 = vmax.f32 %v2320, %v2366
      %v2465 = vmax.f32 %v2321, %v2368
      %v2466 = vmax.f32 %v2322, %v2371
      %v2467 = vmax.f32 %v2323, %v2373
      %v2468 = vmax.f32 %v2324, %v2376
      %v2469 = vmax.f32 %v2325, %v2378
      %v2470 = vmax.f32 %v2326, %v2381
      %v2471 = vmax.f32 %v2327, %v2383
      %v2472 = vmax.f32 %v2328, %v2386
      %v2473 = vmax.f32 %v2329, %v2388
      %v2474 = vmax.f32 %v2330, %v2391
      %v2475 = vmax.f32 %v2331, %v2393
      %v2476 = vmax.f32 %v2332, %v2396
      %v2477 = vmax.f32 %v2333, %v2398
      %v2478 = vmax.f32 %v2334, %v2401
      %v2479 = vmax.f32 %v2335, %v2403
      %v2480 = vmax.f32 %v2336, %v2406
      %v2481 = vmax.f32 %v2337, %v2408
      %v2482 = vmax.f32 %v2338, %v2411
      %v2483 = vmax.f32 %v2339, %v2413
      %v2484 = vmax.f32 %v2340, %v2416
      %v2485 = vmax.f32 %v2341, %v2418
      %v2486 = vmax.f32 %v2342, %v2421
      %v2487 = vmax.f32 %v2343, %v2423
      %v2488 = vrot.slane %v2136, 3
      %v2489 = vrot.slane %v2042, 3
      %v2490 = vsel %vm1599, %v2488, %v2489
      %v2491 = vrot.slane %v2152, 3
      %v2492 = vsel %vm1599, %v2489, %v2491
      %v2493 = vrot.slane %v2137, 3
      %v2494 = vrot.slane %v2045, 3
      %v2495 = vsel %vm1599, %v2493, %v2494
      %v2496 = vrot.slane %v2153, 3
      %v2497 = vsel %vm1599, %v2494, %v2496
      %v2498 = vrot.slane %v2138, 3
      %v2499 = vrot.slane %v2048, 3
      %v2500 = vsel %vm1599, %v2498, %v2499
      %v2501 = vrot.slane %v2154, 3
      %v2502 = vsel %vm1599, %v2499, %v2501
      %v2503 = vrot.slane %v2139, 3
      %v2504 = vrot.slane %v2051, 3
      %v2505 = vsel %vm1599, %v2503, %v2504
      %v2506 = vrot.slane %v2155, 3
      %v2507 = vsel %vm1599, %v2504, %v2506
      %v2508 = vrot.slane %v2140, 3
      %v2509 = vrot.slane %v2054, 3
      %v2510 = vsel %vm1599, %v2508, %v2509
      %v2511 = vrot.slane %v2156, 3
      %v2512 = vsel %vm1599, %v2509, %v2511
      %v2513 = vrot.slane %v2141, 3
      %v2514 = vrot.slane %v2057, 3
      %v2515 = vsel %vm1599, %v2513, %v2514
      %v2516 = vrot.slane %v2157, 3
      %v2517 = vsel %vm1599, %v2514, %v2516
      %v2518 = vrot.slane %v2142, 3
      %v2519 = vrot.slane %v2060, 3
      %v2520 = vsel %vm1599, %v2518, %v2519
      %v2521 = vrot.slane %v2158, 3
      %v2522 = vsel %vm1599, %v2519, %v2521
      %v2523 = vrot.slane %v2143, 3
      %v2524 = vrot.slane %v2063, 3
      %v2525 = vsel %vm1599, %v2523, %v2524
      %v2526 = vrot.slane %v2159, 3
      %v2527 = vsel %vm1599, %v2524, %v2526
      %v2528 = vrot.slane %v2144, 3
      %v2529 = vrot.slane %v2066, 3
      %v2530 = vsel %vm1599, %v2528, %v2529
      %v2531 = vrot.slane %v2160, 3
      %v2532 = vsel %vm1599, %v2529, %v2531
      %v2533 = vrot.slane %v2145, 3
      %v2534 = vrot.slane %v2069, 3
      %v2535 = vsel %vm1599, %v2533, %v2534
      %v2536 = vrot.slane %v2161, 3
      %v2537 = vsel %vm1599, %v2534, %v2536
      %v2538 = vrot.slane %v2146, 3
      %v2539 = vrot.slane %v2072, 3
      %v2540 = vsel %vm1599, %v2538, %v2539
      %v2541 = vrot.slane %v2162, 3
      %v2542 = vsel %vm1599, %v2539, %v2541
      %v2543 = vrot.slane %v2147, 3
      %v2544 = vrot.slane %v2075, 3
      %v2545 = vsel %vm1599, %v2543, %v2544
      %v2546 = vrot.slane %v2163, 3
      %v2547 = vsel %vm1599, %v2544, %v2546
      %v2548 = vrot.slane %v2148, 3
      %v2549 = vrot.slane %v2078, 3
      %v2550 = vsel %vm1599, %v2548, %v2549
      %v2551 = vrot.slane %v2164, 3
      %v2552 = vsel %vm1599, %v2549, %v2551
      %v2553 = vrot.slane %v2149, 3
      %v2554 = vrot.slane %v2081, 3
      %v2555 = vsel %vm1599, %v2553, %v2554
      %v2556 = vrot.slane %v2165, 3
      %v2557 = vsel %vm1599, %v2554, %v2556
      %v2558 = vrot.slane %v2150, 3
      %v2559 = vrot.slane %v2084, 3
      %v2560 = vsel %vm1599, %v2558, %v2559
      %v2561 = vrot.slane %v2166, 3
      %v2562 = vsel %vm1599, %v2559, %v2561
      %v2563 = vrot.slane %v2151, 3
      %v2564 = vrot.slane %v2087, 3
      %v2565 = vsel %vm1599, %v2563, %v2564
      %v2566 = vrot.slane %v2167, 3
      %v2567 = vsel %vm1599, %v2564, %v2566
      %v2600 = vmax.f32 %v2456, %v2490
      %v2601 = vmax.f32 %v2457, %v2492
      %v2602 = vmax.f32 %v2458, %v2495
      %v2603 = vmax.f32 %v2459, %v2497
      %v2604 = vmax.f32 %v2460, %v2500
      %v2605 = vmax.f32 %v2461, %v2502
      %v2606 = vmax.f32 %v2462, %v2505
      %v2607 = vmax.f32 %v2463, %v2507
      %v2608 = vmax.f32 %v2464, %v2510
      %v2609 = vmax.f32 %v2465, %v2512
      %v2610 = vmax.f32 %v2466, %v2515
      %v2611 = vmax.f32 %v2467, %v2517
      %v2612 = vmax.f32 %v2468, %v2520
      %v2613 = vmax.f32 %v2469, %v2522
      %v2614 = vmax.f32 %v2470, %v2525
      %v2615 = vmax.f32 %v2471, %v2527
      %v2616 = vmax.f32 %v2472, %v2530
      %v2617 = vmax.f32 %v2473, %v2532
      %v2618 = vmax.f32 %v2474, %v2535
      %v2619 = vmax.f32 %v2475, %v2537
      %v2620 = vmax.f32 %v2476, %v2540
      %v2621 = vmax.f32 %v2477, %v2542
      %v2622 = vmax.f32 %v2478, %v2545
      %v2623 = vmax.f32 %v2479, %v2547
      %v2624 = vmax.f32 %v2480, %v2550
      %v2625 = vmax.f32 %v2481, %v2552
      %v2626 = vmax.f32 %v2482, %v2555
      %v2627 = vmax.f32 %v2483, %v2557
      %v2628 = vmax.f32 %v2484, %v2560
      %v2629 = vmax.f32 %v2485, %v2562
      %v2630 = vmax.f32 %v2486, %v2565
      %v2631 = vmax.f32 %v2487, %v2567
      %v2632 = vrot.slane %v2136, 4
      %v2633 = vrot.slane %v2042, 4
      %v2634 = vsel %vm359, %v2632, %v2633
      %v2635 = vrot.slane %v2152, 4
      %v2636 = vsel %vm359, %v2633, %v2635
      %v2637 = vrot.slane %v2137, 4
      %v2638 = vrot.slane %v2045, 4
      %v2639 = vsel %vm359, %v2637, %v2638
      %v2640 = vrot.slane %v2153, 4
      %v2641 = vsel %vm359, %v2638, %v2640
      %v2642 = vrot.slane %v2138, 4
      %v2643 = vrot.slane %v2048, 4
      %v2644 = vsel %vm359, %v2642, %v2643
      %v2645 = vrot.slane %v2154, 4
      %v2646 = vsel %vm359, %v2643, %v2645
      %v2647 = vrot.slane %v2139, 4
      %v2648 = vrot.slane %v2051, 4
      %v2649 = vsel %vm359, %v2647, %v2648
      %v2650 = vrot.slane %v2155, 4
      %v2651 = vsel %vm359, %v2648, %v2650
      %v2652 = vrot.slane %v2140, 4
      %v2653 = vrot.slane %v2054, 4
      %v2654 = vsel %vm359, %v2652, %v2653
      %v2655 = vrot.slane %v2156, 4
      %v2656 = vsel %vm359, %v2653, %v2655
      %v2657 = vrot.slane %v2141, 4
      %v2658 = vrot.slane %v2057, 4
      %v2659 = vsel %vm359, %v2657, %v2658
      %v2660 = vrot.slane %v2157, 4
      %v2661 = vsel %vm359, %v2658, %v2660
      %v2662 = vrot.slane %v2142, 4
      %v2663 = vrot.slane %v2060, 4
      %v2664 = vsel %vm359, %v2662, %v2663
      %v2665 = vrot.slane %v2158, 4
      %v2666 = vsel %vm359, %v2663, %v2665
      %v2667 = vrot.slane %v2143, 4
      %v2668 = vrot.slane %v2063, 4
      %v2669 = vsel %vm359, %v2667, %v2668
      %v2670 = vrot.slane %v2159, 4
      %v2671 = vsel %vm359, %v2668, %v2670
      %v2672 = vrot.slane %v2144, 4
      %v2673 = vrot.slane %v2066, 4
      %v2674 = vsel %vm359, %v2672, %v2673
      %v2675 = vrot.slane %v2160, 4
      %v2676 = vsel %vm359, %v2673, %v2675
      %v2677 = vrot.slane %v2145, 4
      %v2678 = vrot.slane %v2069, 4
      %v2679 = vsel %vm359, %v2677, %v2678
      %v2680 = vrot.slane %v2161, 4
      %v2681 = vsel %vm359, %v2678, %v2680
      %v2682 = vrot.slane %v2146, 4
      %v2683 = vrot.slane %v2072, 4
      %v2684 = vsel %vm359, %v2682, %v2683
      %v2685 = vrot.slane %v2162, 4
      %v2686 = vsel %vm359, %v2683, %v2685
      %v2687 = vrot.slane %v2147, 4
      %v2688 = vrot.slane %v2075, 4
      %v2689 = vsel %vm359, %v2687, %v2688
      %v2690 = vrot.slane %v2163, 4
      %v2691 = vsel %vm359, %v2688, %v2690
      %v2692 = vrot.slane %v2148, 4
      %v2693 = vrot.slane %v2078, 4
      %v2694 = vsel %vm359, %v2692, %v2693
      %v2695 = vrot.slane %v2164, 4
      %v2696 = vsel %vm359, %v2693, %v2695
      %v2697 = vrot.slane %v2149, 4
      %v2698 = vrot.slane %v2081, 4
      %v2699 = vsel %vm359, %v2697, %v2698
      %v2700 = vrot.slane %v2165, 4
      %v2701 = vsel %vm359, %v2698, %v2700
      %v2702 = vrot.slane %v2150, 4
      %v2703 = vrot.slane %v2084, 4
      %v2704 = vsel %vm359, %v2702, %v2703
      %v2705 = vrot.slane %v2166, 4
      %v2706 = vsel %vm359, %v2703, %v2705
      %v2707 = vrot.slane %v2151, 4
      %v2708 = vrot.slane %v2087, 4
      %v2709 = vsel %vm359, %v2707, %v2708
      %v2710 = vrot.slane %v2167, 4
      %v2711 = vsel %vm359, %v2708, %v2710
      %v2744 = vmax.f32 %v2600, %v2634
      %v2745 = vmax.f32 %v2601, %v2636
      %v2746 = vmax.f32 %v2602, %v2639
      %v2747 = vmax.f32 %v2603, %v2641
      %v2748 = vmax.f32 %v2604, %v2644
      %v2749 = vmax.f32 %v2605, %v2646
      %v2750 = vmax.f32 %v2606, %v2649
      %v2751 = vmax.f32 %v2607, %v2651
      %v2752 = vmax.f32 %v2608, %v2654
      %v2753 = vmax.f32 %v2609, %v2656
      %v2754 = vmax.f32 %v2610, %v2659
      %v2755 = vmax.f32 %v2611, %v2661
      %v2756 = vmax.f32 %v2612, %v2664
      %v2757 = vmax.f32 %v2613, %v2666
      %v2758 = vmax.f32 %v2614, %v2669
      %v2759 = vmax.f32 %v2615, %v2671
      %v2760 = vmax.f32 %v2616, %v2674
      %v2761 = vmax.f32 %v2617, %v2676
      %v2762 = vmax.f32 %v2618, %v2679
      %v2763 = vmax.f32 %v2619, %v2681
      %v2764 = vmax.f32 %v2620, %v2684
      %v2765 = vmax.f32 %v2621, %v2686
      %v2766 = vmax.f32 %v2622, %v2689
      %v2767 = vmax.f32 %v2623, %v2691
      %v2768 = vmax.f32 %v2624, %v2694
      %v2769 = vmax.f32 %v2625, %v2696
      %v2770 = vmax.f32 %v2626, %v2699
      %v2771 = vmax.f32 %v2627, %v2701
      %v2772 = vmax.f32 %v2628, %v2704
      %v2773 = vmax.f32 %v2629, %v2706
      %v2774 = vmax.f32 %v2630, %v2709
      %v2775 = vmax.f32 %v2631, %v2711
      %v2776 = vmax.f32 %v2744, -3.4028235e+38
      %v2777 = vmax.f32 %v2745, -3.4028235e+38
      %v2778 = vmax.f32 %v2744, %v2746
      %v2779 = vmax.f32 %v2745, %v2747
      %v2780 = vmax.f32 %v2746, %v2748
      %v2781 = vmax.f32 %v2747, %v2749
      %v2782 = vmax.f32 %v2748, %v2750
      %v2783 = vmax.f32 %v2749, %v2751
      %v2784 = vmax.f32 %v2750, %v2752
      %v2785 = vmax.f32 %v2751, %v2753
      %v2786 = vmax.f32 %v2752, %v2754
      %v2787 = vmax.f32 %v2753, %v2755
      %v2788 = vmax.f32 %v2754, %v2756
      %v2789 = vmax.f32 %v2755, %v2757
      %v2790 = vmax.f32 %v2756, %v2758
      %v2791 = vmax.f32 %v2757, %v2759
      %v2792 = vmax.f32 %v2758, %v2760
      %v2793 = vmax.f32 %v2759, %v2761
      %v2794 = vmax.f32 %v2760, %v2762
      %v2795 = vmax.f32 %v2761, %v2763
      %v2796 = vmax.f32 %v2762, %v2764
      %v2797 = vmax.f32 %v2763, %v2765
      %v2798 = vmax.f32 %v2764, %v2766
      %v2799 = vmax.f32 %v2765, %v2767
      %v2800 = vmax.f32 %v2766, %v2768
      %v2801 = vmax.f32 %v2767, %v2769
      %v2802 = vmax.f32 %v2768, %v2770
      %v2803 = vmax.f32 %v2769, %v2771
      %v2804 = vmax.f32 %v2770, %v2772
      %v2805 = vmax.f32 %v2771, %v2773
      %v2806 = vmax.f32 %v2776, %v2746
      %v2807 = vmax.f32 %v2777, %v2747
      %v2808 = vmax.f32 %v2778, %v2748
      %v2809 = vmax.f32 %v2779, %v2749
      %v2810 = vmax.f32 %v2780, %v2750
      %v2811 = vmax.f32 %v2781, %v2751
      %v2812 = vmax.f32 %v2782, %v2752
      %v2813 = vmax.f32 %v2783, %v2753
      %v2814 = vmax.f32 %v2784, %v2754
      %v2815 = vmax.f32 %v2785, %v2755
      %v2816 = vmax.f32 %v2786, %v2756
      %v2817 = vmax.f32 %v2787, %v2757
      %v2818 = vmax.f32 %v2788, %v2758
      %v2819 = vmax.f32 %v2789, %v2759
      %v2820 = vmax.f32 %v2790, %v2760
      %v2821 = vmax.f32 %v2791, %v2761
      %v2822 = vmax.f32 %v2792, %v2762
      %v2823 = vmax.f32 %v2793, %v2763
      %v2824 = vmax.f32 %v2794, %v2764
      %v2825 = vmax.f32 %v2795, %v2765
      %v2826 = vmax.f32 %v2796, %v2766
      %v2827 = vmax.f32 %v2797, %v2767
      %v2828 = vmax.f32 %v2798, %v2768
      %v2829 = vmax.f32 %v2799, %v2769
      %v2830 = vmax.f32 %v2800, %v2770
      %v2831 = vmax.f32 %v2801, %v2771
      %v2832 = vmax.f32 %v2802, %v2772
      %v2833 = vmax.f32 %v2803, %v2773
      %v2834 = vmax.f32 %v2804, %v2774
      %v2835 = vmax.f32 %v2805, %v2775
      %v2836 = vmax.f32 %v2806, %v2748
      %v2837 = vmax.f32 %v2807, %v2749
      %v2838 = vmax.f32 %v2808, %v2750
      %v2839 = vmax.f32 %v2809, %v2751
      %v2840 = vmax.f32 %v2810, %v2752
      %v2841 = vmax.f32 %v2811, %v2753
      %v2842 = vmax.f32 %v2812, %v2754
      %v2843 = vmax.f32 %v2813, %v2755
      %v2844 = vmax.f32 %v2814, %v2756
      %v2845 = vmax.f32 %v2815, %v2757
      %v2846 = vmax.f32 %v2816, %v2758
      %v2847 = vmax.f32 %v2817, %v2759
      %v2848 = vmax.f32 %v2818, %v2760
      %v2849 = vmax.f32 %v2819, %v2761
      %v2850 = vmax.f32 %v2820, %v2762
      %v2851 = vmax.f32 %v2821, %v2763
      %v2852 = vmax.f32 %v2822, %v2764
      %v2853 = vmax.f32 %v2823, %v2765
      %v2854 = vmax.f32 %v2824, %v2766
      %v2855 = vmax.f32 %v2825, %v2767
      %v2856 = vmax.f32 %v2826, %v2768
      %v2857 = vmax.f32 %v2827, %v2769
      %v2858 = vmax.f32 %v2828, %v2770
      %v2859 = vmax.f32 %v2829, %v2771
      %v2860 = vmax.f32 %v2830, %v2772
      %v2861 = vmax.f32 %v2831, %v2773
      %v2862 = vmax.f32 %v2832, %v2774
      %v2863 = vmax.f32 %v2833, %v2775
      %v2864 = vmax.f32 %v2834, -3.4028235e+38
      %v2865 = vmax.f32 %v2835, -3.4028235e+38
      %v2866 = vmax.f32 %v2836, %v2750
      %v2867 = vmax.f32 %v2837, %v2751
      %v2868 = vmax.f32 %v2838, %v2752
      %v2869 = vmax.f32 %v2839, %v2753
      %v2870 = vmax.f32 %v2840, %v2754
      %v2871 = vmax.f32 %v2841, %v2755
      %v2872 = vmax.f32 %v2842, %v2756
      %v2873 = vmax.f32 %v2843, %v2757
      %v2874 = vmax.f32 %v2844, %v2758
      %v2875 = vmax.f32 %v2845, %v2759
      %v2876 = vmax.f32 %v2846, %v2760
      %v2877 = vmax.f32 %v2847, %v2761
      %v2878 = vmax.f32 %v2848, %v2762
      %v2879 = vmax.f32 %v2849, %v2763
      %v2880 = vmax.f32 %v2850, %v2764
      %v2881 = vmax.f32 %v2851, %v2765
      %v2882 = vmax.f32 %v2852, %v2766
      %v2883 = vmax.f32 %v2853, %v2767
      %v2884 = vmax.f32 %v2854, %v2768
      %v2885 = vmax.f32 %v2855, %v2769
      %v2886 = vmax.f32 %v2856, %v2770
      %v2887 = vmax.f32 %v2857, %v2771
      %v2888 = vmax.f32 %v2858, %v2772
      %v2889 = vmax.f32 %v2859, %v2773
      %v2890 = vmax.f32 %v2860, %v2774
      %v2891 = vmax.f32 %v2861, %v2775
      %v2892 = vmax.f32 %v2862, -3.4028235e+38
      %v2893 = vmax.f32 %v2863, -3.4028235e+38
      %v2894 = vmax.f32 %v2864, -3.4028235e+38
      %v2895 = vmax.f32 %v2865, -3.4028235e+38
      %v2928 = vrot.slane %v2836, 6
      %v2929 = vrot.slane %v2837, 6
      %v2930 = vsel %vm1148, %v2928, %v2929
      %v2931 = vrot.slane %v2866, 6
      %v2932 = vrot.slane %v2867, 6
      %v2933 = vsel %vm1148, %v2931, %v2932
      %v2934 = vrot.slane %v2868, 6
      %v2935 = vrot.slane %v2869, 6
      %v2936 = vsel %vm1148, %v2934, %v2935
      %v2937 = vrot.slane %v2870, 6
      %v2938 = vrot.slane %v2871, 6
      %v2939 = vsel %vm1148, %v2937, %v2938
      %v2940 = vrot.slane %v2872, 6
      %v2941 = vrot.slane %v2873, 6
      %v2942 = vsel %vm1148, %v2940, %v2941
      %v2943 = vrot.slane %v2874, 6
      %v2944 = vrot.slane %v2875, 6
      %v2945 = vsel %vm1148, %v2943, %v2944
      %v2946 = vrot.slane %v2876, 6
      %v2947 = vrot.slane %v2877, 6
      %v2948 = vsel %vm1148, %v2946, %v2947
      %v2949 = vrot.slane %v2878, 6
      %v2950 = vrot.slane %v2879, 6
      %v2951 = vsel %vm1148, %v2949, %v2950
      %v2952 = vrot.slane %v2880, 6
      %v2953 = vrot.slane %v2881, 6
      %v2954 = vsel %vm1148, %v2952, %v2953
      %v2955 = vrot.slane %v2882, 6
      %v2956 = vrot.slane %v2883, 6
      %v2957 = vsel %vm1148, %v2955, %v2956
      %v2958 = vrot.slane %v2884, 6
      %v2959 = vrot.slane %v2885, 6
      %v2960 = vsel %vm1148, %v2958, %v2959
      %v2961 = vrot.slane %v2886, 6
      %v2962 = vrot.slane %v2887, 6
      %v2963 = vsel %vm1148, %v2961, %v2962
      %v2964 = vrot.slane %v2888, 6
      %v2965 = vrot.slane %v2889, 6
      %v2966 = vsel %vm1148, %v2964, %v2965
      %v2967 = vrot.slane %v2890, 6
      %v2968 = vrot.slane %v2891, 6
      %v2969 = vsel %vm1148, %v2967, %v2968
      %v2970 = vrot.slane %v2892, 6
      %v2971 = vrot.slane %v2893, 6
      %v2972 = vsel %vm1148, %v2970, %v2971
      %v2973 = vrot.slane %v2894, 6
      %v2974 = vrot.slane %v2895, 6
      %v2975 = vsel %vm1148, %v2973, %v2974
      %v3024 = vsel %vm1148, -3.4028235e+38, %v2928
      %v3025 = vsel %vm1148, -3.4028235e+38, %v2931
      %v3026 = vsel %vm1148, -3.4028235e+38, %v2934
      %v3027 = vsel %vm1148, -3.4028235e+38, %v2937
      %v3028 = vsel %vm1148, -3.4028235e+38, %v2940
      %v3029 = vsel %vm1148, -3.4028235e+38, %v2943
      %v3030 = vsel %vm1148, -3.4028235e+38, %v2946
      %v3031 = vsel %vm1148, -3.4028235e+38, %v2949
      %v3032 = vsel %vm1148, -3.4028235e+38, %v2952
      %v3033 = vsel %vm1148, -3.4028235e+38, %v2955
      %v3034 = vsel %vm1148, -3.4028235e+38, %v2958
      %v3035 = vsel %vm1148, -3.4028235e+38, %v2961
      %v3036 = vsel %vm1148, -3.4028235e+38, %v2964
      %v3037 = vsel %vm1148, -3.4028235e+38, %v2967
      %v3038 = vsel %vm1148, -3.4028235e+38, %v2970
      %v3039 = vsel %vm1148, -3.4028235e+38, %v2973
      %v3040 = vsel %vm1148, %v2929, -3.4028235e+38
      %v3041 = vsel %vm1148, %v2932, -3.4028235e+38
      %v3042 = vsel %vm1148, %v2935, -3.4028235e+38
      %v3043 = vsel %vm1148, %v2938, -3.4028235e+38
      %v3044 = vsel %vm1148, %v2941, -3.4028235e+38
      %v3045 = vsel %vm1148, %v2944, -3.4028235e+38
      %v3046 = vsel %vm1148, %v2947, -3.4028235e+38
      %v3047 = vsel %vm1148, %v2950, -3.4028235e+38
      %v3048 = vsel %vm1148, %v2953, -3.4028235e+38
      %v3049 = vsel %vm1148, %v2956, -3.4028235e+38
      %v3050 = vsel %vm1148, %v2959, -3.4028235e+38
      %v3051 = vsel %vm1148, %v2962, -3.4028235e+38
      %v3052 = vsel %vm1148, %v2965, -3.4028235e+38
      %v3053 = vsel %vm1148, %v2968, -3.4028235e+38
      %v3054 = vsel %vm1148, %v2971, -3.4028235e+38
      %v3055 = vsel %vm1148, %v2974, -3.4028235e+38
      %v3088 = vrot.slane %v3024, 1
      %v3089 = vrot.slane %v2930, 1
      %v3090 = vsel %vm1309, %v3088, %v3089
      %v3091 = vrot.slane %v3040, 1
      %v3092 = vsel %vm1309, %v3089, %v3091
      %v3093 = vrot.slane %v3025, 1
      %v3094 = vrot.slane %v2933, 1
      %v3095 = vsel %vm1309, %v3093, %v3094
      %v3096 = vrot.slane %v3041, 1
      %v3097 = vsel %vm1309, %v3094, %v3096
      %v3098 = vrot.slane %v3026, 1
      %v3099 = vrot.slane %v2936, 1
      %v3100 = vsel %vm1309, %v3098, %v3099
      %v3101 = vrot.slane %v3042, 1
      %v3102 = vsel %vm1309, %v3099, %v3101
      %v3103 = vrot.slane %v3027, 1
      %v3104 = vrot.slane %v2939, 1
      %v3105 = vsel %vm1309, %v3103, %v3104
      %v3106 = vrot.slane %v3043, 1
      %v3107 = vsel %vm1309, %v3104, %v3106
      %v3108 = vrot.slane %v3028, 1
      %v3109 = vrot.slane %v2942, 1
      %v3110 = vsel %vm1309, %v3108, %v3109
      %v3111 = vrot.slane %v3044, 1
      %v3112 = vsel %vm1309, %v3109, %v3111
      %v3113 = vrot.slane %v3029, 1
      %v3114 = vrot.slane %v2945, 1
      %v3115 = vsel %vm1309, %v3113, %v3114
      %v3116 = vrot.slane %v3045, 1
      %v3117 = vsel %vm1309, %v3114, %v3116
      %v3118 = vrot.slane %v3030, 1
      %v3119 = vrot.slane %v2948, 1
      %v3120 = vsel %vm1309, %v3118, %v3119
      %v3121 = vrot.slane %v3046, 1
      %v3122 = vsel %vm1309, %v3119, %v3121
      %v3123 = vrot.slane %v3031, 1
      %v3124 = vrot.slane %v2951, 1
      %v3125 = vsel %vm1309, %v3123, %v3124
      %v3126 = vrot.slane %v3047, 1
      %v3127 = vsel %vm1309, %v3124, %v3126
      %v3128 = vrot.slane %v3032, 1
      %v3129 = vrot.slane %v2954, 1
      %v3130 = vsel %vm1309, %v3128, %v3129
      %v3131 = vrot.slane %v3048, 1
      %v3132 = vsel %vm1309, %v3129, %v3131
      %v3133 = vrot.slane %v3033, 1
      %v3134 = vrot.slane %v2957, 1
      %v3135 = vsel %vm1309, %v3133, %v3134
      %v3136 = vrot.slane %v3049, 1
      %v3137 = vsel %vm1309, %v3134, %v3136
      %v3138 = vrot.slane %v3034, 1
      %v3139 = vrot.slane %v2960, 1
      %v3140 = vsel %vm1309, %v3138, %v3139
      %v3141 = vrot.slane %v3050, 1
      %v3142 = vsel %vm1309, %v3139, %v3141
      %v3143 = vrot.slane %v3035, 1
      %v3144 = vrot.slane %v2963, 1
      %v3145 = vsel %vm1309, %v3143, %v3144
      %v3146 = vrot.slane %v3051, 1
      %v3147 = vsel %vm1309, %v3144, %v3146
      %v3148 = vrot.slane %v3036, 1
      %v3149 = vrot.slane %v2966, 1
      %v3150 = vsel %vm1309, %v3148, %v3149
      %v3151 = vrot.slane %v3052, 1
      %v3152 = vsel %vm1309, %v3149, %v3151
      %v3153 = vrot.slane %v3037, 1
      %v3154 = vrot.slane %v2969, 1
      %v3155 = vsel %vm1309, %v3153, %v3154
      %v3156 = vrot.slane %v3053, 1
      %v3157 = vsel %vm1309, %v3154, %v3156
      %v3158 = vrot.slane %v3038, 1
      %v3159 = vrot.slane %v2972, 1
      %v3160 = vsel %vm1309, %v3158, %v3159
      %v3161 = vrot.slane %v3054, 1
      %v3162 = vsel %vm1309, %v3159, %v3161
      %v3163 = vrot.slane %v3039, 1
      %v3164 = vrot.slane %v2975, 1
      %v3165 = vsel %vm1309, %v3163, %v3164
      %v3166 = vrot.slane %v3055, 1
      %v3167 = vsel %vm1309, %v3164, %v3166
      %v3200 = vmax.f32 %v3024, %v3090
      %v3201 = vmax.f32 %v2930, %v3092
      %v3202 = vmax.f32 %v3025, %v3095
      %v3203 = vmax.f32 %v2933, %v3097
      %v3204 = vmax.f32 %v3026, %v3100
      %v3205 = vmax.f32 %v2936, %v3102
      %v3206 = vmax.f32 %v3027, %v3105
      %v3207 = vmax.f32 %v2939, %v3107
      %v3208 = vmax.f32 %v3028, %v3110
      %v3209 = vmax.f32 %v2942, %v3112
      %v3210 = vmax.f32 %v3029, %v3115
      %v3211 = vmax.f32 %v2945, %v3117
      %v3212 = vmax.f32 %v3030, %v3120
      %v3213 = vmax.f32 %v2948, %v3122
      %v3214 = vmax.f32 %v3031, %v3125
      %v3215 = vmax.f32 %v2951, %v3127
      %v3216 = vmax.f32 %v3032, %v3130
      %v3217 = vmax.f32 %v2954, %v3132
      %v3218 = vmax.f32 %v3033, %v3135
      %v3219 = vmax.f32 %v2957, %v3137
      %v3220 = vmax.f32 %v3034, %v3140
      %v3221 = vmax.f32 %v2960, %v3142
      %v3222 = vmax.f32 %v3035, %v3145
      %v3223 = vmax.f32 %v2963, %v3147
      %v3224 = vmax.f32 %v3036, %v3150
      %v3225 = vmax.f32 %v2966, %v3152
      %v3226 = vmax.f32 %v3037, %v3155
      %v3227 = vmax.f32 %v2969, %v3157
      %v3228 = vmax.f32 %v3038, %v3160
      %v3229 = vmax.f32 %v2972, %v3162
      %v3230 = vmax.f32 %v3039, %v3165
      %v3231 = vmax.f32 %v2975, %v3167
      %v3232 = vrot.slane %v3024, 2
      %v3233 = vrot.slane %v2930, 2
      %v3234 = vsel %vm1454, %v3232, %v3233
      %v3235 = vrot.slane %v3040, 2
      %v3236 = vsel %vm1454, %v3233, %v3235
      %v3237 = vrot.slane %v3025, 2
      %v3238 = vrot.slane %v2933, 2
      %v3239 = vsel %vm1454, %v3237, %v3238
      %v3240 = vrot.slane %v3041, 2
      %v3241 = vsel %vm1454, %v3238, %v3240
      %v3242 = vrot.slane %v3026, 2
      %v3243 = vrot.slane %v2936, 2
      %v3244 = vsel %vm1454, %v3242, %v3243
      %v3245 = vrot.slane %v3042, 2
      %v3246 = vsel %vm1454, %v3243, %v3245
      %v3247 = vrot.slane %v3027, 2
      %v3248 = vrot.slane %v2939, 2
      %v3249 = vsel %vm1454, %v3247, %v3248
      %v3250 = vrot.slane %v3043, 2
      %v3251 = vsel %vm1454, %v3248, %v3250
      %v3252 = vrot.slane %v3028, 2
      %v3253 = vrot.slane %v2942, 2
      %v3254 = vsel %vm1454, %v3252, %v3253
      %v3255 = vrot.slane %v3044, 2
      %v3256 = vsel %vm1454, %v3253, %v3255
      %v3257 = vrot.slane %v3029, 2
      %v3258 = vrot.slane %v2945, 2
      %v3259 = vsel %vm1454, %v3257, %v3258
      %v3260 = vrot.slane %v3045, 2
      %v3261 = vsel %vm1454, %v3258, %v3260
      %v3262 = vrot.slane %v3030, 2
      %v3263 = vrot.slane %v2948, 2
      %v3264 = vsel %vm1454, %v3262, %v3263
      %v3265 = vrot.slane %v3046, 2
      %v3266 = vsel %vm1454, %v3263, %v3265
      %v3267 = vrot.slane %v3031, 2
      %v3268 = vrot.slane %v2951, 2
      %v3269 = vsel %vm1454, %v3267, %v3268
      %v3270 = vrot.slane %v3047, 2
      %v3271 = vsel %vm1454, %v3268, %v3270
      %v3272 = vrot.slane %v3032, 2
      %v3273 = vrot.slane %v2954, 2
      %v3274 = vsel %vm1454, %v3272, %v3273
      %v3275 = vrot.slane %v3048, 2
      %v3276 = vsel %vm1454, %v3273, %v3275
      %v3277 = vrot.slane %v3033, 2
      %v3278 = vrot.slane %v2957, 2
      %v3279 = vsel %vm1454, %v3277, %v3278
      %v3280 = vrot.slane %v3049, 2
      %v3281 = vsel %vm1454, %v3278, %v3280
      %v3282 = vrot.slane %v3034, 2
      %v3283 = vrot.slane %v2960, 2
      %v3284 = vsel %vm1454, %v3282, %v3283
      %v3285 = vrot.slane %v3050, 2
      %v3286 = vsel %vm1454, %v3283, %v3285
      %v3287 = vrot.slane %v3035, 2
      %v3288 = vrot.slane %v2963, 2
      %v3289 = vsel %vm1454, %v3287, %v3288
      %v3290 = vrot.slane %v3051, 2
      %v3291 = vsel %vm1454, %v3288, %v3290
      %v3292 = vrot.slane %v3036, 2
      %v3293 = vrot.slane %v2966, 2
      %v3294 = vsel %vm1454, %v3292, %v3293
      %v3295 = vrot.slane %v3052, 2
      %v3296 = vsel %vm1454, %v3293, %v3295
      %v3297 = vrot.slane %v3037, 2
      %v3298 = vrot.slane %v2969, 2
      %v3299 = vsel %vm1454, %v3297, %v3298
      %v3300 = vrot.slane %v3053, 2
      %v3301 = vsel %vm1454, %v3298, %v3300
      %v3302 = vrot.slane %v3038, 2
      %v3303 = vrot.slane %v2972, 2
      %v3304 = vsel %vm1454, %v3302, %v3303
      %v3305 = vrot.slane %v3054, 2
      %v3306 = vsel %vm1454, %v3303, %v3305
      %v3307 = vrot.slane %v3039, 2
      %v3308 = vrot.slane %v2975, 2
      %v3309 = vsel %vm1454, %v3307, %v3308
      %v3310 = vrot.slane %v3055, 2
      %v3311 = vsel %vm1454, %v3308, %v3310
      %v3344 = vmax.f32 %v3200, %v3234
      %v3345 = vmax.f32 %v3201, %v3236
      %v3346 = vmax.f32 %v3202, %v3239
      %v3347 = vmax.f32 %v3203, %v3241
      %v3348 = vmax.f32 %v3204, %v3244
      %v3349 = vmax.f32 %v3205, %v3246
      %v3350 = vmax.f32 %v3206, %v3249
      %v3351 = vmax.f32 %v3207, %v3251
      %v3352 = vmax.f32 %v3208, %v3254
      %v3353 = vmax.f32 %v3209, %v3256
      %v3354 = vmax.f32 %v3210, %v3259
      %v3355 = vmax.f32 %v3211, %v3261
      %v3356 = vmax.f32 %v3212, %v3264
      %v3357 = vmax.f32 %v3213, %v3266
      %v3358 = vmax.f32 %v3214, %v3269
      %v3359 = vmax.f32 %v3215, %v3271
      %v3360 = vmax.f32 %v3216, %v3274
      %v3361 = vmax.f32 %v3217, %v3276
      %v3362 = vmax.f32 %v3218, %v3279
      %v3363 = vmax.f32 %v3219, %v3281
      %v3364 = vmax.f32 %v3220, %v3284
      %v3365 = vmax.f32 %v3221, %v3286
      %v3366 = vmax.f32 %v3222, %v3289
      %v3367 = vmax.f32 %v3223, %v3291
      %v3368 = vmax.f32 %v3224, %v3294
      %v3369 = vmax.f32 %v3225, %v3296
      %v3370 = vmax.f32 %v3226, %v3299
      %v3371 = vmax.f32 %v3227, %v3301
      %v3372 = vmax.f32 %v3228, %v3304
      %v3373 = vmax.f32 %v3229, %v3306
      %v3374 = vmax.f32 %v3230, %v3309
      %v3375 = vmax.f32 %v3231, %v3311
      %v3376 = vrot.slane %v3024, 3
      %v3377 = vrot.slane %v2930, 3
      %v3378 = vsel %vm1599, %v3376, %v3377
      %v3379 = vrot.slane %v3040, 3
      %v3380 = vsel %vm1599, %v3377, %v3379
      %v3381 = vrot.slane %v3025, 3
      %v3382 = vrot.slane %v2933, 3
      %v3383 = vsel %vm1599, %v3381, %v3382
      %v3384 = vrot.slane %v3041, 3
      %v3385 = vsel %vm1599, %v3382, %v3384
      %v3386 = vrot.slane %v3026, 3
      %v3387 = vrot.slane %v2936, 3
      %v3388 = vsel %vm1599, %v3386, %v3387
      %v3389 = vrot.slane %v3042, 3
      %v3390 = vsel %vm1599, %v3387, %v3389
      %v3391 = vrot.slane %v3027, 3
      %v3392 = vrot.slane %v2939, 3
      %v3393 = vsel %vm1599, %v3391, %v3392
      %v3394 = vrot.slane %v3043, 3
      %v3395 = vsel %vm1599, %v3392, %v3394
      %v3396 = vrot.slane %v3028, 3
      %v3397 = vrot.slane %v2942, 3
      %v3398 = vsel %vm1599, %v3396, %v3397
      %v3399 = vrot.slane %v3044, 3
      %v3400 = vsel %vm1599, %v3397, %v3399
      %v3401 = vrot.slane %v3029, 3
      %v3402 = vrot.slane %v2945, 3
      %v3403 = vsel %vm1599, %v3401, %v3402
      %v3404 = vrot.slane %v3045, 3
      %v3405 = vsel %vm1599, %v3402, %v3404
      %v3406 = vrot.slane %v3030, 3
      %v3407 = vrot.slane %v2948, 3
      %v3408 = vsel %vm1599, %v3406, %v3407
      %v3409 = vrot.slane %v3046, 3
      %v3410 = vsel %vm1599, %v3407, %v3409
      %v3411 = vrot.slane %v3031, 3
      %v3412 = vrot.slane %v2951, 3
      %v3413 = vsel %vm1599, %v3411, %v3412
      %v3414 = vrot.slane %v3047, 3
      %v3415 = vsel %vm1599, %v3412, %v3414
      %v3416 = vrot.slane %v3032, 3
      %v3417 = vrot.slane %v2954, 3
      %v3418 = vsel %vm1599, %v3416, %v3417
      %v3419 = vrot.slane %v3048, 3
      %v3420 = vsel %vm1599, %v3417, %v3419
      %v3421 = vrot.slane %v3033, 3
      %v3422 = vrot.slane %v2957, 3
      %v3423 = vsel %vm1599, %v3421, %v3422
      %v3424 = vrot.slane %v3049, 3
      %v3425 = vsel %vm1599, %v3422, %v3424
      %v3426 = vrot.slane %v3034, 3
      %v3427 = vrot.slane %v2960, 3
      %v3428 = vsel %vm1599, %v3426, %v3427
      %v3429 = vrot.slane %v3050, 3
      %v3430 = vsel %vm1599, %v3427, %v3429
      %v3431 = vrot.slane %v3035, 3
      %v3432 = vrot.slane %v2963, 3
      %v3433 = vsel %vm1599, %v3431, %v3432
      %v3434 = vrot.slane %v3051, 3
      %v3435 = vsel %vm1599, %v3432, %v3434
      %v3436 = vrot.slane %v3036, 3
      %v3437 = vrot.slane %v2966, 3
      %v3438 = vsel %vm1599, %v3436, %v3437
      %v3439 = vrot.slane %v3052, 3
      %v3440 = vsel %vm1599, %v3437, %v3439
      %v3441 = vrot.slane %v3037, 3
      %v3442 = vrot.slane %v2969, 3
      %v3443 = vsel %vm1599, %v3441, %v3442
      %v3444 = vrot.slane %v3053, 3
      %v3445 = vsel %vm1599, %v3442, %v3444
      %v3446 = vrot.slane %v3038, 3
      %v3447 = vrot.slane %v2972, 3
      %v3448 = vsel %vm1599, %v3446, %v3447
      %v3449 = vrot.slane %v3054, 3
      %v3450 = vsel %vm1599, %v3447, %v3449
      %v3451 = vrot.slane %v3039, 3
      %v3452 = vrot.slane %v2975, 3
      %v3453 = vsel %vm1599, %v3451, %v3452
      %v3454 = vrot.slane %v3055, 3
      %v3455 = vsel %vm1599, %v3452, %v3454
      %v3488 = vmax.f32 %v3344, %v3378
      %v3489 = vmax.f32 %v3345, %v3380
      %v3490 = vmax.f32 %v3346, %v3383
      %v3491 = vmax.f32 %v3347, %v3385
      %v3492 = vmax.f32 %v3348, %v3388
      %v3493 = vmax.f32 %v3349, %v3390
      %v3494 = vmax.f32 %v3350, %v3393
      %v3495 = vmax.f32 %v3351, %v3395
      %v3496 = vmax.f32 %v3352, %v3398
      %v3497 = vmax.f32 %v3353, %v3400
      %v3498 = vmax.f32 %v3354, %v3403
      %v3499 = vmax.f32 %v3355, %v3405
      %v3500 = vmax.f32 %v3356, %v3408
      %v3501 = vmax.f32 %v3357, %v3410
      %v3502 = vmax.f32 %v3358, %v3413
      %v3503 = vmax.f32 %v3359, %v3415
      %v3504 = vmax.f32 %v3360, %v3418
      %v3505 = vmax.f32 %v3361, %v3420
      %v3506 = vmax.f32 %v3362, %v3423
      %v3507 = vmax.f32 %v3363, %v3425
      %v3508 = vmax.f32 %v3364, %v3428
      %v3509 = vmax.f32 %v3365, %v3430
      %v3510 = vmax.f32 %v3366, %v3433
      %v3511 = vmax.f32 %v3367, %v3435
      %v3512 = vmax.f32 %v3368, %v3438
      %v3513 = vmax.f32 %v3369, %v3440
      %v3514 = vmax.f32 %v3370, %v3443
      %v3515 = vmax.f32 %v3371, %v3445
      %v3516 = vmax.f32 %v3372, %v3448
      %v3517 = vmax.f32 %v3373, %v3450
      %v3518 = vmax.f32 %v3374, %v3453
      %v3519 = vmax.f32 %v3375, %v3455
      %v3520 = vrot.slane %v3024, 4
      %v3521 = vrot.slane %v2930, 4
      %v3522 = vsel %vm359, %v3520, %v3521
      %v3523 = vrot.slane %v3040, 4
      %v3524 = vsel %vm359, %v3521, %v3523
      %v3525 = vrot.slane %v3025, 4
      %v3526 = vrot.slane %v2933, 4
      %v3527 = vsel %vm359, %v3525, %v3526
      %v3528 = vrot.slane %v3041, 4
      %v3529 = vsel %vm359, %v3526, %v3528
      %v3530 = vrot.slane %v3026, 4
      %v3531 = vrot.slane %v2936, 4
      %v3532 = vsel %vm359, %v3530, %v3531
      %v3533 = vrot.slane %v3042, 4
      %v3534 = vsel %vm359, %v3531, %v3533
      %v3535 = vrot.slane %v3027, 4
      %v3536 = vrot.slane %v2939, 4
      %v3537 = vsel %vm359, %v3535, %v3536
      %v3538 = vrot.slane %v3043, 4
      %v3539 = vsel %vm359, %v3536, %v3538
      %v3540 = vrot.slane %v3028, 4
      %v3541 = vrot.slane %v2942, 4
      %v3542 = vsel %vm359, %v3540, %v3541
      %v3543 = vrot.slane %v3044, 4
      %v3544 = vsel %vm359, %v3541, %v3543
      %v3545 = vrot.slane %v3029, 4
      %v3546 = vrot.slane %v2945, 4
      %v3547 = vsel %vm359, %v3545, %v3546
      %v3548 = vrot.slane %v3045, 4
      %v3549 = vsel %vm359, %v3546, %v3548
      %v3550 = vrot.slane %v3030, 4
      %v3551 = vrot.slane %v2948, 4
      %v3552 = vsel %vm359, %v3550, %v3551
      %v3553 = vrot.slane %v3046, 4
      %v3554 = vsel %vm359, %v3551, %v3553
      %v3555 = vrot.slane %v3031, 4
      %v3556 = vrot.slane %v2951, 4
      %v3557 = vsel %vm359, %v3555, %v3556
      %v3558 = vrot.slane %v3047, 4
      %v3559 = vsel %vm359, %v3556, %v3558
      %v3560 = vrot.slane %v3032, 4
      %v3561 = vrot.slane %v2954, 4
      %v3562 = vsel %vm359, %v3560, %v3561
      %v3563 = vrot.slane %v3048, 4
      %v3564 = vsel %vm359, %v3561, %v3563
      %v3565 = vrot.slane %v3033, 4
      %v3566 = vrot.slane %v2957, 4
      %v3567 = vsel %vm359, %v3565, %v3566
      %v3568 = vrot.slane %v3049, 4
      %v3569 = vsel %vm359, %v3566, %v3568
      %v3570 = vrot.slane %v3034, 4
      %v3571 = vrot.slane %v2960, 4
      %v3572 = vsel %vm359, %v3570, %v3571
      %v3573 = vrot.slane %v3050, 4
      %v3574 = vsel %vm359, %v3571, %v3573
      %v3575 = vrot.slane %v3035, 4
      %v3576 = vrot.slane %v2963, 4
      %v3577 = vsel %vm359, %v3575, %v3576
      %v3578 = vrot.slane %v3051, 4
      %v3579 = vsel %vm359, %v3576, %v3578
      %v3580 = vrot.slane %v3036, 4
      %v3581 = vrot.slane %v2966, 4
      %v3582 = vsel %vm359, %v3580, %v3581
      %v3583 = vrot.slane %v3052, 4
      %v3584 = vsel %vm359, %v3581, %v3583
      %v3585 = vrot.slane %v3037, 4
      %v3586 = vrot.slane %v2969, 4
      %v3587 = vsel %vm359, %v3585, %v3586
      %v3588 = vrot.slane %v3053, 4
      %v3589 = vsel %vm359, %v3586, %v3588
      %v3590 = vrot.slane %v3038, 4
      %v3591 = vrot.slane %v2972, 4
      %v3592 = vsel %vm359, %v3590, %v3591
      %v3593 = vrot.slane %v3054, 4
      %v3594 = vsel %vm359, %v3591, %v3593
      %v3595 = vrot.slane %v3039, 4
      %v3596 = vrot.slane %v2975, 4
      %v3597 = vsel %vm359, %v3595, %v3596
      %v3598 = vrot.slane %v3055, 4
      %v3599 = vsel %vm359, %v3596, %v3598
      %v3632 = vmax.f32 %v3488, %v3522
      %v3633 = vmax.f32 %v3489, %v3524
      %v3634 = vmax.f32 %v3490, %v3527
      %v3635 = vmax.f32 %v3491, %v3529
      %v3636 = vmax.f32 %v3492, %v3532
      %v3637 = vmax.f32 %v3493, %v3534
      %v3638 = vmax.f32 %v3494, %v3537
      %v3639 = vmax.f32 %v3495, %v3539
      %v3640 = vmax.f32 %v3496, %v3542
      %v3641 = vmax.f32 %v3497, %v3544
      %v3642 = vmax.f32 %v3498, %v3547
      %v3643 = vmax.f32 %v3499, %v3549
      %v3644 = vmax.f32 %v3500, %v3552
      %v3645 = vmax.f32 %v3501, %v3554
      %v3646 = vmax.f32 %v3502, %v3557
      %v3647 = vmax.f32 %v3503, %v3559
      %v3648 = vmax.f32 %v3504, %v3562
      %v3649 = vmax.f32 %v3505, %v3564
      %v3650 = vmax.f32 %v3506, %v3567
      %v3651 = vmax.f32 %v3507, %v3569
      %v3652 = vmax.f32 %v3508, %v3572
      %v3653 = vmax.f32 %v3509, %v3574
      %v3654 = vmax.f32 %v3510, %v3577
      %v3655 = vmax.f32 %v3511, %v3579
      %v3656 = vmax.f32 %v3512, %v3582
      %v3657 = vmax.f32 %v3513, %v3584
      %v3658 = vmax.f32 %v3514, %v3587
      %v3659 = vmax.f32 %v3515, %v3589
      %v3660 = vmax.f32 %v3516, %v3592
      %v3661 = vmax.f32 %v3517, %v3594
      %v3662 = vmax.f32 %v3518, %v3597
      %v3663 = vmax.f32 %v3519, %v3599
      %v3664 = vmax.f32 %v3632, -3.4028235e+38
      %v3665 = vmax.f32 %v3633, -3.4028235e+38
      %v3666 = vmax.f32 %v3632, %v3634
      %v3667 = vmax.f32 %v3633, %v3635
      %v3668 = vmax.f32 %v3634, %v3636
      %v3669 = vmax.f32 %v3635, %v3637
      %v3670 = vmax.f32 %v3636, %v3638
      %v3671 = vmax.f32 %v3637, %v3639
      %v3672 = vmax.f32 %v3638, %v3640
      %v3673 = vmax.f32 %v3639, %v3641
      %v3674 = vmax.f32 %v3640, %v3642
      %v3675 = vmax.f32 %v3641, %v3643
      %v3676 = vmax.f32 %v3642, %v3644
      %v3677 = vmax.f32 %v3643, %v3645
      %v3678 = vmax.f32 %v3644, %v3646
      %v3679 = vmax.f32 %v3645, %v3647
      %v3680 = vmax.f32 %v3646, %v3648
      %v3681 = vmax.f32 %v3647, %v3649
      %v3682 = vmax.f32 %v3648, %v3650
      %v3683 = vmax.f32 %v3649, %v3651
      %v3684 = vmax.f32 %v3650, %v3652
      %v3685 = vmax.f32 %v3651, %v3653
      %v3686 = vmax.f32 %v3652, %v3654
      %v3687 = vmax.f32 %v3653, %v3655
      %v3688 = vmax.f32 %v3654, %v3656
      %v3689 = vmax.f32 %v3655, %v3657
      %v3690 = vmax.f32 %v3656, %v3658
      %v3691 = vmax.f32 %v3657, %v3659
      %v3692 = vmax.f32 %v3658, %v3660
      %v3693 = vmax.f32 %v3659, %v3661
      %v3694 = vmax.f32 %v3664, %v3634
      %v3695 = vmax.f32 %v3665, %v3635
      %v3696 = vmax.f32 %v3666, %v3636
      %v3697 = vmax.f32 %v3667, %v3637
      %v3698 = vmax.f32 %v3668, %v3638
      %v3699 = vmax.f32 %v3669, %v3639
      %v3700 = vmax.f32 %v3670, %v3640
      %v3701 = vmax.f32 %v3671, %v3641
      %v3702 = vmax.f32 %v3672, %v3642
      %v3703 = vmax.f32 %v3673, %v3643
      %v3704 = vmax.f32 %v3674, %v3644
      %v3705 = vmax.f32 %v3675, %v3645
      %v3706 = vmax.f32 %v3676, %v3646
      %v3707 = vmax.f32 %v3677, %v3647
      %v3708 = vmax.f32 %v3678, %v3648
      %v3709 = vmax.f32 %v3679, %v3649
      %v3710 = vmax.f32 %v3680, %v3650
      %v3711 = vmax.f32 %v3681, %v3651
      %v3712 = vmax.f32 %v3682, %v3652
      %v3713 = vmax.f32 %v3683, %v3653
      %v3714 = vmax.f32 %v3684, %v3654
      %v3715 = vmax.f32 %v3685, %v3655
      %v3716 = vmax.f32 %v3686, %v3656
      %v3717 = vmax.f32 %v3687, %v3657
      %v3718 = vmax.f32 %v3688, %v3658
      %v3719 = vmax.f32 %v3689, %v3659
      %v3720 = vmax.f32 %v3690, %v3660
      %v3721 = vmax.f32 %v3691, %v3661
      %v3722 = vmax.f32 %v3692, %v3662
      %v3723 = vmax.f32 %v3693, %v3663
      %v3724 = vmax.f32 %v3694, %v3636
      %v3725 = vmax.f32 %v3695, %v3637
      %v3726 = vmax.f32 %v3696, %v3638
      %v3727 = vmax.f32 %v3697, %v3639
      %v3728 = vmax.f32 %v3698, %v3640
      %v3729 = vmax.f32 %v3699, %v3641
      %v3730 = vmax.f32 %v3700, %v3642
      %v3731 = vmax.f32 %v3701, %v3643
      %v3732 = vmax.f32 %v3702, %v3644
      %v3733 = vmax.f32 %v3703, %v3645
      %v3734 = vmax.f32 %v3704, %v3646
      %v3735 = vmax.f32 %v3705, %v3647
      %v3736 = vmax.f32 %v3706, %v3648
      %v3737 = vmax.f32 %v3707, %v3649
      %v3738 = vmax.f32 %v3708, %v3650
      %v3739 = vmax.f32 %v3709, %v3651
      %v3740 = vmax.f32 %v3710, %v3652
      %v3741 = vmax.f32 %v3711, %v3653
      %v3742 = vmax.f32 %v3712, %v3654
      %v3743 = vmax.f32 %v3713, %v3655
      %v3744 = vmax.f32 %v3714, %v3656
      %v3745 = vmax.f32 %v3715, %v3657
      %v3746 = vmax.f32 %v3716, %v3658
      %v3747 = vmax.f32 %v3717, %v3659
      %v3748 = vmax.f32 %v3718, %v3660
      %v3749 = vmax.f32 %v3719, %v3661
      %v3750 = vmax.f32 %v3720, %v3662
      %v3751 = vmax.f32 %v3721, %v3663
      %v3752 = vmax.f32 %v3722, -3.4028235e+38
      %v3753 = vmax.f32 %v3723, -3.4028235e+38
      %v3754 = vmax.f32 %v3724, %v3638
      %v3755 = vmax.f32 %v3725, %v3639
      %v3756 = vmax.f32 %v3726, %v3640
      %v3757 = vmax.f32 %v3727, %v3641
      %v3758 = vmax.f32 %v3728, %v3642
      %v3759 = vmax.f32 %v3729, %v3643
      %v3760 = vmax.f32 %v3730, %v3644
      %v3761 = vmax.f32 %v3731, %v3645
      %v3762 = vmax.f32 %v3732, %v3646
      %v3763 = vmax.f32 %v3733, %v3647
      %v3764 = vmax.f32 %v3734, %v3648
      %v3765 = vmax.f32 %v3735, %v3649
      %v3766 = vmax.f32 %v3736, %v3650
      %v3767 = vmax.f32 %v3737, %v3651
      %v3768 = vmax.f32 %v3738, %v3652
      %v3769 = vmax.f32 %v3739, %v3653
      %v3770 = vmax.f32 %v3740, %v3654
      %v3771 = vmax.f32 %v3741, %v3655
      %v3772 = vmax.f32 %v3742, %v3656
      %v3773 = vmax.f32 %v3743, %v3657
      %v3774 = vmax.f32 %v3744, %v3658
      %v3775 = vmax.f32 %v3745, %v3659
      %v3776 = vmax.f32 %v3746, %v3660
      %v3777 = vmax.f32 %v3747, %v3661
      %v3778 = vmax.f32 %v3748, %v3662
      %v3779 = vmax.f32 %v3749, %v3663
      %v3780 = vmax.f32 %v3750, -3.4028235e+38
      %v3781 = vmax.f32 %v3751, -3.4028235e+38
      %v3782 = vmax.f32 %v3752, -3.4028235e+38
      %v3783 = vmax.f32 %v3753, -3.4028235e+38
      %v3784 = vld [vmem:[%s3] sm:$0x3]
      %s3785 = scalar_lea.vmem %s3, 2
      %v3786 = vld [vmem:[%s3785] sm:$0x3]
      %vm3787 = vcmask 15360
      %v3788 = vsel %vm3787, %v1948, 0
      %v3790 = vsel %vm3787, %v1949, 0
      %v3792 = vsel %vm3787, %v1978, 0
      %v3794 = vsel %vm3787, %v1979, 0
      %v3796 = vsel %vm3787, %v1980, 0
      %v3798 = vsel %vm3787, %v1981, 0
      %v3800 = vsel %vm3787, %v1982, 0
      %v3802 = vsel %vm3787, %v1983, 0
      %v3804 = vsel %vm3787, %v1984, 0
      %v3806 = vsel %vm3787, %v1985, 0
      %v3808 = vsel %vm3787, %v1986, 0
      %v3810 = vsel %vm3787, %v1987, 0
      %v3812 = vsel %vm3787, %v1988, 0
      %v3814 = vsel %vm3787, %v1989, 0
      %v3816 = vsel %vm3787, %v1990, 0
      %v3818 = vsel %vm3787, %v1991, 0
      %v3820 = vsel %vm3787, %v1992, 0
      %v3822 = vsel %vm3787, %v1993, 0
      %v3824 = vsel %vm3787, %v1994, 0
      %v3826 = vsel %vm3787, %v1995, 0
      %v3828 = vsel %vm3787, %v1996, 0
      %v3830 = vsel %vm3787, %v1997, 0
      %v3832 = vsel %vm3787, %v1998, 0
      %v3834 = vsel %vm3787, %v1999, 0
      %v3836 = vsel %vm3787, %v2000, 0
      %v3838 = vsel %vm3787, %v2001, 0
      %v3840 = vsel %vm3787, %v2002, 0
      %v3842 = vsel %vm3787, %v2003, 0
      %v3844 = vsel %vm3787, %v2004, 0
      %v3846 = vsel %vm3787, %v2005, 0
      %v3848 = vsel %vm3787, %v2006, 0
      %v3850 = vsel %vm3787, %v2007, 0
      %v3853 = vsel %vm1148, %v3786, 0
      %3855 = vmatpush.msra.mxu0 0.0
      %3856 = vmatpush.msra.mxu0 0.0
      %3857 = vmatpush.msra.mxu0 0.0
      %3858 = vmatpush.msra.mxu0 0.0
      %3859 = vmatpush.msra.mxu0 0.0
      %3860 = vmatpush.msra.mxu0 0.0
      %3861 = vmatpush.msra.mxu0 0.0
      %3862 = vmatpush.msra.mxu0 0.0
      %3863 = vmatpush.msra.mxu0 0.0
      %3864 = vmatpush.msra.mxu0 0.0
      %3865 = vmatpush.msra.mxu0 0.0
      %3866 = vmatpush.msra.mxu0 0.0
      %3867 = vmatpush.msra.mxu0 0.0
      %3868 = vmatpush.msra.mxu0 0.0
      %3869 = vmatpush.msra.mxu0 0.0
      %3870 = vmatpush.msra.mxu0 %v3853
      %3871 = vmatmul.f32.gmra.mxu0 %v3788
      %v3872 = vpop.f32.mrf.mxu0
      %v3873 = vadd.f32 0.0, %v3872
      %3874 = vmatmul.f32.gmra.mxu0 %v3790
      %v3875 = vpop.f32.mrf.mxu0
      %v3876 = vadd.f32 0.0, %v3875
      %3877 = vmatmul.f32.gmra.mxu0 %v3792
      %v3878 = vpop.f32.mrf.mxu0
      %v3879 = vadd.f32 0.0, %v3878
      %3880 = vmatmul.f32.gmra.mxu0 %v3794
      %v3881 = vpop.f32.mrf.mxu0
      %v3882 = vadd.f32 0.0, %v3881
      %3883 = vmatmul.f32.gmra.mxu0 %v3796
      %v3884 = vpop.f32.mrf.mxu0
      %v3885 = vadd.f32 0.0, %v3884
      %3886 = vmatmul.f32.gmra.mxu0 %v3798
      %v3887 = vpop.f32.mrf.mxu0
      %v3888 = vadd.f32 0.0, %v3887
      %3889 = vmatmul.f32.gmra.mxu0 %v3800
      %v3890 = vpop.f32.mrf.mxu0
      %v3891 = vadd.f32 0.0, %v3890
      %3892 = vmatmul.f32.gmra.mxu0 %v3802
      %v3893 = vpop.f32.mrf.mxu0
      %v3894 = vadd.f32 0.0, %v3893
      %3895 = vmatmul.f32.gmra.mxu0 %v3804
      %v3896 = vpop.f32.mrf.mxu0
      %v3897 = vadd.f32 0.0, %v3896
      %3898 = vmatmul.f32.gmra.mxu0 %v3806
      %v3899 = vpop.f32.mrf.mxu0
      %v3900 = vadd.f32 0.0, %v3899
      %3901 = vmatmul.f32.gmra.mxu0 %v3808
      %v3902 = vpop.f32.mrf.mxu0
      %v3903 = vadd.f32 0.0, %v3902
      %3904 = vmatmul.f32.gmra.mxu0 %v3810
      %v3905 = vpop.f32.mrf.mxu0
      %v3906 = vadd.f32 0.0, %v3905
      %3907 = vmatmul.f32.gmra.mxu0 %v3812
      %v3908 = vpop.f32.mrf.mxu0
      %v3909 = vadd.f32 0.0, %v3908
      %3910 = vmatmul.f32.gmra.mxu0 %v3814
      %v3911 = vpop.f32.mrf.mxu0
      %v3912 = vadd.f32 0.0, %v3911
      %3913 = vmatmul.f32.gmra.mxu0 %v3816
      %v3914 = vpop.f32.mrf.mxu0
      %v3915 = vadd.f32 0.0, %v3914
      %3916 = vmatmul.f32.gmra.mxu0 %v3818
      %v3917 = vpop.f32.mrf.mxu0
      %v3918 = vadd.f32 0.0, %v3917
      %3919 = vmatmul.f32.gmra.mxu0 %v3820
      %v3920 = vpop.f32.mrf.mxu0
      %v3921 = vadd.f32 0.0, %v3920
      %3922 = vmatmul.f32.gmra.mxu0 %v3822
      %v3923 = vpop.f32.mrf.mxu0
      %v3924 = vadd.f32 0.0, %v3923
      %3925 = vmatmul.f32.gmra.mxu0 %v3824
      %v3926 = vpop.f32.mrf.mxu0
      %v3927 = vadd.f32 0.0, %v3926
      %3928 = vmatmul.f32.gmra.mxu0 %v3826
      %v3929 = vpop.f32.mrf.mxu0
      %v3930 = vadd.f32 0.0, %v3929
      %3931 = vmatmul.f32.gmra.mxu0 %v3828
      %v3932 = vpop.f32.mrf.mxu0
      %v3933 = vadd.f32 0.0, %v3932
      %3934 = vmatmul.f32.gmra.mxu0 %v3830
      %v3935 = vpop.f32.mrf.mxu0
      %v3936 = vadd.f32 0.0, %v3935
      %3937 = vmatmul.f32.gmra.mxu0 %v3832
      %v3938 = vpop.f32.mrf.mxu0
      %v3939 = vadd.f32 0.0, %v3938
      %3940 = vmatmul.f32.gmra.mxu0 %v3834
      %v3941 = vpop.f32.mrf.mxu0
      %v3942 = vadd.f32 0.0, %v3941
      %3943 = vmatmul.f32.gmra.mxu0 %v3836
      %v3944 = vpop.f32.mrf.mxu0
      %v3945 = vadd.f32 0.0, %v3944
      %3946 = vmatmul.f32.gmra.mxu0 %v3838
      %v3947 = vpop.f32.mrf.mxu0
      %v3948 = vadd.f32 0.0, %v3947
      %3949 = vmatmul.f32.gmra.mxu0 %v3840
      %v3950 = vpop.f32.mrf.mxu0
      %v3951 = vadd.f32 0.0, %v3950
      %3952 = vmatmul.f32.gmra.mxu0 %v3842
      %v3953 = vpop.f32.mrf.mxu0
      %v3954 = vadd.f32 0.0, %v3953
      %3955 = vmatmul.f32.gmra.mxu0 %v3844
      %v3956 = vpop.f32.mrf.mxu0
      %v3957 = vadd.f32 0.0, %v3956
      %3958 = vmatmul.f32.gmra.mxu0 %v3846
      %v3959 = vpop.f32.mrf.mxu0
      %v3960 = vadd.f32 0.0, %v3959
      %3961 = vmatmul.f32.gmra.mxu0 %v3848
      %v3962 = vpop.f32.mrf.mxu0
      %v3963 = vadd.f32 0.0, %v3962
      %3964 = vmatmul.f32.gmra.mxu0 %v3850
      %v3965 = vpop.f32.mrf.mxu0
      %v3966 = vadd.f32 0.0, %v3965
      %3967 = vdwg.mxu0
      %v3968 = vsel %vm3787, %v1084, 0
      %v3970 = vsel %vm3787, %v1085, 0
      %v3972 = vsel %vm3787, %v1086, 0
      %v3974 = vsel %vm3787, %v1087, 0
      %v3976 = vsel %vm3787, %v1088, 0
      %v3978 = vsel %vm3787, %v1089, 0
      %v3980 = vsel %vm3787, %v1090, 0
      %v3982 = vsel %vm3787, %v1091, 0
      %v3984 = vsel %vm3787, %v1092, 0
      %v3986 = vsel %vm3787, %v1093, 0
      %v3988 = vsel %vm3787, %v1094, 0
      %v3990 = vsel %vm3787, %v1095, 0
      %v3992 = vsel %vm3787, %v1096, 0
      %v3994 = vsel %vm3787, %v1097, 0
      %v3996 = vsel %vm3787, %v1098, 0
      %v3998 = vsel %vm3787, %v1099, 0
      %v4000 = vsel %vm3787, %v1100, 0
      %v4002 = vsel %vm3787, %v1101, 0
      %v4004 = vsel %vm3787, %v1102, 0
      %v4006 = vsel %vm3787, %v1103, 0
      %v4008 = vsel %vm3787, %v1104, 0
      %v4010 = vsel %vm3787, %v1105, 0
      %v4012 = vsel %vm3787, %v1106, 0
      %v4014 = vsel %vm3787, %v1107, 0
      %v4016 = vsel %vm3787, %v1108, 0
      %v4018 = vsel %vm3787, %v1109, 0
      %v4020 = vsel %vm3787, %v1110, 0
      %v4022 = vsel %vm3787, %v1111, 0
      %v4024 = vsel %vm3787, %v1112, 0
      %v4026 = vsel %vm3787, %v1113, 0
      %v4028 = vsel %vm3787, %v1114, 0
      %v4030 = vsel %vm3787, %v1115, 0
      %v4033 = vsel %vm1148, %v3784, 0
      %4035 = vmatpush.msra.mxu0 0.0
      %4036 = vmatpush.msra.mxu0 0.0
      %4037 = vmatpush.msra.mxu0 0.0
      %4038 = vmatpush.msra.mxu0 0.0
      %4039 = vmatpush.msra.mxu0 0.0
      %4040 = vmatpush.msra.mxu0 0.0
      %4041 = vmatpush.msra.mxu0 0.0
      %4042 = vmatpush.msra.mxu0 0.0
      %4043 = vmatpush.msra.mxu0 0.0
      %4044 = vmatpush.msra.mxu0 0.0
      %4045 = vmatpush.msra.mxu0 0.0
      %4046 = vmatpush.msra.mxu0 0.0
      %4047 = vmatpush.msra.mxu0 0.0
      %4048 = vmatpush.msra.mxu0 0.0
      %4049 = vmatpush.msra.mxu0 0.0
      %4050 = vmatpush.msra.mxu0 %v4033
      %4051 = vmatmul.f32.gmra.mxu0 %v3968
      %v4052 = vpop.f32.mrf.mxu0
      %v4053 = vadd.f32 %v3873, %v4052
      %4054 = vmatmul.f32.gmra.mxu0 %v3970
      %v4055 = vpop.f32.mrf.mxu0
      %v4056 = vadd.f32 %v3876, %v4055
      %4057 = vmatmul.f32.gmra.mxu0 %v3972
      %v4058 = vpop.f32.mrf.mxu0
      %v4059 = vadd.f32 %v3879, %v4058
      %4060 = vmatmul.f32.gmra.mxu0 %v3974
      %v4061 = vpop.f32.mrf.mxu0
      %v4062 = vadd.f32 %v3882, %v4061
      %4063 = vmatmul.f32.gmra.mxu0 %v3976
      %v4064 = vpop.f32.mrf.mxu0
      %v4065 = vadd.f32 %v3885, %v4064
      %4066 = vmatmul.f32.gmra.mxu0 %v3978
      %v4067 = vpop.f32.mrf.mxu0
      %v4068 = vadd.f32 %v3888, %v4067
      %4069 = vmatmul.f32.gmra.mxu0 %v3980
      %v4070 = vpop.f32.mrf.mxu0
      %v4071 = vadd.f32 %v3891, %v4070
      %4072 = vmatmul.f32.gmra.mxu0 %v3982
      %v4073 = vpop.f32.mrf.mxu0
      %v4074 = vadd.f32 %v3894, %v4073
      %4075 = vmatmul.f32.gmra.mxu0 %v3984
      %v4076 = vpop.f32.mrf.mxu0
      %v4077 = vadd.f32 %v3897, %v4076
      %4078 = vmatmul.f32.gmra.mxu0 %v3986
      %v4079 = vpop.f32.mrf.mxu0
      %v4080 = vadd.f32 %v3900, %v4079
      %4081 = vmatmul.f32.gmra.mxu0 %v3988
      %v4082 = vpop.f32.mrf.mxu0
      %v4083 = vadd.f32 %v3903, %v4082
      %4084 = vmatmul.f32.gmra.mxu0 %v3990
      %v4085 = vpop.f32.mrf.mxu0
      %v4086 = vadd.f32 %v3906, %v4085
      %4087 = vmatmul.f32.gmra.mxu0 %v3992
      %v4088 = vpop.f32.mrf.mxu0
      %v4089 = vadd.f32 %v3909, %v4088
      %4090 = vmatmul.f32.gmra.mxu0 %v3994
      %v4091 = vpop.f32.mrf.mxu0
      %v4092 = vadd.f32 %v3912, %v4091
      %4093 = vmatmul.f32.gmra.mxu0 %v3996
      %v4094 = vpop.f32.mrf.mxu0
      %v4095 = vadd.f32 %v3915, %v4094
      %4096 = vmatmul.f32.gmra.mxu0 %v3998
      %v4097 = vpop.f32.mrf.mxu0
      %v4098 = vadd.f32 %v3918, %v4097
      %4099 = vmatmul.f32.gmra.mxu0 %v4000
      %v4100 = vpop.f32.mrf.mxu0
      %v4101 = vadd.f32 %v3921, %v4100
      %4102 = vmatmul.f32.gmra.mxu0 %v4002
      %v4103 = vpop.f32.mrf.mxu0
      %v4104 = vadd.f32 %v3924, %v4103
      %4105 = vmatmul.f32.gmra.mxu0 %v4004
      %v4106 = vpop.f32.mrf.mxu0
      %v4107 = vadd.f32 %v3927, %v4106
      %4108 = vmatmul.f32.gmra.mxu0 %v4006
      %v4109 = vpop.f32.mrf.mxu0
      %v4110 = vadd.f32 %v3930, %v4109
      %4111 = vmatmul.f32.gmra.mxu0 %v4008
      %v4112 = vpop.f32.mrf.mxu0
      %v4113 = vadd.f32 %v3933, %v4112
      %4114 = vmatmul.f32.gmra.mxu0 %v4010
      %v4115 = vpop.f32.mrf.mxu0
      %v4116 = vadd.f32 %v3936, %v4115
      %4117 = vmatmul.f32.gmra.mxu0 %v4012
      %v4118 = vpop.f32.mrf.mxu0
      %v4119 = vadd.f32 %v3939, %v4118
      %4120 = vmatmul.f32.gmra.mxu0 %v4014
      %v4121 = vpop.f32.mrf.mxu0
      %v4122 = vadd.f32 %v3942, %v4121
      %4123 = vmatmul.f32.gmra.mxu0 %v4016
      %v4124 = vpop.f32.mrf.mxu0
      %v4125 = vadd.f32 %v3945, %v4124
      %4126 = vmatmul.f32.gmra.mxu0 %v4018
      %v4127 = vpop.f32.mrf.mxu0
      %v4128 = vadd.f32 %v3948, %v4127
      %4129 = vmatmul.f32.gmra.mxu0 %v4020
      %v4130 = vpop.f32.mrf.mxu0
      %v4131 = vadd.f32 %v3951, %v4130
      %4132 = vmatmul.f32.gmra.mxu0 %v4022
      %v4133 = vpop.f32.mrf.mxu0
      %v4134 = vadd.f32 %v3954, %v4133
      %4135 = vmatmul.f32.gmra.mxu0 %v4024
      %v4136 = vpop.f32.mrf.mxu0
      %v4137 = vadd.f32 %v3957, %v4136
      %4138 = vmatmul.f32.gmra.mxu0 %v4026
      %v4139 = vpop.f32.mrf.mxu0
      %v4140 = vadd.f32 %v3960, %v4139
      %4141 = vmatmul.f32.gmra.mxu0 %v4028
      %v4142 = vpop.f32.mrf.mxu0
      %v4143 = vadd.f32 %v3963, %v4142
      %4144 = vmatmul.f32.gmra.mxu0 %v4030
      %v4145 = vpop.f32.mrf.mxu0
      %v4146 = vadd.f32 %v3966, %v4145
      %4147 = vdwg.mxu0
      %s4148 = scalar_lea.vmem %s3, 4
      %v4149 = vld [vmem:[%s4148] sm:$0x3]
      %v4150 = vsel %vm3787, %v2836, 0
      %v4152 = vsel %vm3787, %v2837, 0
      %v4154 = vsel %vm3787, %v2866, 0
      %v4156 = vsel %vm3787, %v2867, 0
      %v4158 = vsel %vm3787, %v2868, 0
      %v4160 = vsel %vm3787, %v2869, 0
      %v4162 = vsel %vm3787, %v2870, 0
      %v4164 = vsel %vm3787, %v2871, 0
      %v4166 = vsel %vm3787, %v2872, 0
      %v4168 = vsel %vm3787, %v2873, 0
      %v4170 = vsel %vm3787, %v2874, 0
      %v4172 = vsel %vm3787, %v2875, 0
      %v4174 = vsel %vm3787, %v2876, 0
      %v4176 = vsel %vm3787, %v2877, 0
      %v4178 = vsel %vm3787, %v2878, 0
      %v4180 = vsel %vm3787, %v2879, 0
      %v4182 = vsel %vm3787, %v2880, 0
      %v4184 = vsel %vm3787, %v2881, 0
      %v4186 = vsel %vm3787, %v2882, 0
      %v4188 = vsel %vm3787, %v2883, 0
      %v4190 = vsel %vm3787, %v2884, 0
      %v4192 = vsel %vm3787, %v2885, 0
      %v4194 = vsel %vm3787, %v2886, 0
      %v4196 = vsel %vm3787, %v2887, 0
      %v4198 = vsel %vm3787, %v2888, 0
      %v4200 = vsel %vm3787, %v2889, 0
      %v4202 = vsel %vm3787, %v2890, 0
      %v4204 = vsel %vm3787, %v2891, 0
      %v4206 = vsel %vm3787, %v2892, 0
      %v4208 = vsel %vm3787, %v2893, 0
      %v4210 = vsel %vm3787, %v2894, 0
      %v4212 = vsel %vm3787, %v2895, 0
      %v4215 = vsel %vm1148, %v4149, 0
      %4217 = vmatpush.msra.mxu0 0.0
      %4218 = vmatpush.msra.mxu0 0.0
      %4219 = vmatpush.msra.mxu0 0.0
      %4220 = vmatpush.msra.mxu0 0.0
      %4221 = vmatpush.msra.mxu0 0.0
      %4222 = vmatpush.msra.mxu0 0.0
      %4223 = vmatpush.msra.mxu0 0.0
      %4224 = vmatpush.msra.mxu0 0.0
      %4225 = vmatpush.msra.mxu0 0.0
      %4226 = vmatpush.msra.mxu0 0.0
      %4227 = vmatpush.msra.mxu0 0.0
      %4228 = vmatpush.msra.mxu0 0.0
      %4229 = vmatpush.msra.mxu0 0.0
      %4230 = vmatpush.msra.mxu0 0.0
      %4231 = vmatpush.msra.mxu0 0.0
      %4232 = vmatpush.msra.mxu0 %v4215
      %4233 = vmatmul.f32.gmra.mxu0 %v4150
      %v4234 = vpop.f32.mrf.mxu0
      %v4235 = vadd.f32 0.0, %v4234
      %4236 = vmatmul.f32.gmra.mxu0 %v4152
      %v4237 = vpop.f32.mrf.mxu0
      %v4238 = vadd.f32 0.0, %v4237
      %4239 = vmatmul.f32.gmra.mxu0 %v4154
      %v4240 = vpop.f32.mrf.mxu0
      %v4241 = vadd.f32 0.0, %v4240
      %4242 = vmatmul.f32.gmra.mxu0 %v4156
      %v4243 = vpop.f32.mrf.mxu0
      %v4244 = vadd.f32 0.0, %v4243
      %4245 = vmatmul.f32.gmra.mxu0 %v4158
      %v4246 = vpop.f32.mrf.mxu0
      %v4247 = vadd.f32 0.0, %v4246
      %4248 = vmatmul.f32.gmra.mxu0 %v4160
      %v4249 = vpop.f32.mrf.mxu0
      %v4250 = vadd.f32 0.0, %v4249
      %4251 = vmatmul.f32.gmra.mxu0 %v4162
      %v4252 = vpop.f32.mrf.mxu0
      %v4253 = vadd.f32 0.0, %v4252
      %4254 = vmatmul.f32.gmra.mxu0 %v4164
      %v4255 = vpop.f32.mrf.mxu0
      %v4256 = vadd.f32 0.0, %v4255
      %4257 = vmatmul.f32.gmra.mxu0 %v4166
      %v4258 = vpop.f32.mrf.mxu0
      %v4259 = vadd.f32 0.0, %v4258
      %4260 = vmatmul.f32.gmra.mxu0 %v4168
      %v4261 = vpop.f32.mrf.mxu0
      %v4262 = vadd.f32 0.0, %v4261
      %4263 = vmatmul.f32.gmra.mxu0 %v4170
      %v4264 = vpop.f32.mrf.mxu0
      %v4265 = vadd.f32 0.0, %v4264
      %4266 = vmatmul.f32.gmra.mxu0 %v4172
      %v4267 = vpop.f32.mrf.mxu0
      %v4268 = vadd.f32 0.0, %v4267
      %4269 = vmatmul.f32.gmra.mxu0 %v4174
      %v4270 = vpop.f32.mrf.mxu0
      %v4271 = vadd.f32 0.0, %v4270
      %4272 = vmatmul.f32.gmra.mxu0 %v4176
      %v4273 = vpop.f32.mrf.mxu0
      %v4274 = vadd.f32 0.0, %v4273
      %4275 = vmatmul.f32.gmra.mxu0 %v4178
      %v4276 = vpop.f32.mrf.mxu0
      %v4277 = vadd.f32 0.0, %v4276
      %4278 = vmatmul.f32.gmra.mxu0 %v4180
      %v4279 = vpop.f32.mrf.mxu0
      %v4280 = vadd.f32 0.0, %v4279
      %4281 = vmatmul.f32.gmra.mxu0 %v4182
      %v4282 = vpop.f32.mrf.mxu0
      %v4283 = vadd.f32 0.0, %v4282
      %4284 = vmatmul.f32.gmra.mxu0 %v4184
      %v4285 = vpop.f32.mrf.mxu0
      %v4286 = vadd.f32 0.0, %v4285
      %4287 = vmatmul.f32.gmra.mxu0 %v4186
      %v4288 = vpop.f32.mrf.mxu0
      %v4289 = vadd.f32 0.0, %v4288
      %4290 = vmatmul.f32.gmra.mxu0 %v4188
      %v4291 = vpop.f32.mrf.mxu0
      %v4292 = vadd.f32 0.0, %v4291
      %4293 = vmatmul.f32.gmra.mxu0 %v4190
      %v4294 = vpop.f32.mrf.mxu0
      %v4295 = vadd.f32 0.0, %v4294
      %4296 = vmatmul.f32.gmra.mxu0 %v4192
      %v4297 = vpop.f32.mrf.mxu0
      %v4298 = vadd.f32 0.0, %v4297
      %4299 = vmatmul.f32.gmra.mxu0 %v4194
      %v4300 = vpop.f32.mrf.mxu0
      %v4301 = vadd.f32 0.0, %v4300
      %4302 = vmatmul.f32.gmra.mxu0 %v4196
      %v4303 = vpop.f32.mrf.mxu0
      %v4304 = vadd.f32 0.0, %v4303
      %4305 = vmatmul.f32.gmra.mxu0 %v4198
      %v4306 = vpop.f32.mrf.mxu0
      %v4307 = vadd.f32 0.0, %v4306
      %4308 = vmatmul.f32.gmra.mxu0 %v4200
      %v4309 = vpop.f32.mrf.mxu0
      %v4310 = vadd.f32 0.0, %v4309
      %4311 = vmatmul.f32.gmra.mxu0 %v4202
      %v4312 = vpop.f32.mrf.mxu0
      %v4313 = vadd.f32 0.0, %v4312
      %4314 = vmatmul.f32.gmra.mxu0 %v4204
      %v4315 = vpop.f32.mrf.mxu0
      %v4316 = vadd.f32 0.0, %v4315
      %4317 = vmatmul.f32.gmra.mxu0 %v4206
      %v4318 = vpop.f32.mrf.mxu0
      %v4319 = vadd.f32 0.0, %v4318
      %4320 = vmatmul.f32.gmra.mxu0 %v4208
      %v4321 = vpop.f32.mrf.mxu0
      %v4322 = vadd.f32 0.0, %v4321
      %4323 = vmatmul.f32.gmra.mxu0 %v4210
      %v4324 = vpop.f32.mrf.mxu0
      %v4325 = vadd.f32 0.0, %v4324
      %4326 = vmatmul.f32.gmra.mxu0 %v4212
      %v4327 = vpop.f32.mrf.mxu0
      %v4328 = vadd.f32 0.0, %v4327
      %4329 = vdwg.mxu0
      %v4330 = vadd.f32 %v4053, %v4235
      %v4331 = vadd.f32 %v4056, %v4238
      %v4332 = vadd.f32 %v4059, %v4241
      %v4333 = vadd.f32 %v4062, %v4244
      %v4334 = vadd.f32 %v4065, %v4247
      %v4335 = vadd.f32 %v4068, %v4250
      %v4336 = vadd.f32 %v4071, %v4253
      %v4337 = vadd.f32 %v4074, %v4256
      %v4338 = vadd.f32 %v4077, %v4259
      %v4339 = vadd.f32 %v4080, %v4262
      %v4340 = vadd.f32 %v4083, %v4265
      %v4341 = vadd.f32 %v4086, %v4268
      %v4342 = vadd.f32 %v4089, %v4271
      %v4343 = vadd.f32 %v4092, %v4274
      %v4344 = vadd.f32 %v4095, %v4277
      %v4345 = vadd.f32 %v4098, %v4280
      %v4346 = vadd.f32 %v4101, %v4283
      %v4347 = vadd.f32 %v4104, %v4286
      %v4348 = vadd.f32 %v4107, %v4289
      %v4349 = vadd.f32 %v4110, %v4292
      %v4350 = vadd.f32 %v4113, %v4295
      %v4351 = vadd.f32 %v4116, %v4298
      %v4352 = vadd.f32 %v4119, %v4301
      %v4353 = vadd.f32 %v4122, %v4304
      %v4354 = vadd.f32 %v4125, %v4307
      %v4355 = vadd.f32 %v4128, %v4310
      %v4356 = vadd.f32 %v4131, %v4313
      %v4357 = vadd.f32 %v4134, %v4316
      %v4358 = vadd.f32 %v4137, %v4319
      %v4359 = vadd.f32 %v4140, %v4322
      %v4360 = vadd.f32 %v4143, %v4325
      %v4361 = vadd.f32 %v4146, %v4328
      %s4362 = scalar_lea.vmem %s3, 6
      %v4363 = vld [vmem:[%s4362] sm:$0x3]
      %v4365 = vsel %vm3787, %v3724, 0
      %v4368 = vsel %vm3787, %v3725, 0
      %v4371 = vsel %vm3787, %v3754, 0
      %v4374 = vsel %vm3787, %v3755, 0
      %v4377 = vsel %vm3787, %v3756, 0
      %v4380 = vsel %vm3787, %v3757, 0
      %v4383 = vsel %vm3787, %v3758, 0
      %v4386 = vsel %vm3787, %v3759, 0
      %v4389 = vsel %vm3787, %v3760, 0
      %v4392 = vsel %vm3787, %v3761, 0
      %v4395 = vsel %vm3787, %v3762, 0
      %v4398 = vsel %vm3787, %v3763, 0
      %v4401 = vsel %vm3787, %v3764, 0
      %v4404 = vsel %vm3787, %v3765, 0
      %v4407 = vsel %vm3787, %v3766, 0
      %v4410 = vsel %vm3787, %v3767, 0
      %v4413 = vsel %vm3787, %v3768, 0
      %v4416 = vsel %vm3787, %v3769, 0
      %v4419 = vsel %vm3787, %v3770, 0
      %v4422 = vsel %vm3787, %v3771, 0
      %v4425 = vsel %vm3787, %v3772, 0
      %v4428 = vsel %vm3787, %v3773, 0
      %v4431 = vsel %vm3787, %v3774, 0
      %v4434 = vsel %vm3787, %v3775, 0
      %v4437 = vsel %vm3787, %v3776, 0
      %v4440 = vsel %vm3787, %v3777, 0
      %v4443 = vsel %vm3787, %v3778, 0
      %v4446 = vsel %vm3787, %v3779, 0
      %v4449 = vsel %vm3787, %v3780, 0
      %v4452 = vsel %vm3787, %v3781, 0
      %v4455 = vsel %vm3787, %v3782, 0
      %v4458 = vsel %vm3787, %v3783, 0
      %v4461 = vsel %vm1148, %v4363, 0
      %4463 = vmatpush.msra.mxu0 0.0
      %4464 = vmatpush.msra.mxu0 0.0
      %4465 = vmatpush.msra.mxu0 0.0
      %4466 = vmatpush.msra.mxu0 0.0
      %4467 = vmatpush.msra.mxu0 0.0
      %4468 = vmatpush.msra.mxu0 0.0
      %4469 = vmatpush.msra.mxu0 0.0
      %4470 = vmatpush.msra.mxu0 0.0
      %4471 = vmatpush.msra.mxu0 0.0
      %4472 = vmatpush.msra.mxu0 0.0
      %4473 = vmatpush.msra.mxu0 0.0
      %4474 = vmatpush.msra.mxu0 0.0
      %4475 = vmatpush.msra.mxu0 0.0
      %4476 = vmatpush.msra.mxu0 0.0
      %4477 = vmatpush.msra.mxu0 0.0
      %4478 = vmatpush.msra.mxu0 %v4461
      %4479 = vmatmul.f32.gmra.mxu0 %v4365
      %v4480 = vpop.f32.mrf.mxu0
      %v4481 = vadd.f32 0.0, %v4480
      %4482 = vmatmul.f32.gmra.mxu0 %v4368
      %v4483 = vpop.f32.mrf.mxu0
      %v4484 = vadd.f32 0.0, %v4483
      %4485 = vmatmul.f32.gmra.mxu0 %v4371
      %v4486 = vpop.f32.mrf.mxu0
      %v4487 = vadd.f32 0.0, %v4486
      %4488 = vmatmul.f32.gmra.mxu0 %v4374
      %v4489 = vpop.f32.mrf.mxu0
      %v4490 = vadd.f32 0.0, %v4489
      %4491 = vmatmul.f32.gmra.mxu0 %v4377
      %v4492 = vpop.f32.mrf.mxu0
      %v4493 = vadd.f32 0.0, %v4492
      %4494 = vmatmul.f32.gmra.mxu0 %v4380
      %v4495 = vpop.f32.mrf.mxu0
      %v4496 = vadd.f32 0.0, %v4495
      %4497 = vmatmul.f32.gmra.mxu0 %v4383
      %v4498 = vpop.f32.mrf.mxu0
      %v4499 = vadd.f32 0.0, %v4498
      %4500 = vmatmul.f32.gmra.mxu0 %v4386
      %v4501 = vpop.f32.mrf.mxu0
      %v4502 = vadd.f32 0.0, %v4501
      %4503 = vmatmul.f32.gmra.mxu0 %v4389
      %v4504 = vpop.f32.mrf.mxu0
      %v4505 = vadd.f32 0.0, %v4504
      %4506 = vmatmul.f32.gmra.mxu0 %v4392
      %v4507 = vpop.f32.mrf.mxu0
      %v4508 = vadd.f32 0.0, %v4507
      %4509 = vmatmul.f32.gmra.mxu0 %v4395
      %v4510 = vpop.f32.mrf.mxu0
      %v4511 = vadd.f32 0.0, %v4510
      %4512 = vmatmul.f32.gmra.mxu0 %v4398
      %v4513 = vpop.f32.mrf.mxu0
      %v4514 = vadd.f32 0.0, %v4513
      %4515 = vmatmul.f32.gmra.mxu0 %v4401
      %v4516 = vpop.f32.mrf.mxu0
      %v4517 = vadd.f32 0.0, %v4516
      %4518 = vmatmul.f32.gmra.mxu0 %v4404
      %v4519 = vpop.f32.mrf.mxu0
      %v4520 = vadd.f32 0.0, %v4519
      %4521 = vmatmul.f32.gmra.mxu0 %v4407
      %v4522 = vpop.f32.mrf.mxu0
      %v4523 = vadd.f32 0.0, %v4522
      %4524 = vmatmul.f32.gmra.mxu0 %v4410
      %v4525 = vpop.f32.mrf.mxu0
      %v4526 = vadd.f32 0.0, %v4525
      %4527 = vmatmul.f32.gmra.mxu0 %v4413
      %v4528 = vpop.f32.mrf.mxu0
      %v4529 = vadd.f32 0.0, %v4528
      %4530 = vmatmul.f32.gmra.mxu0 %v4416
      %v4531 = vpop.f32.mrf.mxu0
      %v4532 = vadd.f32 0.0, %v4531
      %4533 = vmatmul.f32.gmra.mxu0 %v4419
      %v4534 = vpop.f32.mrf.mxu0
      %v4535 = vadd.f32 0.0, %v4534
      %4536 = vmatmul.f32.gmra.mxu0 %v4422
      %v4537 = vpop.f32.mrf.mxu0
      %v4538 = vadd.f32 0.0, %v4537
      %4539 = vmatmul.f32.gmra.mxu0 %v4425
      %v4540 = vpop.f32.mrf.mxu0
      %v4541 = vadd.f32 0.0, %v4540
      %4542 = vmatmul.f32.gmra.mxu0 %v4428
      %v4543 = vpop.f32.mrf.mxu0
      %v4544 = vadd.f32 0.0, %v4543
      %4545 = vmatmul.f32.gmra.mxu0 %v4431
      %v4546 = vpop.f32.mrf.mxu0
      %v4547 = vadd.f32 0.0, %v4546
      %4548 = vmatmul.f32.gmra.mxu0 %v4434
      %v4549 = vpop.f32.mrf.mxu0
      %v4550 = vadd.f32 0.0, %v4549
      %4551 = vmatmul.f32.gmra.mxu0 %v4437
      %v4552 = vpop.f32.mrf.mxu0
      %v4553 = vadd.f32 0.0, %v4552
      %4554 = vmatmul.f32.gmra.mxu0 %v4440
      %v4555 = vpop.f32.mrf.mxu0
      %v4556 = vadd.f32 0.0, %v4555
      %4557 = vmatmul.f32.gmra.mxu0 %v4443
      %v4558 = vpop.f32.mrf.mxu0
      %v4559 = vadd.f32 0.0, %v4558
      %4560 = vmatmul.f32.gmra.mxu0 %v4446
      %v4561 = vpop.f32.mrf.mxu0
      %v4562 = vadd.f32 0.0, %v4561
      %4563 = vmatmul.f32.gmra.mxu0 %v4449
      %v4564 = vpop.f32.mrf.mxu0
      %v4565 = vadd.f32 0.0, %v4564
      %4566 = vmatmul.f32.gmra.mxu0 %v4452
      %v4567 = vpop.f32.mrf.mxu0
      %v4568 = vadd.f32 0.0, %v4567
      %4569 = vmatmul.f32.gmra.mxu0 %v4455
      %v4570 = vpop.f32.mrf.mxu0
      %v4571 = vadd.f32 0.0, %v4570
      %4572 = vmatmul.f32.gmra.mxu0 %v4458
      %v4573 = vpop.f32.mrf.mxu0
      %v4574 = vadd.f32 0.0, %v4573
      %4575 = vdwg.mxu0
      %v4576 = vadd.f32 %v4330, %v4481
      %v4577 = vadd.f32 %v4331, %v4484
      %v4578 = vadd.f32 %v4332, %v4487
      %v4579 = vadd.f32 %v4333, %v4490
      %v4580 = vadd.f32 %v4334, %v4493
      %v4581 = vadd.f32 %v4335, %v4496
      %v4582 = vadd.f32 %v4336, %v4499
      %v4583 = vadd.f32 %v4337, %v4502
      %v4584 = vadd.f32 %v4338, %v4505
      %v4585 = vadd.f32 %v4339, %v4508
      %v4586 = vadd.f32 %v4340, %v4511
      %v4587 = vadd.f32 %v4341, %v4514
      %v4588 = vadd.f32 %v4342, %v4517
      %v4589 = vadd.f32 %v4343, %v4520
      %v4590 = vadd.f32 %v4344, %v4523
      %v4591 = vadd.f32 %v4345, %v4526
      %v4592 = vadd.f32 %v4346, %v4529
      %v4593 = vadd.f32 %v4347, %v4532
      %v4594 = vadd.f32 %v4348, %v4535
      %v4595 = vadd.f32 %v4349, %v4538
      %v4596 = vadd.f32 %v4350, %v4541
      %v4597 = vadd.f32 %v4351, %v4544
      %v4598 = vadd.f32 %v4352, %v4547
      %v4599 = vadd.f32 %v4353, %v4550
      %v4600 = vadd.f32 %v4354, %v4553
      %v4601 = vadd.f32 %v4355, %v4556
      %v4602 = vadd.f32 %v4356, %v4559
      %v4603 = vadd.f32 %v4357, %v4562
      %v4604 = vadd.f32 %v4358, %v4565
      %v4605 = vadd.f32 %v4359, %v4568
      %v4606 = vadd.f32 %v4360, %v4571
      %v4607 = vadd.f32 %v4361, %v4574
      %v4608 = vld [vmem:[%s4] sm:$0x1]
      %v4610 = vperm.slane %v4608, 0
      %v4612 = vadd.f32 %v4576, %v4610
      %v4613 = vadd.f32 %v4577, %v4610
      %v4614 = vadd.f32 %v4578, %v4610
      %v4615 = vadd.f32 %v4579, %v4610
      %v4616 = vadd.f32 %v4580, %v4610
      %v4617 = vadd.f32 %v4581, %v4610
      %v4618 = vadd.f32 %v4582, %v4610
      %v4619 = vadd.f32 %v4583, %v4610
      %v4620 = vadd.f32 %v4584, %v4610
      %v4621 = vadd.f32 %v4585, %v4610
      %v4622 = vadd.f32 %v4586, %v4610
      %v4623 = vadd.f32 %v4587, %v4610
      %v4624 = vadd.f32 %v4588, %v4610
      %v4625 = vadd.f32 %v4589, %v4610
      %v4626 = vadd.f32 %v4590, %v4610
      %v4627 = vadd.f32 %v4591, %v4610
      %v4628 = vadd.f32 %v4592, %v4610
      %v4629 = vadd.f32 %v4593, %v4610
      %v4630 = vadd.f32 %v4594, %v4610
      %v4631 = vadd.f32 %v4595, %v4610
      %v4632 = vadd.f32 %v4596, %v4610
      %v4633 = vadd.f32 %v4597, %v4610
      %v4634 = vadd.f32 %v4598, %v4610
      %v4635 = vadd.f32 %v4599, %v4610
      %v4636 = vadd.f32 %v4600, %v4610
      %v4637 = vadd.f32 %v4601, %v4610
      %v4638 = vadd.f32 %v4602, %v4610
      %v4639 = vadd.f32 %v4603, %v4610
      %v4640 = vadd.f32 %v4604, %v4610
      %v4641 = vadd.f32 %v4605, %v4610
      %v4642 = vadd.f32 %v4606, %v4610
      %v4643 = vadd.f32 %v4607, %v4610
      %v4644 = vxor.u32 %v4612, 2147483648
      %v4645 = vxor.u32 %v4613, 2147483648
      %v4646 = vxor.u32 %v4614, 2147483648
      %v4647 = vxor.u32 %v4615, 2147483648
      %v4648 = vxor.u32 %v4616, 2147483648
      %v4649 = vxor.u32 %v4617, 2147483648
      %v4650 = vxor.u32 %v4618, 2147483648
      %v4651 = vxor.u32 %v4619, 2147483648
      %v4652 = vxor.u32 %v4620, 2147483648
      %v4653 = vxor.u32 %v4621, 2147483648
      %v4654 = vxor.u32 %v4622, 2147483648
      %v4655 = vxor.u32 %v4623, 2147483648
      %v4656 = vxor.u32 %v4624, 2147483648
      %v4657 = vxor.u32 %v4625, 2147483648
      %v4658 = vxor.u32 %v4626, 2147483648
      %v4659 = vxor.u32 %v4627, 2147483648
      %v4660 = vxor.u32 %v4628, 2147483648
      %v4661 = vxor.u32 %v4629, 2147483648
      %v4662 = vxor.u32 %v4630, 2147483648
      %v4663 = vxor.u32 %v4631, 2147483648
      %v4664 = vxor.u32 %v4632, 2147483648
      %v4665 = vxor.u32 %v4633, 2147483648
      %v4666 = vxor.u32 %v4634, 2147483648
      %v4667 = vxor.u32 %v4635, 2147483648
      %v4668 = vxor.u32 %v4636, 2147483648
      %v4669 = vxor.u32 %v4637, 2147483648
      %v4670 = vxor.u32 %v4638, 2147483648
      %v4671 = vxor.u32 %v4639, 2147483648
      %v4672 = vxor.u32 %v4640, 2147483648
      %v4673 = vxor.u32 %v4641, 2147483648
      %v4674 = vxor.u32 %v4642, 2147483648
      %v4675 = vxor.u32 %v4643, 2147483648
      %v4676 = vmul.f32 %v4644, 1.442695
      %v4677 = vpow.pop %v4676
      %v4678 = vmul.f32 %v4645, 1.442695
      %v4679 = vpow.pop %v4678
      %v4680 = vmul.f32 %v4646, 1.442695
      %v4681 = vpow.pop %v4680
      %v4682 = vmul.f32 %v4647, 1.442695
      %v4683 = vpow.pop %v4682
      %v4684 = vmul.f32 %v4648, 1.442695
      %v4685 = vpow.pop %v4684
      %v4686 = vmul.f32 %v4649, 1.442695
      %v4687 = vpow.pop %v4686
      %v4688 = vmul.f32 %v4650, 1.442695
      %v4689 = vpow.pop %v4688
      %v4690 = vmul.f32 %v4651, 1.442695
      %v4691 = vpow.pop %v4690
      %v4692 = vmul.f32 %v4652, 1.442695
      %v4693 = vpow.pop %v4692
      %v4694 = vmul.f32 %v4653, 1.442695
      %v4695 = vpow.pop %v4694
      %v4696 = vmul.f32 %v4654, 1.442695
      %v4697 = vpow.pop %v4696
      %v4698 = vmul.f32 %v4655, 1.442695
      %v4699 = vpow.pop %v4698
      %v4700 = vmul.f32 %v4656, 1.442695
      %v4701 = vpow.pop %v4700
      %v4702 = vmul.f32 %v4657, 1.442695
      %v4703 = vpow.pop %v4702
      %v4704 = vmul.f32 %v4658, 1.442695
      %v4705 = vpow.pop %v4704
      %v4706 = vmul.f32 %v4659, 1.442695
      %v4707 = vpow.pop %v4706
      %v4708 = vmul.f32 %v4660, 1.442695
      %v4709 = vpow.pop %v4708
      %v4710 = vmul.f32 %v4661, 1.442695
      %v4711 = vpow.pop %v4710
      %v4712 = vmul.f32 %v4662, 1.442695
      %v4713 = vpow.pop %v4712
      %v4714 = vmul.f32 %v4663, 1.442695
      %v4715 = vpow.pop %v4714
      %v4716 = vmul.f32 %v4664, 1.442695
      %v4717 = vpow.pop %v4716
      %v4718 = vmul.f32 %v4665, 1.442695
      %v4719 = vpow.pop %v4718
      %v4720 = vmul.f32 %v4666, 1.442695
      %v4721 = vpow.pop %v4720
      %v4722 = vmul.f32 %v4667, 1.442695
      %v4723 = vpow.pop %v4722
      %v4724 = vmul.f32 %v4668, 1.442695
      %v4725 = vpow.pop %v4724
      %v4726 = vmul.f32 %v4669, 1.442695
      %v4727 = vpow.pop %v4726
      %v4728 = vmul.f32 %v4670, 1.442695
      %v4729 = vpow.pop %v4728
      %v4730 = vmul.f32 %v4671, 1.442695
      %v4731 = vpow.pop %v4730
      %v4732 = vmul.f32 %v4672, 1.442695
      %v4733 = vpow.pop %v4732
      %v4734 = vmul.f32 %v4673, 1.442695
      %v4735 = vpow.pop %v4734
      %v4736 = vmul.f32 %v4674, 1.442695
      %v4737 = vpow.pop %v4736
      %v4738 = vmul.f32 %v4675, 1.442695
      %v4739 = vpow.pop %v4738
      %v4740 = vadd.f32 %v4677, 1.0
      %v4741 = vadd.f32 %v4679, 1.0
      %v4742 = vadd.f32 %v4681, 1.0
      %v4743 = vadd.f32 %v4683, 1.0
      %v4744 = vadd.f32 %v4685, 1.0
      %v4745 = vadd.f32 %v4687, 1.0
      %v4746 = vadd.f32 %v4689, 1.0
      %v4747 = vadd.f32 %v4691, 1.0
      %v4748 = vadd.f32 %v4693, 1.0
      %v4749 = vadd.f32 %v4695, 1.0
      %v4750 = vadd.f32 %v4697, 1.0
      %v4751 = vadd.f32 %v4699, 1.0
      %v4752 = vadd.f32 %v4701, 1.0
      %v4753 = vadd.f32 %v4703, 1.0
      %v4754 = vadd.f32 %v4705, 1.0
      %v4755 = vadd.f32 %v4707, 1.0
      %v4756 = vadd.f32 %v4709, 1.0
      %v4757 = vadd.f32 %v4711, 1.0
      %v4758 = vadd.f32 %v4713, 1.0
      %v4759 = vadd.f32 %v4715, 1.0
      %v4760 = vadd.f32 %v4717, 1.0
      %v4761 = vadd.f32 %v4719, 1.0
      %v4762 = vadd.f32 %v4721, 1.0
      %v4763 = vadd.f32 %v4723, 1.0
      %v4764 = vadd.f32 %v4725, 1.0
      %v4765 = vadd.f32 %v4727, 1.0
      %v4766 = vadd.f32 %v4729, 1.0
      %v4767 = vadd.f32 %v4731, 1.0
      %v4768 = vadd.f32 %v4733, 1.0
      %v4769 = vadd.f32 %v4735, 1.0
      %v4770 = vadd.f32 %v4737, 1.0
      %v4771 = vadd.f32 %v4739, 1.0
      %v4772 = vrcp.pop %v4740
      %v4773 = vmul.f32 %v4740, %v4772
      %v4774 = vsub.f32 1.0, %v4773
      %v4775 = vmul.f32 %v4772, %v4774
      %v4776 = vadd.f32 %v4772, %v4775
      %vm4777 = vweird.f32 %v4740
      %vm4778 = vweird.f32 %v4772
      %vm4779 = vmor %vm4777, %vm4778
      %v4780 = vsel %vm4779, %v4772, %v4776
      %v4781 = vand.u32 2147483647, %v4740
      %vm4782 = vcmp.eq.f32.partialorder %v4781, 8.507059e+37
      %v4783 = vand.u32 %v4740, 2147483648
      %v4784 = vor.u32 1.1754944e-38, %v4783
      %v4785 = vsel %vm4782, %v4784, %v4780
      %v4786 = vmul.f32 1.0, %v4785
      %v4787 = vrcp.pop %v4741
      %v4788 = vmul.f32 %v4741, %v4787
      %v4789 = vsub.f32 1.0, %v4788
      %v4790 = vmul.f32 %v4787, %v4789
      %v4791 = vadd.f32 %v4787, %v4790
      %vm4792 = vweird.f32 %v4741
      %vm4793 = vweird.f32 %v4787
      %vm4794 = vmor %vm4792, %vm4793
      %v4795 = vsel %vm4794, %v4787, %v4791
      %v4796 = vand.u32 2147483647, %v4741
      %vm4797 = vcmp.eq.f32.partialorder %v4796, 8.507059e+37
      %v4798 = vand.u32 %v4741, 2147483648
      %v4799 = vor.u32 1.1754944e-38, %v4798
      %v4800 = vsel %vm4797, %v4799, %v4795
      %v4801 = vmul.f32 1.0, %v4800
      %v4802 = vrcp.pop %v4742
      %v4803 = vmul.f32 %v4742, %v4802
      %v4804 = vsub.f32 1.0, %v4803
      %v4805 = vmul.f32 %v4802, %v4804
      %v4806 = vadd.f32 %v4802, %v4805
      %vm4807 = vweird.f32 %v4742
      %vm4808 = vweird.f32 %v4802
      %vm4809 = vmor %vm4807, %vm4808
      %v4810 = vsel %vm4809, %v4802, %v4806
      %v4811 = vand.u32 2147483647, %v4742
      %vm4812 = vcmp.eq.f32.partialorder %v4811, 8.507059e+37
      %v4813 = vand.u32 %v4742, 2147483648
      %v4814 = vor.u32 1.1754944e-38, %v4813
      %v4815 = vsel %vm4812, %v4814, %v4810
      %v4816 = vmul.f32 1.0, %v4815
      %v4817 = vrcp.pop %v4743
      %v4818 = vmul.f32 %v4743, %v4817
      %v4819 = vsub.f32 1.0, %v4818
      %v4820 = vmul.f32 %v4817, %v4819
      %v4821 = vadd.f32 %v4817, %v4820
      %vm4822 = vweird.f32 %v4743
      %vm4823 = vweird.f32 %v4817
      %vm4824 = vmor %vm4822, %vm4823
      %v4825 = vsel %vm4824, %v4817, %v4821
      %v4826 = vand.u32 2147483647, %v4743
      %vm4827 = vcmp.eq.f32.partialorder %v4826, 8.507059e+37
      %v4828 = vand.u32 %v4743, 2147483648
      %v4829 = vor.u32 1.1754944e-38, %v4828
      %v4830 = vsel %vm4827, %v4829, %v4825
      %v4831 = vmul.f32 1.0, %v4830
      %v4832 = vrcp.pop %v4744
      %v4833 = vmul.f32 %v4744, %v4832
      %v4834 = vsub.f32 1.0, %v4833
      %v4835 = vmul.f32 %v4832, %v4834
      %v4836 = vadd.f32 %v4832, %v4835
      %vm4837 = vweird.f32 %v4744
      %vm4838 = vweird.f32 %v4832
      %vm4839 = vmor %vm4837, %vm4838
      %v4840 = vsel %vm4839, %v4832, %v4836
      %v4841 = vand.u32 2147483647, %v4744
      %vm4842 = vcmp.eq.f32.partialorder %v4841, 8.507059e+37
      %v4843 = vand.u32 %v4744, 2147483648
      %v4844 = vor.u32 1.1754944e-38, %v4843
      %v4845 = vsel %vm4842, %v4844, %v4840
      %v4846 = vmul.f32 1.0, %v4845
      %v4847 = vrcp.pop %v4745
      %v4848 = vmul.f32 %v4745, %v4847
      %v4849 = vsub.f32 1.0, %v4848
      %v4850 = vmul.f32 %v4847, %v4849
      %v4851 = vadd.f32 %v4847, %v4850
      %vm4852 = vweird.f32 %v4745
      %vm4853 = vweird.f32 %v4847
      %vm4854 = vmor %vm4852, %vm4853
      %v4855 = vsel %vm4854, %v4847, %v4851
      %v4856 = vand.u32 2147483647, %v4745
      %vm4857 = vcmp.eq.f32.partialorder %v4856, 8.507059e+37
      %v4858 = vand.u32 %v4745, 2147483648
      %v4859 = vor.u32 1.1754944e-38, %v4858
      %v4860 = vsel %vm4857, %v4859, %v4855
      %v4861 = vmul.f32 1.0, %v4860
      %v4862 = vrcp.pop %v4746
      %v4863 = vmul.f32 %v4746, %v4862
      %v4864 = vsub.f32 1.0, %v4863
      %v4865 = vmul.f32 %v4862, %v4864
      %v4866 = vadd.f32 %v4862, %v4865
      %vm4867 = vweird.f32 %v4746
      %vm4868 = vweird.f32 %v4862
      %vm4869 = vmor %vm4867, %vm4868
      %v4870 = vsel %vm4869, %v4862, %v4866
      %v4871 = vand.u32 2147483647, %v4746
      %vm4872 = vcmp.eq.f32.partialorder %v4871, 8.507059e+37
      %v4873 = vand.u32 %v4746, 2147483648
      %v4874 = vor.u32 1.1754944e-38, %v4873
      %v4875 = vsel %vm4872, %v4874, %v4870
      %v4876 = vmul.f32 1.0, %v4875
      %v4877 = vrcp.pop %v4747
      %v4878 = vmul.f32 %v4747, %v4877
      %v4879 = vsub.f32 1.0, %v4878
      %v4880 = vmul.f32 %v4877, %v4879
      %v4881 = vadd.f32 %v4877, %v4880
      %vm4882 = vweird.f32 %v4747
      %vm4883 = vweird.f32 %v4877
      %vm4884 = vmor %vm4882, %vm4883
      %v4885 = vsel %vm4884, %v4877, %v4881
      %v4886 = vand.u32 2147483647, %v4747
      %vm4887 = vcmp.eq.f32.partialorder %v4886, 8.507059e+37
      %v4888 = vand.u32 %v4747, 2147483648
      %v4889 = vor.u32 1.1754944e-38, %v4888
      %v4890 = vsel %vm4887, %v4889, %v4885
      %v4891 = vmul.f32 1.0, %v4890
      %v4892 = vrcp.pop %v4748
      %v4893 = vmul.f32 %v4748, %v4892
      %v4894 = vsub.f32 1.0, %v4893
      %v4895 = vmul.f32 %v4892, %v4894
      %v4896 = vadd.f32 %v4892, %v4895
      %vm4897 = vweird.f32 %v4748
      %vm4898 = vweird.f32 %v4892
      %vm4899 = vmor %vm4897, %vm4898
      %v4900 = vsel %vm4899, %v4892, %v4896
      %v4901 = vand.u32 2147483647, %v4748
      %vm4902 = vcmp.eq.f32.partialorder %v4901, 8.507059e+37
      %v4903 = vand.u32 %v4748, 2147483648
      %v4904 = vor.u32 1.1754944e-38, %v4903
      %v4905 = vsel %vm4902, %v4904, %v4900
      %v4906 = vmul.f32 1.0, %v4905
      %v4907 = vrcp.pop %v4749
      %v4908 = vmul.f32 %v4749, %v4907
      %v4909 = vsub.f32 1.0, %v4908
      %v4910 = vmul.f32 %v4907, %v4909
      %v4911 = vadd.f32 %v4907, %v4910
      %vm4912 = vweird.f32 %v4749
      %vm4913 = vweird.f32 %v4907
      %vm4914 = vmor %vm4912, %vm4913
      %v4915 = vsel %vm4914, %v4907, %v4911
      %v4916 = vand.u32 2147483647, %v4749
      %vm4917 = vcmp.eq.f32.partialorder %v4916, 8.507059e+37
      %v4918 = vand.u32 %v4749, 2147483648
      %v4919 = vor.u32 1.1754944e-38, %v4918
      %v4920 = vsel %vm4917, %v4919, %v4915
      %v4921 = vmul.f32 1.0, %v4920
      %v4922 = vrcp.pop %v4750
      %v4923 = vmul.f32 %v4750, %v4922
      %v4924 = vsub.f32 1.0, %v4923
      %v4925 = vmul.f32 %v4922, %v4924
      %v4926 = vadd.f32 %v4922, %v4925
      %vm4927 = vweird.f32 %v4750
      %vm4928 = vweird.f32 %v4922
      %vm4929 = vmor %vm4927, %vm4928
      %v4930 = vsel %vm4929, %v4922, %v4926
      %v4931 = vand.u32 2147483647, %v4750
      %vm4932 = vcmp.eq.f32.partialorder %v4931, 8.507059e+37
      %v4933 = vand.u32 %v4750, 2147483648
      %v4934 = vor.u32 1.1754944e-38, %v4933
      %v4935 = vsel %vm4932, %v4934, %v4930
      %v4936 = vmul.f32 1.0, %v4935
      %v4937 = vrcp.pop %v4751
      %v4938 = vmul.f32 %v4751, %v4937
      %v4939 = vsub.f32 1.0, %v4938
      %v4940 = vmul.f32 %v4937, %v4939
      %v4941 = vadd.f32 %v4937, %v4940
      %vm4942 = vweird.f32 %v4751
      %vm4943 = vweird.f32 %v4937
      %vm4944 = vmor %vm4942, %vm4943
      %v4945 = vsel %vm4944, %v4937, %v4941
      %v4946 = vand.u32 2147483647, %v4751
      %vm4947 = vcmp.eq.f32.partialorder %v4946, 8.507059e+37
      %v4948 = vand.u32 %v4751, 2147483648
      %v4949 = vor.u32 1.1754944e-38, %v4948
      %v4950 = vsel %vm4947, %v4949, %v4945
      %v4951 = vmul.f32 1.0, %v4950
      %v4952 = vrcp.pop %v4752
      %v4953 = vmul.f32 %v4752, %v4952
      %v4954 = vsub.f32 1.0, %v4953
      %v4955 = vmul.f32 %v4952, %v4954
      %v4956 = vadd.f32 %v4952, %v4955
      %vm4957 = vweird.f32 %v4752
      %vm4958 = vweird.f32 %v4952
      %vm4959 = vmor %vm4957, %vm4958
      %v4960 = vsel %vm4959, %v4952, %v4956
      %v4961 = vand.u32 2147483647, %v4752
      %vm4962 = vcmp.eq.f32.partialorder %v4961, 8.507059e+37
      %v4963 = vand.u32 %v4752, 2147483648
      %v4964 = vor.u32 1.1754944e-38, %v4963
      %v4965 = vsel %vm4962, %v4964, %v4960
      %v4966 = vmul.f32 1.0, %v4965
      %v4967 = vrcp.pop %v4753
      %v4968 = vmul.f32 %v4753, %v4967
      %v4969 = vsub.f32 1.0, %v4968
      %v4970 = vmul.f32 %v4967, %v4969
      %v4971 = vadd.f32 %v4967, %v4970
      %vm4972 = vweird.f32 %v4753
      %vm4973 = vweird.f32 %v4967
      %vm4974 = vmor %vm4972, %vm4973
      %v4975 = vsel %vm4974, %v4967, %v4971
      %v4976 = vand.u32 2147483647, %v4753
      %vm4977 = vcmp.eq.f32.partialorder %v4976, 8.507059e+37
      %v4978 = vand.u32 %v4753, 2147483648
      %v4979 = vor.u32 1.1754944e-38, %v4978
      %v4980 = vsel %vm4977, %v4979, %v4975
      %v4981 = vmul.f32 1.0, %v4980
      %v4982 = vrcp.pop %v4754
      %v4983 = vmul.f32 %v4754, %v4982
      %v4984 = vsub.f32 1.0, %v4983
      %v4985 = vmul.f32 %v4982, %v4984
      %v4986 = vadd.f32 %v4982, %v4985
      %vm4987 = vweird.f32 %v4754
      %vm4988 = vweird.f32 %v4982
      %vm4989 = vmor %vm4987, %vm4988
      %v4990 = vsel %vm4989, %v4982, %v4986
      %v4991 = vand.u32 2147483647, %v4754
      %vm4992 = vcmp.eq.f32.partialorder %v4991, 8.507059e+37
      %v4993 = vand.u32 %v4754, 2147483648
      %v4994 = vor.u32 1.1754944e-38, %v4993
      %v4995 = vsel %vm4992, %v4994, %v4990
      %v4996 = vmul.f32 1.0, %v4995
      %v4997 = vrcp.pop %v4755
      %v4998 = vmul.f32 %v4755, %v4997
      %v4999 = vsub.f32 1.0, %v4998
      %v5000 = vmul.f32 %v4997, %v4999
      %v5001 = vadd.f32 %v4997, %v5000
      %vm5002 = vweird.f32 %v4755
      %vm5003 = vweird.f32 %v4997
      %vm5004 = vmor %vm5002, %vm5003
      %v5005 = vsel %vm5004, %v4997, %v5001
      %v5006 = vand.u32 2147483647, %v4755
      %vm5007 = vcmp.eq.f32.partialorder %v5006, 8.507059e+37
      %v5008 = vand.u32 %v4755, 2147483648
      %v5009 = vor.u32 1.1754944e-38, %v5008
      %v5010 = vsel %vm5007, %v5009, %v5005
      %v5011 = vmul.f32 1.0, %v5010
      %v5012 = vrcp.pop %v4756
      %v5013 = vmul.f32 %v4756, %v5012
      %v5014 = vsub.f32 1.0, %v5013
      %v5015 = vmul.f32 %v5012, %v5014
      %v5016 = vadd.f32 %v5012, %v5015
      %vm5017 = vweird.f32 %v4756
      %vm5018 = vweird.f32 %v5012
      %vm5019 = vmor %vm5017, %vm5018
      %v5020 = vsel %vm5019, %v5012, %v5016
      %v5021 = vand.u32 2147483647, %v4756
      %vm5022 = vcmp.eq.f32.partialorder %v5021, 8.507059e+37
      %v5023 = vand.u32 %v4756, 2147483648
      %v5024 = vor.u32 1.1754944e-38, %v5023
      %v5025 = vsel %vm5022, %v5024, %v5020
      %v5026 = vmul.f32 1.0, %v5025
      %v5027 = vrcp.pop %v4757
      %v5028 = vmul.f32 %v4757, %v5027
      %v5029 = vsub.f32 1.0, %v5028
      %v5030 = vmul.f32 %v5027, %v5029
      %v5031 = vadd.f32 %v5027, %v5030
      %vm5032 = vweird.f32 %v4757
      %vm5033 = vweird.f32 %v5027
      %vm5034 = vmor %vm5032, %vm5033
      %v5035 = vsel %vm5034, %v5027, %v5031
      %v5036 = vand.u32 2147483647, %v4757
      %vm5037 = vcmp.eq.f32.partialorder %v5036, 8.507059e+37
      %v5038 = vand.u32 %v4757, 2147483648
      %v5039 = vor.u32 1.1754944e-38, %v5038
      %v5040 = vsel %vm5037, %v5039, %v5035
      %v5041 = vmul.f32 1.0, %v5040
      %v5042 = vrcp.pop %v4758
      %v5043 = vmul.f32 %v4758, %v5042
      %v5044 = vsub.f32 1.0, %v5043
      %v5045 = vmul.f32 %v5042, %v5044
      %v5046 = vadd.f32 %v5042, %v5045
      %vm5047 = vweird.f32 %v4758
      %vm5048 = vweird.f32 %v5042
      %vm5049 = vmor %vm5047, %vm5048
      %v5050 = vsel %vm5049, %v5042, %v5046
      %v5051 = vand.u32 2147483647, %v4758
      %vm5052 = vcmp.eq.f32.partialorder %v5051, 8.507059e+37
      %v5053 = vand.u32 %v4758, 2147483648
      %v5054 = vor.u32 1.1754944e-38, %v5053
      %v5055 = vsel %vm5052, %v5054, %v5050
      %v5056 = vmul.f32 1.0, %v5055
      %v5057 = vrcp.pop %v4759
      %v5058 = vmul.f32 %v4759, %v5057
      %v5059 = vsub.f32 1.0, %v5058
      %v5060 = vmul.f32 %v5057, %v5059
      %v5061 = vadd.f32 %v5057, %v5060
      %vm5062 = vweird.f32 %v4759
      %vm5063 = vweird.f32 %v5057
      %vm5064 = vmor %vm5062, %vm5063
      %v5065 = vsel %vm5064, %v5057, %v5061
      %v5066 = vand.u32 2147483647, %v4759
      %vm5067 = vcmp.eq.f32.partialorder %v5066, 8.507059e+37
      %v5068 = vand.u32 %v4759, 2147483648
      %v5069 = vor.u32 1.1754944e-38, %v5068
      %v5070 = vsel %vm5067, %v5069, %v5065
      %v5071 = vmul.f32 1.0, %v5070
      %v5072 = vrcp.pop %v4760
      %v5073 = vmul.f32 %v4760, %v5072
      %v5074 = vsub.f32 1.0, %v5073
      %v5075 = vmul.f32 %v5072, %v5074
      %v5076 = vadd.f32 %v5072, %v5075
      %vm5077 = vweird.f32 %v4760
      %vm5078 = vweird.f32 %v5072
      %vm5079 = vmor %vm5077, %vm5078
      %v5080 = vsel %vm5079, %v5072, %v5076
      %v5081 = vand.u32 2147483647, %v4760
      %vm5082 = vcmp.eq.f32.partialorder %v5081, 8.507059e+37
      %v5083 = vand.u32 %v4760, 2147483648
      %v5084 = vor.u32 1.1754944e-38, %v5083
      %v5085 = vsel %vm5082, %v5084, %v5080
      %v5086 = vmul.f32 1.0, %v5085
      %v5087 = vrcp.pop %v4761
      %v5088 = vmul.f32 %v4761, %v5087
      %v5089 = vsub.f32 1.0, %v5088
      %v5090 = vmul.f32 %v5087, %v5089
      %v5091 = vadd.f32 %v5087, %v5090
      %vm5092 = vweird.f32 %v4761
      %vm5093 = vweird.f32 %v5087
      %vm5094 = vmor %vm5092, %vm5093
      %v5095 = vsel %vm5094, %v5087, %v5091
      %v5096 = vand.u32 2147483647, %v4761
      %vm5097 = vcmp.eq.f32.partialorder %v5096, 8.507059e+37
      %v5098 = vand.u32 %v4761, 2147483648
      %v5099 = vor.u32 1.1754944e-38, %v5098
      %v5100 = vsel %vm5097, %v5099, %v5095
      %v5101 = vmul.f32 1.0, %v5100
      %v5102 = vrcp.pop %v4762
      %v5103 = vmul.f32 %v4762, %v5102
      %v5104 = vsub.f32 1.0, %v5103
      %v5105 = vmul.f32 %v5102, %v5104
      %v5106 = vadd.f32 %v5102, %v5105
      %vm5107 = vweird.f32 %v4762
      %vm5108 = vweird.f32 %v5102
      %vm5109 = vmor %vm5107, %vm5108
      %v5110 = vsel %vm5109, %v5102, %v5106
      %v5111 = vand.u32 2147483647, %v4762
      %vm5112 = vcmp.eq.f32.partialorder %v5111, 8.507059e+37
      %v5113 = vand.u32 %v4762, 2147483648
      %v5114 = vor.u32 1.1754944e-38, %v5113
      %v5115 = vsel %vm5112, %v5114, %v5110
      %v5116 = vmul.f32 1.0, %v5115
      %v5117 = vrcp.pop %v4763
      %v5118 = vmul.f32 %v4763, %v5117
      %v5119 = vsub.f32 1.0, %v5118
      %v5120 = vmul.f32 %v5117, %v5119
      %v5121 = vadd.f32 %v5117, %v5120
      %vm5122 = vweird.f32 %v4763
      %vm5123 = vweird.f32 %v5117
      %vm5124 = vmor %vm5122, %vm5123
      %v5125 = vsel %vm5124, %v5117, %v5121
      %v5126 = vand.u32 2147483647, %v4763
      %vm5127 = vcmp.eq.f32.partialorder %v5126, 8.507059e+37
      %v5128 = vand.u32 %v4763, 2147483648
      %v5129 = vor.u32 1.1754944e-38, %v5128
      %v5130 = vsel %vm5127, %v5129, %v5125
      %v5131 = vmul.f32 1.0, %v5130
      %v5132 = vrcp.pop %v4764
      %v5133 = vmul.f32 %v4764, %v5132
      %v5134 = vsub.f32 1.0, %v5133
      %v5135 = vmul.f32 %v5132, %v5134
      %v5136 = vadd.f32 %v5132, %v5135
      %vm5137 = vweird.f32 %v4764
      %vm5138 = vweird.f32 %v5132
      %vm5139 = vmor %vm5137, %vm5138
      %v5140 = vsel %vm5139, %v5132, %v5136
      %v5141 = vand.u32 2147483647, %v4764
      %vm5142 = vcmp.eq.f32.partialorder %v5141, 8.507059e+37
      %v5143 = vand.u32 %v4764, 2147483648
      %v5144 = vor.u32 1.1754944e-38, %v5143
      %v5145 = vsel %vm5142, %v5144, %v5140
      %v5146 = vmul.f32 1.0, %v5145
      %v5147 = vrcp.pop %v4765
      %v5148 = vmul.f32 %v4765, %v5147
      %v5149 = vsub.f32 1.0, %v5148
      %v5150 = vmul.f32 %v5147, %v5149
      %v5151 = vadd.f32 %v5147, %v5150
      %vm5152 = vweird.f32 %v4765
      %vm5153 = vweird.f32 %v5147
      %vm5154 = vmor %vm5152, %vm5153
      %v5155 = vsel %vm5154, %v5147, %v5151
      %v5156 = vand.u32 2147483647, %v4765
      %vm5157 = vcmp.eq.f32.partialorder %v5156, 8.507059e+37
      %v5158 = vand.u32 %v4765, 2147483648
      %v5159 = vor.u32 1.1754944e-38, %v5158
      %v5160 = vsel %vm5157, %v5159, %v5155
      %v5161 = vmul.f32 1.0, %v5160
      %v5162 = vrcp.pop %v4766
      %v5163 = vmul.f32 %v4766, %v5162
      %v5164 = vsub.f32 1.0, %v5163
      %v5165 = vmul.f32 %v5162, %v5164
      %v5166 = vadd.f32 %v5162, %v5165
      %vm5167 = vweird.f32 %v4766
      %vm5168 = vweird.f32 %v5162
      %vm5169 = vmor %vm5167, %vm5168
      %v5170 = vsel %vm5169, %v5162, %v5166
      %v5171 = vand.u32 2147483647, %v4766
      %vm5172 = vcmp.eq.f32.partialorder %v5171, 8.507059e+37
      %v5173 = vand.u32 %v4766, 2147483648
      %v5174 = vor.u32 1.1754944e-38, %v5173
      %v5175 = vsel %vm5172, %v5174, %v5170
      %v5176 = vmul.f32 1.0, %v5175
      %v5177 = vrcp.pop %v4767
      %v5178 = vmul.f32 %v4767, %v5177
      %v5179 = vsub.f32 1.0, %v5178
      %v5180 = vmul.f32 %v5177, %v5179
      %v5181 = vadd.f32 %v5177, %v5180
      %vm5182 = vweird.f32 %v4767
      %vm5183 = vweird.f32 %v5177
      %vm5184 = vmor %vm5182, %vm5183
      %v5185 = vsel %vm5184, %v5177, %v5181
      %v5186 = vand.u32 2147483647, %v4767
      %vm5187 = vcmp.eq.f32.partialorder %v5186, 8.507059e+37
      %v5188 = vand.u32 %v4767, 2147483648
      %v5189 = vor.u32 1.1754944e-38, %v5188
      %v5190 = vsel %vm5187, %v5189, %v5185
      %v5191 = vmul.f32 1.0, %v5190
      %v5192 = vrcp.pop %v4768
      %v5193 = vmul.f32 %v4768, %v5192
      %v5194 = vsub.f32 1.0, %v5193
      %v5195 = vmul.f32 %v5192, %v5194
      %v5196 = vadd.f32 %v5192, %v5195
      %vm5197 = vweird.f32 %v4768
      %vm5198 = vweird.f32 %v5192
      %vm5199 = vmor %vm5197, %vm5198
      %v5200 = vsel %vm5199, %v5192, %v5196
      %v5201 = vand.u32 2147483647, %v4768
      %vm5202 = vcmp.eq.f32.partialorder %v5201, 8.507059e+37
      %v5203 = vand.u32 %v4768, 2147483648
      %v5204 = vor.u32 1.1754944e-38, %v5203
      %v5205 = vsel %vm5202, %v5204, %v5200
      %v5206 = vmul.f32 1.0, %v5205
      %v5207 = vrcp.pop %v4769
      %v5208 = vmul.f32 %v4769, %v5207
      %v5209 = vsub.f32 1.0, %v5208
      %v5210 = vmul.f32 %v5207, %v5209
      %v5211 = vadd.f32 %v5207, %v5210
      %vm5212 = vweird.f32 %v4769
      %vm5213 = vweird.f32 %v5207
      %vm5214 = vmor %vm5212, %vm5213
      %v5215 = vsel %vm5214, %v5207, %v5211
      %v5216 = vand.u32 2147483647, %v4769
      %vm5217 = vcmp.eq.f32.partialorder %v5216, 8.507059e+37
      %v5218 = vand.u32 %v4769, 2147483648
      %v5219 = vor.u32 1.1754944e-38, %v5218
      %v5220 = vsel %vm5217, %v5219, %v5215
      %v5221 = vmul.f32 1.0, %v5220
      %v5222 = vrcp.pop %v4770
      %v5223 = vmul.f32 %v4770, %v5222
      %v5224 = vsub.f32 1.0, %v5223
      %v5225 = vmul.f32 %v5222, %v5224
      %v5226 = vadd.f32 %v5222, %v5225
      %vm5227 = vweird.f32 %v4770
      %vm5228 = vweird.f32 %v5222
      %vm5229 = vmor %vm5227, %vm5228
      %v5230 = vsel %vm5229, %v5222, %v5226
      %v5231 = vand.u32 2147483647, %v4770
      %vm5232 = vcmp.eq.f32.partialorder %v5231, 8.507059e+37
      %v5233 = vand.u32 %v4770, 2147483648
      %v5234 = vor.u32 1.1754944e-38, %v5233
      %v5235 = vsel %vm5232, %v5234, %v5230
      %v5236 = vmul.f32 1.0, %v5235
      %v5237 = vrcp.pop %v4771
      %v5238 = vmul.f32 %v4771, %v5237
      %v5239 = vsub.f32 1.0, %v5238
      %v5240 = vmul.f32 %v5237, %v5239
      %v5241 = vadd.f32 %v5237, %v5240
      %vm5242 = vweird.f32 %v4771
      %vm5243 = vweird.f32 %v5237
      %vm5244 = vmor %vm5242, %vm5243
      %v5245 = vsel %vm5244, %v5237, %v5241
      %v5246 = vand.u32 2147483647, %v4771
      %vm5247 = vcmp.eq.f32.partialorder %v5246, 8.507059e+37
      %v5248 = vand.u32 %v4771, 2147483648
      %v5249 = vor.u32 1.1754944e-38, %v5248
      %v5250 = vsel %vm5247, %v5249, %v5245
      %v5251 = vmul.f32 1.0, %v5250
      %v5252 = vmul.f32 %v4612, %v4786
      %v5253 = vmul.f32 %v4613, %v4801
      %v5254 = vmul.f32 %v4614, %v4816
      %v5255 = vmul.f32 %v4615, %v4831
      %v5256 = vmul.f32 %v4616, %v4846
      %v5257 = vmul.f32 %v4617, %v4861
      %v5258 = vmul.f32 %v4618, %v4876
      %v5259 = vmul.f32 %v4619, %v4891
      %v5260 = vmul.f32 %v4620, %v4906
      %v5261 = vmul.f32 %v4621, %v4921
      %v5262 = vmul.f32 %v4622, %v4936
      %v5263 = vmul.f32 %v4623, %v4951
      %v5264 = vmul.f32 %v4624, %v4966
      %v5265 = vmul.f32 %v4625, %v4981
      %v5266 = vmul.f32 %v4626, %v4996
      %v5267 = vmul.f32 %v4627, %v5011
      %v5268 = vmul.f32 %v4628, %v5026
      %v5269 = vmul.f32 %v4629, %v5041
      %v5270 = vmul.f32 %v4630, %v5056
      %v5271 = vmul.f32 %v4631, %v5071
      %v5272 = vmul.f32 %v4632, %v5086
      %v5273 = vmul.f32 %v4633, %v5101
      %v5274 = vmul.f32 %v4634, %v5116
      %v5275 = vmul.f32 %v4635, %v5131
      %v5276 = vmul.f32 %v4636, %v5146
      %v5277 = vmul.f32 %v4637, %v5161
      %v5278 = vmul.f32 %v4638, %v5176
      %v5279 = vmul.f32 %v4639, %v5191
      %v5280 = vmul.f32 %v4640, %v5206
      %v5281 = vmul.f32 %v4641, %v5221
      %v5282 = vmul.f32 %v4642, %v5236
      %v5283 = vmul.f32 %v4643, %v5251
      %vm5284 = vcmask 64512
      %5285 = vst.msk [vmem:[%s224] sm:$0xff] %vm5284, %v5252
      %5286 = vst.msk [vmem:[%s224 + $0x8] sm:$0xff] %vm5284, %v5253
      %5287 = vst.msk [vmem:[%s224 + $0x10] sm:$0xff] %vm5284, %v5254
      %5288 = vst.msk [vmem:[%s224 + $0x18] sm:$0xff] %vm5284, %v5255
      %5289 = vst.msk [vmem:[%s224 + $0x20] sm:$0xff] %vm5284, %v5256
      %5290 = vst.msk [vmem:[%s224 + $0x28] sm:$0xff] %vm5284, %v5257
      %5291 = vst.msk [vmem:[%s224 + $0x30] sm:$0xff] %vm5284, %v5258
      %5292 = vst.msk [vmem:[%s224 + $0x38] sm:$0xff] %vm5284, %v5259
      %5293 = vst.msk [vmem:[%s224 + $0x40] sm:$0xff] %vm5284, %v5260
      %5294 = vst.msk [vmem:[%s224 + $0x48] sm:$0xff] %vm5284, %v5261
      %5295 = vst.msk [vmem:[%s224 + $0x50] sm:$0xff] %vm5284, %v5262
      %5296 = vst.msk [vmem:[%s224 + $0x58] sm:$0xff] %vm5284, %v5263
      %5297 = vst.msk [vmem:[%s224 + $0x60] sm:$0xff] %vm5284, %v5264
      %5298 = vst.msk [vmem:[%s224 + $0x68] sm:$0xff] %vm5284, %v5265
      %5299 = vst.msk [vmem:[%s224 + $0x70] sm:$0xff] %vm5284, %v5266
      %5300 = vst.msk [vmem:[%s224 + $0x78] sm:$0xff] %vm5284, %v5267
      %5301 = vst.msk [vmem:[%s224 + $0x80] sm:$0xff] %vm5284, %v5268
      %5302 = vst.msk [vmem:[%s224 + $0x88] sm:$0xff] %vm5284, %v5269
      %5303 = vst.msk [vmem:[%s224 + $0x90] sm:$0xff] %vm5284, %v5270
      %5304 = vst.msk [vmem:[%s224 + $0x98] sm:$0xff] %vm5284, %v5271
      %5305 = vst.msk [vmem:[%s224 + $0xa0] sm:$0xff] %vm5284, %v5272
      %5306 = vst.msk [vmem:[%s224 + $0xa8] sm:$0xff] %vm5284, %v5273
      %5307 = vst.msk [vmem:[%s224 + $0xb0] sm:$0xff] %vm5284, %v5274
      %5308 = vst.msk [vmem:[%s224 + $0xb8] sm:$0xff] %vm5284, %v5275
      %5309 = vst.msk [vmem:[%s224 + $0xc0] sm:$0xff] %vm5284, %v5276
      %5310 = vst.msk [vmem:[%s224 + $0xc8] sm:$0xff] %vm5284, %v5277
      %5311 = vst.msk [vmem:[%s224 + $0xd0] sm:$0xff] %vm5284, %v5278
      %5312 = vst.msk [vmem:[%s224 + $0xd8] sm:$0xff] %vm5284, %v5279
      %5313 = vst.msk [vmem:[%s224 + $0xe0] sm:$0xff] %vm5284, %v5280
      %5314 = vst.msk [vmem:[%s224 + $0xe8] sm:$0xff] %vm5284, %v5281
      %5315 = vst.msk [vmem:[%s224 + $0xf0] sm:$0xff] %vm5284, %v5282
      %5316 = vst.msk [vmem:[%s224 + $0xf8] sm:$0xff] %vm5284, %v5283
      %p5317 = scmp.lt.s32.totalorder %s16, 1
      %s5318 = scalar_select %p5317, %s16, 1
      %s5319 = smul.addr %s5318, 32
      %s5320 = smul.addr %s5319, 8
      %s5321 = scalar_lea.vmem %s5, %s5320
      // Predicated region
      $region41: #{sppf_forward.1} parent=39 // pred_check
        %p5322 = pneg %p144
      $region42: #{sppf_forward.1} parent=39 // pred_check_branch
        %5324 = sbr.rel (%p5322) target = $region44
      $region43: #{sppf_forward.1} parent=39 // pred_region
        _
      $region44: #{sppf_forward.1} parent=39 // pred_fallthru
        _
    $region40: #{sppf_forward.1} parent=5 // pred_fallthru
      _
    %p5325 = scmp.le.s32.totalorder 2, %s11
    // Predicated region
    $region45: #{sppf_forward.1} parent=5 // pred_check
      %p5326 = pneg %p5325
    $region46: #{sppf_forward.1} parent=5 // pred_check_branch
      %5328 = sbr.rel (%p5326) target = $region48
    $region47: #{sppf_forward.1} parent=5 // pred_region
      %s5329 = ssub.s32 %s11, 2
      // Predicated region
      $region49: #{sppf_forward.1} parent=47 // pred_check
        %p5330 = pneg %p150
      $region50: #{sppf_forward.1} parent=47 // pred_check_branch
        %5332 = sbr.rel (%p5330) target = $region52
      $region51: #{sppf_forward.1} parent=47 // pred_region
        %p5333 = scmp.lt.s32.totalorder %s17, 1
        %s5334 = scalar_select %p5333, %s17, 1
        %s5335 = smul.addr %s5334, 32
        %s5336 = smul.addr %s5335, 8
        %s5337 = scalar_lea.vmem %s5, %s5336
      $region52: #{sppf_forward.1} parent=47 // pred_fallthru
        _
    $region48: #{sppf_forward.1} parent=5 // pred_fallthru
      _
  $region6: #{sppf_forward.1} parent=0 // loop_footer
    %s15 = sadd.s32 1, %s11
  $region7: #{sppf_forward.1} parent=0 // loop_footer_branch
    %10 = sbr.rel target = $region3
  $region8: #{sppf_forward.1} parent=0 // loop_exit
    _

</llo_original>
